<compile_context>
chip_gen: v6e
topology: v6e:2x2x1
jax: 0.10.0
libtpu: 0.0.40
codegen_flags: <defaults>
</compile_context>

<pallas_src>
import functools

import jax
import jax.numpy as jnp
from jax import lax
from jax.experimental import pallas as pl
from jax.experimental.pallas import tpu as pltpu


# ----------------------------- Pallas kernel ------------------------------- #

def bilstm_fc_kernel(emb_ref, h0_ref, c0_ref,
                     wih_f_ref, wih_b_ref, whh_f_ref, whh_b_ref,
                     bias_f_ref, bias_b_ref,
                     w1f_ref, w1b_ref, b1_ref, w2_ref, b2_ref,
                     sig_ref, hn_ref, cn_ref,
                     hb_scr, *, T, H):
    """Fused bidirectional LSTM + last-timestep FC head for one batch tile.

    emb_ref   : (T, B, E)  bf16  time-major embeddings for this batch tile
    h0/c0     : (2, B, H)  f32   [0]=forward dir, [1]=reverse dir
    wih_*     : (E, 4H)    bf16  W_ih.T per direction, gate order [i|f|o|g]
    whh_*     : (H, 4H)    bf16  W_hh.T per direction, gate order [i|f|o|g]
    bias_*    : (1, 4H)    f32   b_ih + b_hh per direction, gate order [i|f|o|g]
    w1f/w1b   : (H, 128)   bf16  fc1 weight.T split fwd/bwd (avoids lane concat)
    b1        : (1, 128)   f32
    w2        : (128, 1)   bf16  fc2 weight.T
    b2        : (1, 1)     f32
    sig_ref   : (B, 1)     f32   sigmoid(fc2(relu(fc1(lstm_out[:, -1, :]))))
    hn/cn     : (2, B, H)  f32   final hidden / cell states
    hb_scr    : (B, H)     f32   scratch: backward state at original time T-1
    """
    # Hoist all weight / bias reads out of the recurrence.
    wih_f = wih_f_ref[...]
    wih_b = wih_b_ref[...]
    whh_f = whh_f_ref[...]
    whh_b = whh_b_ref[...]
    bias_f = bias_f_ref[...]
    bias_b = bias_b_ref[...]

    def gate_math(gates, c):
        # Fused gate order [i | f | o | g]: ONE sigmoid over 3H lanes + one tanh.
        sfo = jax.nn.sigmoid(gates[:, 0:3 * H])
        g_g = jnp.tanh(gates[:, 3 * H:4 * H])
        i_g = sfo[:, 0:H]
        f_g = sfo[:, H:2 * H]
        o_g = sfo[:, 2 * H:3 * H]
        c_new = f_g * c + i_g * g_g
        h_new = o_g * jnp.tanh(c_new)
        return h_new, c_new

    def cell(emb_t, h, c, wih, whh, bias):
        # Per-step input projection (MXU, independent of the recurrence) +
        # recurrent matmul; bf16 operands, f32 accumulation; gate math in f32.
        gates = (jnp.dot(emb_t, wih, preferred_element_type=jnp.float32)
                 + jnp.dot(h.astype(jnp.bfloat16), whh,
                           preferred_element_type=jnp.float32)
                 + bias)
        return gate_math(gates, c)

    # --- peeled step 0: forward @ t=0, backward @ t=T-1 ----------------------
    # The backward state after its FIRST step IS lstm_out[:, -1, H:]; stash it
    # in VMEM so it is not carried live through the whole recurrence.
    h_f, c_f = cell(emb_ref[0], h0_ref[0], c0_ref[0], wih_f, whh_f, bias_f)
    h_b, c_b = cell(emb_ref[T - 1], h0_ref[1], c0_ref[1], wih_b, whh_b, bias_b)
    hb_scr[...] = h_b

    # --- remaining T-1 steps, fwd & bwd interleaved, partial unroll ----------
    def body(i, carry):
        h_f, c_f, h_b, c_b = carry
        h_f, c_f = cell(emb_ref[i], h_f, c_f, wih_f, whh_f, bias_f)
        h_b, c_b = cell(emb_ref[T - 1 - i], h_b, c_b, wih_b, whh_b, bias_b)
        return h_f, c_f, h_b, c_b

    unroll = max(1, min(8, T - 1))
    h_f, c_f, h_b, c_b = lax.fori_loop(1, T, body, (h_f, c_f, h_b, c_b),
                                       unroll=unroll)

    hn_ref[0] = h_f
    hn_ref[1] = h_b
    cn_ref[0] = c_f
    cn_ref[1] = c_b

    # --- fused FC head on the LAST timestep only (all PyTorch keeps) ---------
    hb_last = hb_scr[...]
    z1 = (jnp.dot(h_f.astype(jnp.bfloat16), w1f_ref[...],
                  preferred_element_type=jnp.float32)
          + jnp.dot(hb_last.astype(jnp.bfloat16), w1b_ref[...],
                    preferred_element_type=jnp.float32)
          + b1_ref[...])
    z1 = jnp.maximum(z1, 0.0)
    z2 = (jnp.dot(z1.astype(jnp.bfloat16), w2_ref[...],
                  preferred_element_type=jnp.float32)
          + b2_ref[...])
    sig_ref[...] = jax.nn.sigmoid(z2)


# ------------------------------- JAX wrapper -------------------------------- #

def init_params(key, vocab_size, embedding_dim, hidden_dim, fc_dim=128, output_dim=1):
    """Parameters in PyTorch layout (nn.Embedding / nn.LSTM / nn.Linear)."""
    H = hidden_dim
    ks = jax.random.split(key, 13)
    s = 0.1

    def rn(k, shape):
        return (s * jax.random.normal(k, shape)).astype(jnp.float32)

    return {
        # nn.Embedding.from_pretrained(embedding_matrix) (synthetic, deterministic)
        "embedding": jax.random.normal(ks[0], (vocab_size, embedding_dim), jnp.float32),
        # nn.LSTM(bidirectional=True): weight_ih (4H,E), weight_hh (4H,H), biases (4H,)
        "w_ih_f": rn(ks[1], (4 * H, embedding_dim)),
        "w_hh_f": rn(ks[2], (4 * H, H)),
        "b_ih_f": rn(ks[3], (4 * H,)),
        "b_hh_f": rn(ks[4], (4 * H,)),
        "w_ih_b": rn(ks[5], (4 * H, embedding_dim)),
        "w_hh_b": rn(ks[6], (4 * H, H)),
        "b_ih_b": rn(ks[7], (4 * H,)),
        "b_hh_b": rn(ks[8], (4 * H,)),
        # fc1: Linear(2H, 128), fc2: Linear(128, 1)
        "w1": rn(ks[9], (fc_dim, 2 * H)),
        "b1": rn(ks[10], (fc_dim,)),
        "w2": rn(ks[11], (output_dim, fc_dim)),
        "b2": rn(ks[12], (fc_dim,))[:output_dim],
    }


def _reorder_ifog(w, H):
    """PyTorch gate order (i, f, g, o) -> fused kernel order (i, f, o, g) along axis 0."""
    return jnp.concatenate([w[0:H], w[H:2 * H], w[3 * H:4 * H], w[2 * H:3 * H]], axis=0)


def prepare_params(params):
    """One-time reorders / transposes / casts so forward() does zero layout work."""
    H = params["w_hh_f"].shape[1]
    bf16 = jnp.bfloat16

    def prep_dir(w_ih, w_hh, b_ih, b_hh):
        wih = _reorder_ifog(w_ih, H).T.astype(bf16)                 # (E, 4H)
        whh = _reorder_ifog(w_hh, H).T.astype(bf16)                 # (H, 4H)
        bias = (_reorder_ifog(b_ih, H) + _reorder_ifog(b_hh, H)).reshape(1, -1)  # (1,4H) f32
        return wih, whh, bias

    wih_f, whh_f, bias_f = prep_dir(params["w_ih_f"], params["w_hh_f"],
                                    params["b_ih_f"], params["b_hh_f"])
    wih_b, whh_b, bias_b = prep_dir(params["w_ih_b"], params["w_hh_b"],
                                    params["b_ih_b"], params["b_hh_b"])
    w1t = params["w1"].T                                            # (2H, 128)
    # TODO(synk): zero-pad E (GloVe 300) up to the MXU-native contraction tile
    # (384 on v5e, 512 on v6e/v7x) in wih_* and the embedding table.
    return {
        "embedding": params["embedding"].astype(bf16),
        "wih_f": wih_f, "wih_b": wih_b,
        "whh_f": whh_f, "whh_b": whh_b,
        "bias_f": bias_f, "bias_b": bias_b,
        "w1_f": w1t[:H].astype(bf16),                               # (H, 128)
        "w1_b": w1t[H:].astype(bf16),                               # (H, 128)
        "b1": params["b1"].reshape(1, -1),                          # (1, 128)
        "w2": params["w2"].T.astype(bf16),                          # (128, 1)
        "b2": params["b2"].reshape(1, -1),                          # (1, 1)
    }


def forward(prepared, x, hidden, b_tile=128):
    """Mirrors TwitterClassification.forward(x, hidden). Returns (sig_out[:, -1], (hn, cn))."""
    B, T = x.shape
    E = prepared["wih_f"].shape[0]
    H = prepared["whh_f"].shape[0]
    FC = prepared["b1"].shape[1]

    # Batch tile: large tiles fill the MXU's M dimension; grid is megacore-parallel.
    if B >= b_tile:
        BT = b_tile
    else:
        BT = ((B + 7) // 8) * 8
    BP = ((B + BT - 1) // BT) * BT
    num_tiles = BP // BT

    h0, c0 = hidden
    if BP != B:
        pad = BP - B
        x = jnp.pad(x, ((0, pad), (0, 0)))
        h0 = jnp.pad(h0, ((0, 0), (0, pad), (0, 0)))
        c0 = jnp.pad(c0, ((0, 0), (0, pad), (0, 0)))

    # Frozen-GloVe lookup, time-major (T, BP, E), bf16 (halves HBM/VMEM traffic).
    # TODO(synk): fuse the gather into the kernel (scalar-prefetched ids +
    # pl.Element row gather) to avoid materializing (T, BP, E) in HBM at production B.
    emb = prepared["embedding"][x.T]                                # (T, BP, E) bf16

    const2 = lambda i: (0, 0)
    in_specs = [
        pl.BlockSpec((T, BT, E), lambda i: (0, i, 0)),              # emb (batch-tiled)
        pl.BlockSpec((2, BT, H), lambda i: (0, i, 0)),              # h0
        pl.BlockSpec((2, BT, H), lambda i: (0, i, 0)),              # c0
        pl.BlockSpec((E, 4 * H), const2),                           # wih_f
        pl.BlockSpec((E, 4 * H), const2),                           # wih_b
        pl.BlockSpec((H, 4 * H), const2),                           # whh_f
        pl.BlockSpec((H, 4 * H), const2),                           # whh_b
        pl.BlockSpec((1, 4 * H), const2),                           # bias_f
        pl.BlockSpec((1, 4 * H), const2),                           # bias_b
        pl.BlockSpec((H, FC), const2),                              # w1_f
        pl.BlockSpec((H, FC), const2),                              # w1_b
        pl.BlockSpec((1, FC), const2),                              # b1
        pl.BlockSpec((FC, 1), const2),                              # w2
        pl.BlockSpec((1, 1), const2),                               # b2
    ]
    out_specs = (
        pl.BlockSpec((BT, 1), lambda i: (i, 0)),                    # sig
        pl.BlockSpec((2, BT, H), lambda i: (0, i, 0)),              # hn
        pl.BlockSpec((2, BT, H), lambda i: (0, i, 0)),              # cn
    )

    kernel = functools.partial(bilstm_fc_kernel, T=T, H=H)

    sig, hn, cn = pl.pallas_call(
        kernel,
        out_shape=(
            jax.ShapeDtypeStruct((BP, 1), jnp.float32),
            jax.ShapeDtypeStruct((2, BP, H), jnp.float32),
            jax.ShapeDtypeStruct((2, BP, H), jnp.float32),
        ),
        grid_spec=pltpu.PrefetchScalarGridSpec(
            num_scalar_prefetch=0,
            grid=(num_tiles,),
            in_specs=in_specs,
            out_specs=out_specs,
            scratch_shapes=[pltpu.VMEM((BT, H), jnp.float32)],      # hb_scr
        ),
        compiler_params=pltpu.CompilerParams(
            dimension_semantics=("parallel",),                      # megacore on v7x
            vmem_limit_bytes=32 * 1024 * 1024,                      # fits v5e/v6e/v7x
        ),
    )(emb, h0, c0,
      prepared["wih_f"], prepared["wih_b"],
      prepared["whh_f"], prepared["whh_b"],
      prepared["bias_f"], prepared["bias_b"],
      prepared["w1_f"], prepared["w1_b"], prepared["b1"],
      prepared["w2"], prepared["b2"])

    sig_out = sig[:B, 0]                                            # sig_out.view(B,-1)[:, -1]
    return sig_out, (hn[:, :B], cn[:, :B])


def init_hidden(batch_size, hidden_dim, no_layers=1):
    h0 = jnp.zeros((no_layers * 2, batch_size, hidden_dim), jnp.float32)
    c0 = jnp.zeros((no_layers * 2, batch_size, hidden_dim), jnp.float32)
    return (h0, c0)


if __name__ == "__main__":
    # Small shapes consistent with the module (scaled-down GloVe / hidden dims).
    vocab_size = 50
    embedding_dim = 32
    hidden_dim = 32
    B, T = 2, 8

    key = jax.random.PRNGKey(0)
    kp, kx = jax.random.split(key)

    params = init_params(kp, vocab_size, embedding_dim, hidden_dim)
    prepared = prepare_params(params)
    x = jax.random.randint(kx, (B, T), 0, vocab_size, dtype=jnp.int32)
    hidden = init_hidden(B, hidden_dim)

    fwd = jax.jit(forward)
    sig_out, (hn, cn) = fwd(prepared, x, hidden)
    jax.block_until_ready((sig_out, hn, cn))

    assert sig_out.shape == (B,)
    assert hn.shape == (2, B, hidden_dim) and cn.shape == (2, B, hidden_dim)
    assert bool(jnp.all(jnp.isfinite(sig_out)))
    assert bool(jnp.all((sig_out >= 0.0) & (sig_out <= 1.0)))
    print("KERNEL_OK")
</pallas_src>

<mosaic_0001>
module attributes {stable_mosaic.version = 11 : i64} {
  func.func @bilstm_fc_kernel(%arg0: i32, %arg1: memref<8x8x32xbf16, #tpu.memory_space<vmem>>, %arg2: memref<2x8x32xf32, #tpu.memory_space<vmem>>, %arg3: memref<2x8x32xf32, #tpu.memory_space<vmem>>, %arg4: memref<32x128xbf16, #tpu.memory_space<vmem>>, %arg5: memref<32x128xbf16, #tpu.memory_space<vmem>>, %arg6: memref<32x128xbf16, #tpu.memory_space<vmem>>, %arg7: memref<32x128xbf16, #tpu.memory_space<vmem>>, %arg8: memref<1x128xf32, #tpu.memory_space<vmem>>, %arg9: memref<1x128xf32, #tpu.memory_space<vmem>>, %arg10: memref<32x128xbf16, #tpu.memory_space<vmem>>, %arg11: memref<32x128xbf16, #tpu.memory_space<vmem>>, %arg12: memref<1x128xf32, #tpu.memory_space<vmem>>, %arg13: memref<128x1xbf16, #tpu.memory_space<vmem>>, %arg14: memref<1x1xf32, #tpu.memory_space<vmem>>, %arg15: memref<8x1xf32, #tpu.memory_space<vmem>>, %arg16: memref<2x8x32xf32, #tpu.memory_space<vmem>>, %arg17: memref<2x8x32xf32, #tpu.memory_space<vmem>>, %arg18: memref<8x32xf32, #tpu.memory_space<vmem>>) attributes {dimension_semantics = [#tpu.dimension_semantics<parallel>], iteration_bounds = array<i64: 1>, scalar_prefetch = 0 : i64, scratch_operands = 1 : i64, tpu.core_type = #tpu.core_type<tc>, window_params = [{transform_indices = @transform_0, window_bounds = array<i64: 8, 8, 32>}, {transform_indices = @transform_1, window_bounds = array<i64: 2, 8, 32>}, {transform_indices = @transform_2, window_bounds = array<i64: 2, 8, 32>}, {pipeline_mode = #tpu.pipeline_mode<synchronous>, transform_indices = @transform_3, window_bounds = array<i64: 32, 128>}, {pipeline_mode = #tpu.pipeline_mode<synchronous>, transform_indices = @transform_4, window_bounds = array<i64: 32, 128>}, {pipeline_mode = #tpu.pipeline_mode<synchronous>, transform_indices = @transform_5, window_bounds = array<i64: 32, 128>}, {pipeline_mode = #tpu.pipeline_mode<synchronous>, transform_indices = @transform_6, window_bounds = array<i64: 32, 128>}, {pipeline_mode = #tpu.pipeline_mode<synchronous>, transform_indices = @transform_7, window_bounds = array<i64: 1, 128>}, {pipeline_mode = #tpu.pipeline_mode<synchronous>, transform_indices = @transform_8, window_bounds = array<i64: 1, 128>}, {pipeline_mode = #tpu.pipeline_mode<synchronous>, transform_indices = @transform_9, window_bounds = array<i64: 32, 128>}, {pipeline_mode = #tpu.pipeline_mode<synchronous>, transform_indices = @transform_10, window_bounds = array<i64: 32, 128>}, {pipeline_mode = #tpu.pipeline_mode<synchronous>, transform_indices = @transform_11, window_bounds = array<i64: 1, 128>}, {pipeline_mode = #tpu.pipeline_mode<synchronous>, transform_indices = @transform_12, window_bounds = array<i64: 128, 1>}, {pipeline_mode = #tpu.pipeline_mode<synchronous>, transform_indices = @transform_13, window_bounds = array<i64: 1, 1>}, {transform_indices = @transform_14, window_bounds = array<i64: 8, 1>}, {transform_indices = @transform_15, window_bounds = array<i64: 2, 8, 32>}, {transform_indices = @transform_16, window_bounds = array<i64: 2, 8, 32>}]} {
    %c0 = arith.constant 0 : index
    %c0_0 = arith.constant 0 : index
    %0 = vector.load %arg4[%c0, %c0_0] : memref<32x128xbf16, #tpu.memory_space<vmem>>, vector<32x128xbf16>
    %c0_1 = arith.constant 0 : index
    %c0_2 = arith.constant 0 : index
    %1 = vector.load %arg5[%c0_1, %c0_2] : memref<32x128xbf16, #tpu.memory_space<vmem>>, vector<32x128xbf16>
    %c0_3 = arith.constant 0 : index
    %c0_4 = arith.constant 0 : index
    %2 = vector.load %arg6[%c0_3, %c0_4] : memref<32x128xbf16, #tpu.memory_space<vmem>>, vector<32x128xbf16>
    %c0_5 = arith.constant 0 : index
    %c0_6 = arith.constant 0 : index
    %3 = vector.load %arg7[%c0_5, %c0_6] : memref<32x128xbf16, #tpu.memory_space<vmem>>, vector<32x128xbf16>
    %c0_7 = arith.constant 0 : index
    %c0_8 = arith.constant 0 : index
    %4 = vector.load %arg8[%c0_7, %c0_8] : memref<1x128xf32, #tpu.memory_space<vmem>>, vector<1x128xf32>
    %c0_9 = arith.constant 0 : index
    %c0_10 = arith.constant 0 : index
    %5 = vector.load %arg9[%c0_9, %c0_10] : memref<1x128xf32, #tpu.memory_space<vmem>>, vector<1x128xf32>
    %c0_11 = arith.constant 0 : index
    %c0_12 = arith.constant 0 : index
    %c0_13 = arith.constant 0 : index
    %6 = vector.load %arg1[%c0_11, %c0_12, %c0_13] : memref<8x8x32xbf16, #tpu.memory_space<vmem>>, vector<1x8x32xbf16>
    %7 = vector.shape_cast %6 : vector<1x8x32xbf16> to vector<8x32xbf16>
    %c0_14 = arith.constant 0 : index
    %c0_15 = arith.constant 0 : index
    %c0_16 = arith.constant 0 : index
    %8 = vector.load %arg2[%c0_14, %c0_15, %c0_16] : memref<2x8x32xf32, #tpu.memory_space<vmem>>, vector<1x8x32xf32>
    %9 = vector.shape_cast %8 : vector<1x8x32xf32> to vector<8x32xf32>
    %c0_17 = arith.constant 0 : index
    %c0_18 = arith.constant 0 : index
    %c0_19 = arith.constant 0 : index
    %10 = vector.load %arg3[%c0_17, %c0_18, %c0_19] : memref<2x8x32xf32, #tpu.memory_space<vmem>>, vector<1x8x32xf32>
    %11 = vector.shape_cast %10 : vector<1x8x32xf32> to vector<8x32xf32>
    %cst = arith.constant dense<0.000000e+00> : vector<8x128xf32>
    %12 = tpu.matmul %7, %0, %cst {dimension_numbers = #tpu.dot_dimension_numbers<[1], [0], [0], [1], [0, 0, 1, 1], [], []>} : vector<8x32xbf16>, vector<32x128xbf16>, vector<8x128xf32> -> vector<8x128xf32>
    %13 = arith.truncf %9 : vector<8x32xf32> to vector<8x32xbf16>
    %cst_20 = arith.constant dense<0.000000e+00> : vector<8x128xf32>
    %14 = tpu.matmul %13, %2, %cst_20 {dimension_numbers = #tpu.dot_dimension_numbers<[1], [0], [0], [1], [0, 0, 1, 1], [], []>} : vector<8x32xbf16>, vector<32x128xbf16>, vector<8x128xf32> -> vector<8x128xf32>
    %15 = arith.addf %12, %14 : vector<8x128xf32>
    %16 = vector.broadcast %4 : vector<1x128xf32> to vector<8x128xf32>
    %17 = arith.addf %15, %16 : vector<8x128xf32>
    %18 = vector.extract_strided_slice %17 {offsets = [0, 0], sizes = [8, 96], strides = [1, 1]} : vector<8x128xf32> to vector<8x96xf32>
    %19 = arith.negf %18 : vector<8x96xf32>
    %20 = math.exp %19 : vector<8x96xf32>
    %cst_21 = arith.constant 1.000000e+00 : f32
    %21 = vector.broadcast %cst_21 : f32 to vector<8x96xf32>
    %22 = arith.addf %21, %20 : vector<8x96xf32>
    %23 = arith.divf %21, %22 : vector<8x96xf32>
    %24 = vector.extract_strided_slice %17 {offsets = [0, 96], sizes = [8, 32], strides = [1, 1]} : vector<8x128xf32> to vector<8x32xf32>
    %25 = math.tanh %24 : vector<8x32xf32>
    %26 = vector.extract_strided_slice %23 {offsets = [0, 0], sizes = [8, 32], strides = [1, 1]} : vector<8x96xf32> to vector<8x32xf32>
    %27 = vector.extract_strided_slice %23 {offsets = [0, 32], sizes = [8, 32], strides = [1, 1]} : vector<8x96xf32> to vector<8x32xf32>
    %28 = vector.extract_strided_slice %23 {offsets = [0, 64], sizes = [8, 32], strides = [1, 1]} : vector<8x96xf32> to vector<8x32xf32>
    %29 = arith.mulf %27, %11 : vector<8x32xf32>
    %30 = arith.mulf %26, %25 : vector<8x32xf32>
    %31 = arith.addf %29, %30 : vector<8x32xf32>
    %32 = math.tanh %31 : vector<8x32xf32>
    %33 = arith.mulf %28, %32 : vector<8x32xf32>
    %c7 = arith.constant 7 : index
    %c0_22 = arith.constant 0 : index
    %c0_23 = arith.constant 0 : index
    %34 = vector.load %arg1[%c7, %c0_22, %c0_23] : memref<8x8x32xbf16, #tpu.memory_space<vmem>>, vector<1x8x32xbf16>
    %35 = vector.shape_cast %34 : vector<1x8x32xbf16> to vector<8x32xbf16>
    %c1 = arith.constant 1 : index
    %c0_24 = arith.constant 0 : index
    %c0_25 = arith.constant 0 : index
    %36 = vector.load %arg2[%c1, %c0_24, %c0_25] : memref<2x8x32xf32, #tpu.memory_space<vmem>>, vector<1x8x32xf32>
    %37 = vector.shape_cast %36 : vector<1x8x32xf32> to vector<8x32xf32>
    %c1_26 = arith.constant 1 : index
    %c0_27 = arith.constant 0 : index
    %c0_28 = arith.constant 0 : index
    %38 = vector.load %arg3[%c1_26, %c0_27, %c0_28] : memref<2x8x32xf32, #tpu.memory_space<vmem>>, vector<1x8x32xf32>
    %39 = vector.shape_cast %38 : vector<1x8x32xf32> to vector<8x32xf32>
    %cst_29 = arith.constant dense<0.000000e+00> : vector<8x128xf32>
    %40 = tpu.matmul %35, %1, %cst_29 {dimension_numbers = #tpu.dot_dimension_numbers<[1], [0], [0], [1], [0, 0, 1, 1], [], []>} : vector<8x32xbf16>, vector<32x128xbf16>, vector<8x128xf32> -> vector<8x128xf32>
    %41 = arith.truncf %37 : vector<8x32xf32> to vector<8x32xbf16>
    %cst_30 = arith.constant dense<0.000000e+00> : vector<8x128xf32>
    %42 = tpu.matmul %41, %3, %cst_30 {dimension_numbers = #tpu.dot_dimension_numbers<[1], [0], [0], [1], [0, 0, 1, 1], [], []>} : vector<8x32xbf16>, vector<32x128xbf16>, vector<8x128xf32> -> vector<8x128xf32>
    %43 = arith.addf %40, %42 : vector<8x128xf32>
    %44 = vector.broadcast %5 : vector<1x128xf32> to vector<8x128xf32>
    %45 = arith.addf %43, %44 : vector<8x128xf32>
    %46 = vector.extract_strided_slice %45 {offsets = [0, 0], sizes = [8, 96], strides = [1, 1]} : vector<8x128xf32> to vector<8x96xf32>
    %47 = arith.negf %46 : vector<8x96xf32>
    %48 = math.exp %47 : vector<8x96xf32>
    %cst_31 = arith.constant 1.000000e+00 : f32
    %49 = vector.broadcast %cst_31 : f32 to vector<8x96xf32>
    %50 = arith.addf %49, %48 : vector<8x96xf32>
    %51 = arith.divf %49, %50 : vector<8x96xf32>
    %52 = vector.extract_strided_slice %45 {offsets = [0, 96], sizes = [8, 32], strides = [1, 1]} : vector<8x128xf32> to vector<8x32xf32>
    %53 = math.tanh %52 : vector<8x32xf32>
    %54 = vector.extract_strided_slice %51 {offsets = [0, 0], sizes = [8, 32], strides = [1, 1]} : vector<8x96xf32> to vector<8x32xf32>
    %55 = vector.extract_strided_slice %51 {offsets = [0, 32], sizes = [8, 32], strides = [1, 1]} : vector<8x96xf32> to vector<8x32xf32>
    %56 = vector.extract_strided_slice %51 {offsets = [0, 64], sizes = [8, 32], strides = [1, 1]} : vector<8x96xf32> to vector<8x32xf32>
    %57 = arith.mulf %55, %39 : vector<8x32xf32>
    %58 = arith.mulf %54, %53 : vector<8x32xf32>
    %59 = arith.addf %57, %58 : vector<8x32xf32>
    %60 = math.tanh %59 : vector<8x32xf32>
    %61 = arith.mulf %56, %60 : vector<8x32xf32>
    %c0_32 = arith.constant 0 : index
    %c0_33 = arith.constant 0 : index
    %62 = vector.load %arg18[%c0_32, %c0_33] : memref<8x32xf32, #tpu.memory_space<vmem>>, vector<8x32xf32>
    tpu.vector_store %arg18[%c0_32, %c0_33], %61 {strides = array<i32>} : memref<8x32xf32, #tpu.memory_space<vmem>>, vector<8x32xf32>,
    %c1_i32 = arith.constant 1 : i32
    %63 = arith.index_cast %c1_i32 : i32 to index
    %c0_34 = arith.constant 0 : index
    %c0_35 = arith.constant 0 : index
    %64 = vector.load %arg1[%63, %c0_34, %c0_35] : memref<8x8x32xbf16, #tpu.memory_space<vmem>>, vector<1x8x32xbf16>
    %65 = vector.shape_cast %64 : vector<1x8x32xbf16> to vector<8x32xbf16>
    %cst_36 = arith.constant dense<0.000000e+00> : vector<8x128xf32>
    %66 = tpu.matmul %65, %0, %cst_36 {dimension_numbers = #tpu.dot_dimension_numbers<[1], [0], [0], [1], [0, 0, 1, 1], [], []>} : vector<8x32xbf16>, vector<32x128xbf16>, vector<8x128xf32> -> vector<8x128xf32>
    %67 = arith.truncf %33 : vector<8x32xf32> to vector<8x32xbf16>
    %cst_37 = arith.constant dense<0.000000e+00> : vector<8x128xf32>
    %68 = tpu.matmul %67, %2, %cst_37 {dimension_numbers = #tpu.dot_dimension_numbers<[1], [0], [0], [1], [0, 0, 1, 1], [], []>} : vector<8x32xbf16>, vector<32x128xbf16>, vector<8x128xf32> -> vector<8x128xf32>
    %69 = arith.addf %66, %68 : vector<8x128xf32>
    %70 = vector.broadcast %4 : vector<1x128xf32> to vector<8x128xf32>
    %71 = arith.addf %69, %70 : vector<8x128xf32>
    %72 = vector.extract_strided_slice %71 {offsets = [0, 0], sizes = [8, 96], strides = [1, 1]} : vector<8x128xf32> to vector<8x96xf32>
    %73 = arith.negf %72 : vector<8x96xf32>
    %74 = math.exp %73 : vector<8x96xf32>
    %cst_38 = arith.constant 1.000000e+00 : f32
    %75 = vector.broadcast %cst_38 : f32 to vector<8x96xf32>
    %76 = arith.addf %75, %74 : vector<8x96xf32>
    %77 = arith.divf %75, %76 : vector<8x96xf32>
    %78 = vector.extract_strided_slice %71 {offsets = [0, 96], sizes = [8, 32], strides = [1, 1]} : vector<8x128xf32> to vector<8x32xf32>
    %79 = math.tanh %78 : vector<8x32xf32>
    %80 = vector.extract_strided_slice %77 {offsets = [0, 0], sizes = [8, 32], strides = [1, 1]} : vector<8x96xf32> to vector<8x32xf32>
    %81 = vector.extract_strided_slice %77 {offsets = [0, 32], sizes = [8, 32], strides = [1, 1]} : vector<8x96xf32> to vector<8x32xf32>
    %82 = vector.extract_strided_slice %77 {offsets = [0, 64], sizes = [8, 32], strides = [1, 1]} : vector<8x96xf32> to vector<8x32xf32>
    %83 = arith.mulf %81, %31 : vector<8x32xf32>
    %84 = arith.mulf %80, %79 : vector<8x32xf32>
    %85 = arith.addf %83, %84 : vector<8x32xf32>
    %86 = math.tanh %85 : vector<8x32xf32>
    %87 = arith.mulf %82, %86 : vector<8x32xf32>
    %c7_i32 = arith.constant 7 : i32
    %88 = arith.subi %c7_i32, %c1_i32 : i32
    %89 = arith.index_cast %88 : i32 to index
    %c0_39 = arith.constant 0 : index
    %c0_40 = arith.constant 0 : index
    %90 = vector.load %arg1[%89, %c0_39, %c0_40] : memref<8x8x32xbf16, #tpu.memory_space<vmem>>, vector<1x8x32xbf16>
    %91 = vector.shape_cast %90 : vector<1x8x32xbf16> to vector<8x32xbf16>
    %cst_41 = arith.constant dense<0.000000e+00> : vector<8x128xf32>
    %92 = tpu.matmul %91, %1, %cst_41 {dimension_numbers = #tpu.dot_dimension_numbers<[1], [0], [0], [1], [0, 0, 1, 1], [], []>} : vector<8x32xbf16>, vector<32x128xbf16>, vector<8x128xf32> -> vector<8x128xf32>
    %93 = arith.truncf %61 : vector<8x32xf32> to vector<8x32xbf16>
    %cst_42 = arith.constant dense<0.000000e+00> : vector<8x128xf32>
    %94 = tpu.matmul %93, %3, %cst_42 {dimension_numbers = #tpu.dot_dimension_numbers<[1], [0], [0], [1], [0, 0, 1, 1], [], []>} : vector<8x32xbf16>, vector<32x128xbf16>, vector<8x128xf32> -> vector<8x128xf32>
    %95 = arith.addf %92, %94 : vector<8x128xf32>
    %96 = vector.broadcast %5 : vector<1x128xf32> to vector<8x128xf32>
    %97 = arith.addf %95, %96 : vector<8x128xf32>
    %98 = vector.extract_strided_slice %97 {offsets = [0, 0], sizes = [8, 96], strides = [1, 1]} : vector<8x128xf32> to vector<8x96xf32>
    %99 = arith.negf %98 : vector<8x96xf32>
    %100 = math.exp %99 : vector<8x96xf32>
    %cst_43 = arith.constant 1.000000e+00 : f32
    %101 = vector.broadcast %cst_43 : f32 to vector<8x96xf32>
    %102 = arith.addf %101, %100 : vector<8x96xf32>
    %103 = arith.divf %101, %102 : vector<8x96xf32>
    %104 = vector.extract_strided_slice %97 {offsets = [0, 96], sizes = [8, 32], strides = [1, 1]} : vector<8x128xf32> to vector<8x32xf32>
    %105 = math.tanh %104 : vector<8x32xf32>
    %106 = vector.extract_strided_slice %103 {offsets = [0, 0], sizes = [8, 32], strides = [1, 1]} : vector<8x96xf32> to vector<8x32xf32>
    %107 = vector.extract_strided_slice %103 {offsets = [0, 32], sizes = [8, 32], strides = [1, 1]} : vector<8x96xf32> to vector<8x32xf32>
    %108 = vector.extract_strided_slice %103 {offsets = [0, 64], sizes = [8, 32], strides = [1, 1]} : vector<8x96xf32> to vector<8x32xf32>
    %109 = arith.mulf %107, %59 : vector<8x32xf32>
    %110 = arith.mulf %106, %105 : vector<8x32xf32>
    %111 = arith.addf %109, %110 : vector<8x32xf32>
    %112 = math.tanh %111 : vector<8x32xf32>
    %113 = arith.mulf %108, %112 : vector<8x32xf32>
    %c2_i32 = arith.constant 2 : i32
    %114 = arith.index_cast %c2_i32 : i32 to index
    %c0_44 = arith.constant 0 : index
    %c0_45 = arith.constant 0 : index
    %115 = vector.load %arg1[%114, %c0_44, %c0_45] : memref<8x8x32xbf16, #tpu.memory_space<vmem>>, vector<1x8x32xbf16>
    %116 = vector.shape_cast %115 : vector<1x8x32xbf16> to vector<8x32xbf16>
    %cst_46 = arith.constant dense<0.000000e+00> : vector<8x128xf32>
    %117 = tpu.matmul %116, %0, %cst_46 {dimension_numbers = #tpu.dot_dimension_numbers<[1], [0], [0], [1], [0, 0, 1, 1], [], []>} : vector<8x32xbf16>, vector<32x128xbf16>, vector<8x128xf32> -> vector<8x128xf32>
    %118 = arith.truncf %87 : vector<8x32xf32> to vector<8x32xbf16>
    %cst_47 = arith.constant dense<0.000000e+00> : vector<8x128xf32>
    %119 = tpu.matmul %118, %2, %cst_47 {dimension_numbers = #tpu.dot_dimension_numbers<[1], [0], [0], [1], [0, 0, 1, 1], [], []>} : vector<8x32xbf16>, vector<32x128xbf16>, vector<8x128xf32> -> vector<8x128xf32>
    %120 = arith.addf %117, %119 : vector<8x128xf32>
    %121 = vector.broadcast %4 : vector<1x128xf32> to vector<8x128xf32>
    %122 = arith.addf %120, %121 : vector<8x128xf32>
    %123 = vector.extract_strided_slice %122 {offsets = [0, 0], sizes = [8, 96], strides = [1, 1]} : vector<8x128xf32> to vector<8x96xf32>
    %124 = arith.negf %123 : vector<8x96xf32>
    %125 = math.exp %124 : vector<8x96xf32>
    %cst_48 = arith.constant 1.000000e+00 : f32
    %126 = vector.broadcast %cst_48 : f32 to vector<8x96xf32>
    %127 = arith.addf %126, %125 : vector<8x96xf32>
    %128 = arith.divf %126, %127 : vector<8x96xf32>
    %129 = vector.extract_strided_slice %122 {offsets = [0, 96], sizes = [8, 32], strides = [1, 1]} : vector<8x128xf32> to vector<8x32xf32>
    %130 = math.tanh %129 : vector<8x32xf32>
    %131 = vector.extract_strided_slice %128 {offsets = [0, 0], sizes = [8, 32], strides = [1, 1]} : vector<8x96xf32> to vector<8x32xf32>
    %132 = vector.extract_strided_slice %128 {offsets = [0, 32], sizes = [8, 32], strides = [1, 1]} : vector<8x96xf32> to vector<8x32xf32>
    %133 = vector.extract_strided_slice %128 {offsets = [0, 64], sizes = [8, 32], strides = [1, 1]} : vector<8x96xf32> to vector<8x32xf32>
    %134 = arith.mulf %132, %85 : vector<8x32xf32>
    %135 = arith.mulf %131, %130 : vector<8x32xf32>
    %136 = arith.addf %134, %135 : vector<8x32xf32>
    %137 = math.tanh %136 : vector<8x32xf32>
    %138 = arith.mulf %133, %137 : vector<8x32xf32>
    %c7_i32_49 = arith.constant 7 : i32
    %139 = arith.subi %c7_i32_49, %c2_i32 : i32
    %140 = arith.index_cast %139 : i32 to index
    %c0_50 = arith.constant 0 : index
    %c0_51 = arith.constant 0 : index
    %141 = vector.load %arg1[%140, %c0_50, %c0_51] : memref<8x8x32xbf16, #tpu.memory_space<vmem>>, vector<1x8x32xbf16>
    %142 = vector.shape_cast %141 : vector<1x8x32xbf16> to vector<8x32xbf16>
    %cst_52 = arith.constant dense<0.000000e+00> : vector<8x128xf32>
    %143 = tpu.matmul %142, %1, %cst_52 {dimension_numbers = #tpu.dot_dimension_numbers<[1], [0], [0], [1], [0, 0, 1, 1], [], []>} : vector<8x32xbf16>, vector<32x128xbf16>, vector<8x128xf32> -> vector<8x128xf32>
    %144 = arith.truncf %113 : vector<8x32xf32> to vector<8x32xbf16>
    %cst_53 = arith.constant dense<0.000000e+00> : vector<8x128xf32>
    %145 = tpu.matmul %144, %3, %cst_53 {dimension_numbers = #tpu.dot_dimension_numbers<[1], [0], [0], [1], [0, 0, 1, 1], [], []>} : vector<8x32xbf16>, vector<32x128xbf16>, vector<8x128xf32> -> vector<8x128xf32>
    %146 = arith.addf %143, %145 : vector<8x128xf32>
    %147 = vector.broadcast %5 : vector<1x128xf32> to vector<8x128xf32>
    %148 = arith.addf %146, %147 : vector<8x128xf32>
    %149 = vector.extract_strided_slice %148 {offsets = [0, 0], sizes = [8, 96], strides = [1, 1]} : vector<8x128xf32> to vector<8x96xf32>
    %150 = arith.negf %149 : vector<8x96xf32>
    %151 = math.exp %150 : vector<8x96xf32>
    %cst_54 = arith.constant 1.000000e+00 : f32
    %152 = vector.broadcast %cst_54 : f32 to vector<8x96xf32>
    %153 = arith.addf %152, %151 : vector<8x96xf32>
    %154 = arith.divf %152, %153 : vector<8x96xf32>
    %155 = vector.extract_strided_slice %148 {offsets = [0, 96], sizes = [8, 32], strides = [1, 1]} : vector<8x128xf32> to vector<8x32xf32>
    %156 = math.tanh %155 : vector<8x32xf32>
    %157 = vector.extract_strided_slice %154 {offsets = [0, 0], sizes = [8, 32], strides = [1, 1]} : vector<8x96xf32> to vector<8x32xf32>
    %158 = vector.extract_strided_slice %154 {offsets = [0, 32], sizes = [8, 32], strides = [1, 1]} : vector<8x96xf32> to vector<8x32xf32>
    %159 = vector.extract_strided_slice %154 {offsets = [0, 64], sizes = [8, 32], strides = [1, 1]} : vector<8x96xf32> to vector<8x32xf32>
    %160 = arith.mulf %158, %111 : vector<8x32xf32>
    %161 = arith.mulf %157, %156 : vector<8x32xf32>
    %162 = arith.addf %160, %161 : vector<8x32xf32>
    %163 = math.tanh %162 : vector<8x32xf32>
    %164 = arith.mulf %159, %163 : vector<8x32xf32>
    %c3_i32 = arith.constant 3 : i32
    %165 = arith.index_cast %c3_i32 : i32 to index
    %c0_55 = arith.constant 0 : index
    %c0_56 = arith.constant 0 : index
    %166 = vector.load %arg1[%165, %c0_55, %c0_56] : memref<8x8x32xbf16, #tpu.memory_space<vmem>>, vector<1x8x32xbf16>
    %167 = vector.shape_cast %166 : vector<1x8x32xbf16> to vector<8x32xbf16>
    %cst_57 = arith.constant dense<0.000000e+00> : vector<8x128xf32>
    %168 = tpu.matmul %167, %0, %cst_57 {dimension_numbers = #tpu.dot_dimension_numbers<[1], [0], [0], [1], [0, 0, 1, 1], [], []>} : vector<8x32xbf16>, vector<32x128xbf16>, vector<8x128xf32> -> vector<8x128xf32>
    %169 = arith.truncf %138 : vector<8x32xf32> to vector<8x32xbf16>
    %cst_58 = arith.constant dense<0.000000e+00> : vector<8x128xf32>
    %170 = tpu.matmul %169, %2, %cst_58 {dimension_numbers = #tpu.dot_dimension_numbers<[1], [0], [0], [1], [0, 0, 1, 1], [], []>} : vector<8x32xbf16>, vector<32x128xbf16>, vector<8x128xf32> -> vector<8x128xf32>
    %171 = arith.addf %168, %170 : vector<8x128xf32>
    %172 = vector.broadcast %4 : vector<1x128xf32> to vector<8x128xf32>
    %173 = arith.addf %171, %172 : vector<8x128xf32>
    %174 = vector.extract_strided_slice %173 {offsets = [0, 0], sizes = [8, 96], strides = [1, 1]} : vector<8x128xf32> to vector<8x96xf32>
    %175 = arith.negf %174 : vector<8x96xf32>
    %176 = math.exp %175 : vector<8x96xf32>
    %cst_59 = arith.constant 1.000000e+00 : f32
    %177 = vector.broadcast %cst_59 : f32 to vector<8x96xf32>
    %178 = arith.addf %177, %176 : vector<8x96xf32>
    %179 = arith.divf %177, %178 : vector<8x96xf32>
    %180 = vector.extract_strided_slice %173 {offsets = [0, 96], sizes = [8, 32], strides = [1, 1]} : vector<8x128xf32> to vector<8x32xf32>
    %181 = math.tanh %180 : vector<8x32xf32>
    %182 = vector.extract_strided_slice %179 {offsets = [0, 0], sizes = [8, 32], strides = [1, 1]} : vector<8x96xf32> to vector<8x32xf32>
    %183 = vector.extract_strided_slice %179 {offsets = [0, 32], sizes = [8, 32], strides = [1, 1]} : vector<8x96xf32> to vector<8x32xf32>
    %184 = vector.extract_strided_slice %179 {offsets = [0, 64], sizes = [8, 32], strides = [1, 1]} : vector<8x96xf32> to vector<8x32xf32>
    %185 = arith.mulf %183, %136 : vector<8x32xf32>
    %186 = arith.mulf %182, %181 : vector<8x32xf32>
    %187 = arith.addf %185, %186 : vector<8x32xf32>
    %188 = math.tanh %187 : vector<8x32xf32>
    %189 = arith.mulf %184, %188 : vector<8x32xf32>
    %c7_i32_60 = arith.constant 7 : i32
    %190 = arith.subi %c7_i32_60, %c3_i32 : i32
    %191 = arith.index_cast %190 : i32 to index
    %c0_61 = arith.constant 0 : index
    %c0_62 = arith.constant 0 : index
    %192 = vector.load %arg1[%191, %c0_61, %c0_62] : memref<8x8x32xbf16, #tpu.memory_space<vmem>>, vector<1x8x32xbf16>
    %193 = vector.shape_cast %192 : vector<1x8x32xbf16> to vector<8x32xbf16>
    %cst_63 = arith.constant dense<0.000000e+00> : vector<8x128xf32>
    %194 = tpu.matmul %193, %1, %cst_63 {dimension_numbers = #tpu.dot_dimension_numbers<[1], [0], [0], [1], [0, 0, 1, 1], [], []>} : vector<8x32xbf16>, vector<32x128xbf16>, vector<8x128xf32> -> vector<8x128xf32>
    %195 = arith.truncf %164 : vector<8x32xf32> to vector<8x32xbf16>
    %cst_64 = arith.constant dense<0.000000e+00> : vector<8x128xf32>
    %196 = tpu.matmul %195, %3, %cst_64 {dimension_numbers = #tpu.dot_dimension_numbers<[1], [0], [0], [1], [0, 0, 1, 1], [], []>} : vector<8x32xbf16>, vector<32x128xbf16>, vector<8x128xf32> -> vector<8x128xf32>
    %197 = arith.addf %194, %196 : vector<8x128xf32>
    %198 = vector.broadcast %5 : vector<1x128xf32> to vector<8x128xf32>
    %199 = arith.addf %197, %198 : vector<8x128xf32>
    %200 = vector.extract_strided_slice %199 {offsets = [0, 0], sizes = [8, 96], strides = [1, 1]} : vector<8x128xf32> to vector<8x96xf32>
    %201 = arith.negf %200 : vector<8x96xf32>
    %202 = math.exp %201 : vector<8x96xf32>
    %cst_65 = arith.constant 1.000000e+00 : f32
    %203 = vector.broadcast %cst_65 : f32 to vector<8x96xf32>
    %204 = arith.addf %203, %202 : vector<8x96xf32>
    %205 = arith.divf %203, %204 : vector<8x96xf32>
    %206 = vector.extract_strided_slice %199 {offsets = [0, 96], sizes = [8, 32], strides = [1, 1]} : vector<8x128xf32> to vector<8x32xf32>
    %207 = math.tanh %206 : vector<8x32xf32>
    %208 = vector.extract_strided_slice %205 {offsets = [0, 0], sizes = [8, 32], strides = [1, 1]} : vector<8x96xf32> to vector<8x32xf32>
    %209 = vector.extract_strided_slice %205 {offsets = [0, 32], sizes = [8, 32], strides = [1, 1]} : vector<8x96xf32> to vector<8x32xf32>
    %210 = vector.extract_strided_slice %205 {offsets = [0, 64], sizes = [8, 32], strides = [1, 1]} : vector<8x96xf32> to vector<8x32xf32>
    %211 = arith.mulf %209, %162 : vector<8x32xf32>
    %212 = arith.mulf %208, %207 : vector<8x32xf32>
    %213 = arith.addf %211, %212 : vector<8x32xf32>
    %214 = math.tanh %213 : vector<8x32xf32>
    %215 = arith.mulf %210, %214 : vector<8x32xf32>
    %c4_i32 = arith.constant 4 : i32
    %216 = arith.index_cast %c4_i32 : i32 to index
    %c0_66 = arith.constant 0 : index
    %c0_67 = arith.constant 0 : index
    %217 = vector.load %arg1[%216, %c0_66, %c0_67] : memref<8x8x32xbf16, #tpu.memory_space<vmem>>, vector<1x8x32xbf16>
    %218 = vector.shape_cast %217 : vector<1x8x32xbf16> to vector<8x32xbf16>
    %cst_68 = arith.constant dense<0.000000e+00> : vector<8x128xf32>
    %219 = tpu.matmul %218, %0, %cst_68 {dimension_numbers = #tpu.dot_dimension_numbers<[1], [0], [0], [1], [0, 0, 1, 1], [], []>} : vector<8x32xbf16>, vector<32x128xbf16>, vector<8x128xf32> -> vector<8x128xf32>
    %220 = arith.truncf %189 : vector<8x32xf32> to vector<8x32xbf16>
    %cst_69 = arith.constant dense<0.000000e+00> : vector<8x128xf32>
    %221 = tpu.matmul %220, %2, %cst_69 {dimension_numbers = #tpu.dot_dimension_numbers<[1], [0], [0], [1], [0, 0, 1, 1], [], []>} : vector<8x32xbf16>, vector<32x128xbf16>, vector<8x128xf32> -> vector<8x128xf32>
    %222 = arith.addf %219, %221 : vector<8x128xf32>
    %223 = vector.broadcast %4 : vector<1x128xf32> to vector<8x128xf32>
    %224 = arith.addf %222, %223 : vector<8x128xf32>
    %225 = vector.extract_strided_slice %224 {offsets = [0, 0], sizes = [8, 96], strides = [1, 1]} : vector<8x128xf32> to vector<8x96xf32>
    %226 = arith.negf %225 : vector<8x96xf32>
    %227 = math.exp %226 : vector<8x96xf32>
    %cst_70 = arith.constant 1.000000e+00 : f32
    %228 = vector.broadcast %cst_70 : f32 to vector<8x96xf32>
    %229 = arith.addf %228, %227 : vector<8x96xf32>
    %230 = arith.divf %228, %229 : vector<8x96xf32>
    %231 = vector.extract_strided_slice %224 {offsets = [0, 96], sizes = [8, 32], strides = [1, 1]} : vector<8x128xf32> to vector<8x32xf32>
    %232 = math.tanh %231 : vector<8x32xf32>
    %233 = vector.extract_strided_slice %230 {offsets = [0, 0], sizes = [8, 32], strides = [1, 1]} : vector<8x96xf32> to vector<8x32xf32>
    %234 = vector.extract_strided_slice %230 {offsets = [0, 32], sizes = [8, 32], strides = [1, 1]} : vector<8x96xf32> to vector<8x32xf32>
    %235 = vector.extract_strided_slice %230 {offsets = [0, 64], sizes = [8, 32], strides = [1, 1]} : vector<8x96xf32> to vector<8x32xf32>
    %236 = arith.mulf %234, %187 : vector<8x32xf32>
    %237 = arith.mulf %233, %232 : vector<8x32xf32>
    %238 = arith.addf %236, %237 : vector<8x32xf32>
    %239 = math.tanh %238 : vector<8x32xf32>
    %240 = arith.mulf %235, %239 : vector<8x32xf32>
    %c7_i32_71 = arith.constant 7 : i32
    %241 = arith.subi %c7_i32_71, %c4_i32 : i32
    %242 = arith.index_cast %241 : i32 to index
    %c0_72 = arith.constant 0 : index
    %c0_73 = arith.constant 0 : index
    %243 = vector.load %arg1[%242, %c0_72, %c0_73] : memref<8x8x32xbf16, #tpu.memory_space<vmem>>, vector<1x8x32xbf16>
    %244 = vector.shape_cast %243 : vector<1x8x32xbf16> to vector<8x32xbf16>
    %cst_74 = arith.constant dense<0.000000e+00> : vector<8x128xf32>
    %245 = tpu.matmul %244, %1, %cst_74 {dimension_numbers = #tpu.dot_dimension_numbers<[1], [0], [0], [1], [0, 0, 1, 1], [], []>} : vector<8x32xbf16>, vector<32x128xbf16>, vector<8x128xf32> -> vector<8x128xf32>
    %246 = arith.truncf %215 : vector<8x32xf32> to vector<8x32xbf16>
    %cst_75 = arith.constant dense<0.000000e+00> : vector<8x128xf32>
    %247 = tpu.matmul %246, %3, %cst_75 {dimension_numbers = #tpu.dot_dimension_numbers<[1], [0], [0], [1], [0, 0, 1, 1], [], []>} : vector<8x32xbf16>, vector<32x128xbf16>, vector<8x128xf32> -> vector<8x128xf32>
    %248 = arith.addf %245, %247 : vector<8x128xf32>
    %249 = vector.broadcast %5 : vector<1x128xf32> to vector<8x128xf32>
    %250 = arith.addf %248, %249 : vector<8x128xf32>
    %251 = vector.extract_strided_slice %250 {offsets = [0, 0], sizes = [8, 96], strides = [1, 1]} : vector<8x128xf32> to vector<8x96xf32>
    %252 = arith.negf %251 : vector<8x96xf32>
    %253 = math.exp %252 : vector<8x96xf32>
    %cst_76 = arith.constant 1.000000e+00 : f32
    %254 = vector.broadcast %cst_76 : f32 to vector<8x96xf32>
    %255 = arith.addf %254, %253 : vector<8x96xf32>
    %256 = arith.divf %254, %255 : vector<8x96xf32>
    %257 = vector.extract_strided_slice %250 {offsets = [0, 96], sizes = [8, 32], strides = [1, 1]} : vector<8x128xf32> to vector<8x32xf32>
    %258 = math.tanh %257 : vector<8x32xf32>
    %259 = vector.extract_strided_slice %256 {offsets = [0, 0], sizes = [8, 32], strides = [1, 1]} : vector<8x96xf32> to vector<8x32xf32>
    %260 = vector.extract_strided_slice %256 {offsets = [0, 32], sizes = [8, 32], strides = [1, 1]} : vector<8x96xf32> to vector<8x32xf32>
    %261 = vector.extract_strided_slice %256 {offsets = [0, 64], sizes = [8, 32], strides = [1, 1]} : vector<8x96xf32> to vector<8x32xf32>
    %262 = arith.mulf %260, %213 : vector<8x32xf32>
    %263 = arith.mulf %259, %258 : vector<8x32xf32>
    %264 = arith.addf %262, %263 : vector<8x32xf32>
    %265 = math.tanh %264 : vector<8x32xf32>
    %266 = arith.mulf %261, %265 : vector<8x32xf32>
    %c5_i32 = arith.constant 5 : i32
    %267 = arith.index_cast %c5_i32 : i32 to index
    %c0_77 = arith.constant 0 : index
    %c0_78 = arith.constant 0 : index
    %268 = vector.load %arg1[%267, %c0_77, %c0_78] : memref<8x8x32xbf16, #tpu.memory_space<vmem>>, vector<1x8x32xbf16>
    %269 = vector.shape_cast %268 : vector<1x8x32xbf16> to vector<8x32xbf16>
    %cst_79 = arith.constant dense<0.000000e+00> : vector<8x128xf32>
    %270 = tpu.matmul %269, %0, %cst_79 {dimension_numbers = #tpu.dot_dimension_numbers<[1], [0], [0], [1], [0, 0, 1, 1], [], []>} : vector<8x32xbf16>, vector<32x128xbf16>, vector<8x128xf32> -> vector<8x128xf32>
    %271 = arith.truncf %240 : vector<8x32xf32> to vector<8x32xbf16>
    %cst_80 = arith.constant dense<0.000000e+00> : vector<8x128xf32>
    %272 = tpu.matmul %271, %2, %cst_80 {dimension_numbers = #tpu.dot_dimension_numbers<[1], [0], [0], [1], [0, 0, 1, 1], [], []>} : vector<8x32xbf16>, vector<32x128xbf16>, vector<8x128xf32> -> vector<8x128xf32>
    %273 = arith.addf %270, %272 : vector<8x128xf32>
    %274 = vector.broadcast %4 : vector<1x128xf32> to vector<8x128xf32>
    %275 = arith.addf %273, %274 : vector<8x128xf32>
    %276 = vector.extract_strided_slice %275 {offsets = [0, 0], sizes = [8, 96], strides = [1, 1]} : vector<8x128xf32> to vector<8x96xf32>
    %277 = arith.negf %276 : vector<8x96xf32>
    %278 = math.exp %277 : vector<8x96xf32>
    %cst_81 = arith.constant 1.000000e+00 : f32
    %279 = vector.broadcast %cst_81 : f32 to vector<8x96xf32>
    %280 = arith.addf %279, %278 : vector<8x96xf32>
    %281 = arith.divf %279, %280 : vector<8x96xf32>
    %282 = vector.extract_strided_slice %275 {offsets = [0, 96], sizes = [8, 32], strides = [1, 1]} : vector<8x128xf32> to vector<8x32xf32>
    %283 = math.tanh %282 : vector<8x32xf32>
    %284 = vector.extract_strided_slice %281 {offsets = [0, 0], sizes = [8, 32], strides = [1, 1]} : vector<8x96xf32> to vector<8x32xf32>
    %285 = vector.extract_strided_slice %281 {offsets = [0, 32], sizes = [8, 32], strides = [1, 1]} : vector<8x96xf32> to vector<8x32xf32>
    %286 = vector.extract_strided_slice %281 {offsets = [0, 64], sizes = [8, 32], strides = [1, 1]} : vector<8x96xf32> to vector<8x32xf32>
    %287 = arith.mulf %285, %238 : vector<8x32xf32>
    %288 = arith.mulf %284, %283 : vector<8x32xf32>
    %289 = arith.addf %287, %288 : vector<8x32xf32>
    %290 = math.tanh %289 : vector<8x32xf32>
    %291 = arith.mulf %286, %290 : vector<8x32xf32>
    %c7_i32_82 = arith.constant 7 : i32
    %292 = arith.subi %c7_i32_82, %c5_i32 : i32
    %293 = arith.index_cast %292 : i32 to index
    %c0_83 = arith.constant 0 : index
    %c0_84 = arith.constant 0 : index
    %294 = vector.load %arg1[%293, %c0_83, %c0_84] : memref<8x8x32xbf16, #tpu.memory_space<vmem>>, vector<1x8x32xbf16>
    %295 = vector.shape_cast %294 : vector<1x8x32xbf16> to vector<8x32xbf16>
    %cst_85 = arith.constant dense<0.000000e+00> : vector<8x128xf32>
    %296 = tpu.matmul %295, %1, %cst_85 {dimension_numbers = #tpu.dot_dimension_numbers<[1], [0], [0], [1], [0, 0, 1, 1], [], []>} : vector<8x32xbf16>, vector<32x128xbf16>, vector<8x128xf32> -> vector<8x128xf32>
    %297 = arith.truncf %266 : vector<8x32xf32> to vector<8x32xbf16>
    %cst_86 = arith.constant dense<0.000000e+00> : vector<8x128xf32>
    %298 = tpu.matmul %297, %3, %cst_86 {dimension_numbers = #tpu.dot_dimension_numbers<[1], [0], [0], [1], [0, 0, 1, 1], [], []>} : vector<8x32xbf16>, vector<32x128xbf16>, vector<8x128xf32> -> vector<8x128xf32>
    %299 = arith.addf %296, %298 : vector<8x128xf32>
    %300 = vector.broadcast %5 : vector<1x128xf32> to vector<8x128xf32>
    %301 = arith.addf %299, %300 : vector<8x128xf32>
    %302 = vector.extract_strided_slice %301 {offsets = [0, 0], sizes = [8, 96], strides = [1, 1]} : vector<8x128xf32> to vector<8x96xf32>
    %303 = arith.negf %302 : vector<8x96xf32>
    %304 = math.exp %303 : vector<8x96xf32>
    %cst_87 = arith.constant 1.000000e+00 : f32
    %305 = vector.broadcast %cst_87 : f32 to vector<8x96xf32>
    %306 = arith.addf %305, %304 : vector<8x96xf32>
    %307 = arith.divf %305, %306 : vector<8x96xf32>
    %308 = vector.extract_strided_slice %301 {offsets = [0, 96], sizes = [8, 32], strides = [1, 1]} : vector<8x128xf32> to vector<8x32xf32>
    %309 = math.tanh %308 : vector<8x32xf32>
    %310 = vector.extract_strided_slice %307 {offsets = [0, 0], sizes = [8, 32], strides = [1, 1]} : vector<8x96xf32> to vector<8x32xf32>
    %311 = vector.extract_strided_slice %307 {offsets = [0, 32], sizes = [8, 32], strides = [1, 1]} : vector<8x96xf32> to vector<8x32xf32>
    %312 = vector.extract_strided_slice %307 {offsets = [0, 64], sizes = [8, 32], strides = [1, 1]} : vector<8x96xf32> to vector<8x32xf32>
    %313 = arith.mulf %311, %264 : vector<8x32xf32>
    %314 = arith.mulf %310, %309 : vector<8x32xf32>
    %315 = arith.addf %313, %314 : vector<8x32xf32>
    %316 = math.tanh %315 : vector<8x32xf32>
    %317 = arith.mulf %312, %316 : vector<8x32xf32>
    %c6_i32 = arith.constant 6 : i32
    %318 = arith.index_cast %c6_i32 : i32 to index
    %c0_88 = arith.constant 0 : index
    %c0_89 = arith.constant 0 : index
    %319 = vector.load %arg1[%318, %c0_88, %c0_89] : memref<8x8x32xbf16, #tpu.memory_space<vmem>>, vector<1x8x32xbf16>
    %320 = vector.shape_cast %319 : vector<1x8x32xbf16> to vector<8x32xbf16>
    %cst_90 = arith.constant dense<0.000000e+00> : vector<8x128xf32>
    %321 = tpu.matmul %320, %0, %cst_90 {dimension_numbers = #tpu.dot_dimension_numbers<[1], [0], [0], [1], [0, 0, 1, 1], [], []>} : vector<8x32xbf16>, vector<32x128xbf16>, vector<8x128xf32> -> vector<8x128xf32>
    %322 = arith.truncf %291 : vector<8x32xf32> to vector<8x32xbf16>
    %cst_91 = arith.constant dense<0.000000e+00> : vector<8x128xf32>
    %323 = tpu.matmul %322, %2, %cst_91 {dimension_numbers = #tpu.dot_dimension_numbers<[1], [0], [0], [1], [0, 0, 1, 1], [], []>} : vector<8x32xbf16>, vector<32x128xbf16>, vector<8x128xf32> -> vector<8x128xf32>
    %324 = arith.addf %321, %323 : vector<8x128xf32>
    %325 = vector.broadcast %4 : vector<1x128xf32> to vector<8x128xf32>
    %326 = arith.addf %324, %325 : vector<8x128xf32>
    %327 = vector.extract_strided_slice %326 {offsets = [0, 0], sizes = [8, 96], strides = [1, 1]} : vector<8x128xf32> to vector<8x96xf32>
    %328 = arith.negf %327 : vector<8x96xf32>
    %329 = math.exp %328 : vector<8x96xf32>
    %cst_92 = arith.constant 1.000000e+00 : f32
    %330 = vector.broadcast %cst_92 : f32 to vector<8x96xf32>
    %331 = arith.addf %330, %329 : vector<8x96xf32>
    %332 = arith.divf %330, %331 : vector<8x96xf32>
    %333 = vector.extract_strided_slice %326 {offsets = [0, 96], sizes = [8, 32], strides = [1, 1]} : vector<8x128xf32> to vector<8x32xf32>
    %334 = math.tanh %333 : vector<8x32xf32>
    %335 = vector.extract_strided_slice %332 {offsets = [0, 0], sizes = [8, 32], strides = [1, 1]} : vector<8x96xf32> to vector<8x32xf32>
    %336 = vector.extract_strided_slice %332 {offsets = [0, 32], sizes = [8, 32], strides = [1, 1]} : vector<8x96xf32> to vector<8x32xf32>
    %337 = vector.extract_strided_slice %332 {offsets = [0, 64], sizes = [8, 32], strides = [1, 1]} : vector<8x96xf32> to vector<8x32xf32>
    %338 = arith.mulf %336, %289 : vector<8x32xf32>
    %339 = arith.mulf %335, %334 : vector<8x32xf32>
    %340 = arith.addf %338, %339 : vector<8x32xf32>
    %341 = math.tanh %340 : vector<8x32xf32>
    %342 = arith.mulf %337, %341 : vector<8x32xf32>
    %c7_i32_93 = arith.constant 7 : i32
    %343 = arith.subi %c7_i32_93, %c6_i32 : i32
    %344 = arith.index_cast %343 : i32 to index
    %c0_94 = arith.constant 0 : index
    %c0_95 = arith.constant 0 : index
    %345 = vector.load %arg1[%344, %c0_94, %c0_95] : memref<8x8x32xbf16, #tpu.memory_space<vmem>>, vector<1x8x32xbf16>
    %346 = vector.shape_cast %345 : vector<1x8x32xbf16> to vector<8x32xbf16>
    %cst_96 = arith.constant dense<0.000000e+00> : vector<8x128xf32>
    %347 = tpu.matmul %346, %1, %cst_96 {dimension_numbers = #tpu.dot_dimension_numbers<[1], [0], [0], [1], [0, 0, 1, 1], [], []>} : vector<8x32xbf16>, vector<32x128xbf16>, vector<8x128xf32> -> vector<8x128xf32>
    %348 = arith.truncf %317 : vector<8x32xf32> to vector<8x32xbf16>
    %cst_97 = arith.constant dense<0.000000e+00> : vector<8x128xf32>
    %349 = tpu.matmul %348, %3, %cst_97 {dimension_numbers = #tpu.dot_dimension_numbers<[1], [0], [0], [1], [0, 0, 1, 1], [], []>} : vector<8x32xbf16>, vector<32x128xbf16>, vector<8x128xf32> -> vector<8x128xf32>
    %350 = arith.addf %347, %349 : vector<8x128xf32>
    %351 = vector.broadcast %5 : vector<1x128xf32> to vector<8x128xf32>
    %352 = arith.addf %350, %351 : vector<8x128xf32>
    %353 = vector.extract_strided_slice %352 {offsets = [0, 0], sizes = [8, 96], strides = [1, 1]} : vector<8x128xf32> to vector<8x96xf32>
    %354 = arith.negf %353 : vector<8x96xf32>
    %355 = math.exp %354 : vector<8x96xf32>
    %cst_98 = arith.constant 1.000000e+00 : f32
    %356 = vector.broadcast %cst_98 : f32 to vector<8x96xf32>
    %357 = arith.addf %356, %355 : vector<8x96xf32>
    %358 = arith.divf %356, %357 : vector<8x96xf32>
    %359 = vector.extract_strided_slice %352 {offsets = [0, 96], sizes = [8, 32], strides = [1, 1]} : vector<8x128xf32> to vector<8x32xf32>
    %360 = math.tanh %359 : vector<8x32xf32>
    %361 = vector.extract_strided_slice %358 {offsets = [0, 0], sizes = [8, 32], strides = [1, 1]} : vector<8x96xf32> to vector<8x32xf32>
    %362 = vector.extract_strided_slice %358 {offsets = [0, 32], sizes = [8, 32], strides = [1, 1]} : vector<8x96xf32> to vector<8x32xf32>
    %363 = vector.extract_strided_slice %358 {offsets = [0, 64], sizes = [8, 32], strides = [1, 1]} : vector<8x96xf32> to vector<8x32xf32>
    %364 = arith.mulf %362, %315 : vector<8x32xf32>
    %365 = arith.mulf %361, %360 : vector<8x32xf32>
    %366 = arith.addf %364, %365 : vector<8x32xf32>
    %367 = math.tanh %366 : vector<8x32xf32>
    %368 = arith.mulf %363, %367 : vector<8x32xf32>
    %c7_i32_99 = arith.constant 7 : i32
    %369 = arith.index_cast %c7_i32_99 : i32 to index
    %c0_100 = arith.constant 0 : index
    %c0_101 = arith.constant 0 : index
    %370 = vector.load %arg1[%369, %c0_100, %c0_101] : memref<8x8x32xbf16, #tpu.memory_space<vmem>>, vector<1x8x32xbf16>
    %371 = vector.shape_cast %370 : vector<1x8x32xbf16> to vector<8x32xbf16>
    %cst_102 = arith.constant dense<0.000000e+00> : vector<8x128xf32>
    %372 = tpu.matmul %371, %0, %cst_102 {dimension_numbers = #tpu.dot_dimension_numbers<[1], [0], [0], [1], [0, 0, 1, 1], [], []>} : vector<8x32xbf16>, vector<32x128xbf16>, vector<8x128xf32> -> vector<8x128xf32>
    %373 = arith.truncf %342 : vector<8x32xf32> to vector<8x32xbf16>
    %cst_103 = arith.constant dense<0.000000e+00> : vector<8x128xf32>
    %374 = tpu.matmul %373, %2, %cst_103 {dimension_numbers = #tpu.dot_dimension_numbers<[1], [0], [0], [1], [0, 0, 1, 1], [], []>} : vector<8x32xbf16>, vector<32x128xbf16>, vector<8x128xf32> -> vector<8x128xf32>
    %375 = arith.addf %372, %374 : vector<8x128xf32>
    %376 = vector.broadcast %4 : vector<1x128xf32> to vector<8x128xf32>
    %377 = arith.addf %375, %376 : vector<8x128xf32>
    %378 = vector.extract_strided_slice %377 {offsets = [0, 0], sizes = [8, 96], strides = [1, 1]} : vector<8x128xf32> to vector<8x96xf32>
    %379 = arith.negf %378 : vector<8x96xf32>
    %380 = math.exp %379 : vector<8x96xf32>
    %cst_104 = arith.constant 1.000000e+00 : f32
    %381 = vector.broadcast %cst_104 : f32 to vector<8x96xf32>
    %382 = arith.addf %381, %380 : vector<8x96xf32>
    %383 = arith.divf %381, %382 : vector<8x96xf32>
    %384 = vector.extract_strided_slice %377 {offsets = [0, 96], sizes = [8, 32], strides = [1, 1]} : vector<8x128xf32> to vector<8x32xf32>
    %385 = math.tanh %384 : vector<8x32xf32>
    %386 = vector.extract_strided_slice %383 {offsets = [0, 0], sizes = [8, 32], strides = [1, 1]} : vector<8x96xf32> to vector<8x32xf32>
    %387 = vector.extract_strided_slice %383 {offsets = [0, 32], sizes = [8, 32], strides = [1, 1]} : vector<8x96xf32> to vector<8x32xf32>
    %388 = vector.extract_strided_slice %383 {offsets = [0, 64], sizes = [8, 32], strides = [1, 1]} : vector<8x96xf32> to vector<8x32xf32>
    %389 = arith.mulf %387, %340 : vector<8x32xf32>
    %390 = arith.mulf %386, %385 : vector<8x32xf32>
    %391 = arith.addf %389, %390 : vector<8x32xf32>
    %392 = math.tanh %391 : vector<8x32xf32>
    %393 = arith.mulf %388, %392 : vector<8x32xf32>
    %c7_i32_105 = arith.constant 7 : i32
    %394 = arith.subi %c7_i32_105, %c7_i32_99 : i32
    %395 = arith.index_cast %394 : i32 to index
    %c0_106 = arith.constant 0 : index
    %c0_107 = arith.constant 0 : index
    %396 = vector.load %arg1[%395, %c0_106, %c0_107] : memref<8x8x32xbf16, #tpu.memory_space<vmem>>, vector<1x8x32xbf16>
    %397 = vector.shape_cast %396 : vector<1x8x32xbf16> to vector<8x32xbf16>
    %cst_108 = arith.constant dense<0.000000e+00> : vector<8x128xf32>
    %398 = tpu.matmul %397, %1, %cst_108 {dimension_numbers = #tpu.dot_dimension_numbers<[1], [0], [0], [1], [0, 0, 1, 1], [], []>} : vector<8x32xbf16>, vector<32x128xbf16>, vector<8x128xf32> -> vector<8x128xf32>
    %399 = arith.truncf %368 : vector<8x32xf32> to vector<8x32xbf16>
    %cst_109 = arith.constant dense<0.000000e+00> : vector<8x128xf32>
    %400 = tpu.matmul %399, %3, %cst_109 {dimension_numbers = #tpu.dot_dimension_numbers<[1], [0], [0], [1], [0, 0, 1, 1], [], []>} : vector<8x32xbf16>, vector<32x128xbf16>, vector<8x128xf32> -> vector<8x128xf32>
    %401 = arith.addf %398, %400 : vector<8x128xf32>
    %402 = vector.broadcast %5 : vector<1x128xf32> to vector<8x128xf32>
    %403 = arith.addf %401, %402 : vector<8x128xf32>
    %404 = vector.extract_strided_slice %403 {offsets = [0, 0], sizes = [8, 96], strides = [1, 1]} : vector<8x128xf32> to vector<8x96xf32>
    %405 = arith.negf %404 : vector<8x96xf32>
    %406 = math.exp %405 : vector<8x96xf32>
    %cst_110 = arith.constant 1.000000e+00 : f32
    %407 = vector.broadcast %cst_110 : f32 to vector<8x96xf32>
    %408 = arith.addf %407, %406 : vector<8x96xf32>
    %409 = arith.divf %407, %408 : vector<8x96xf32>
    %410 = vector.extract_strided_slice %403 {offsets = [0, 96], sizes = [8, 32], strides = [1, 1]} : vector<8x128xf32> to vector<8x32xf32>
    %411 = math.tanh %410 : vector<8x32xf32>
    %412 = vector.extract_strided_slice %409 {offsets = [0, 0], sizes = [8, 32], strides = [1, 1]} : vector<8x96xf32> to vector<8x32xf32>
    %413 = vector.extract_strided_slice %409 {offsets = [0, 32], sizes = [8, 32], strides = [1, 1]} : vector<8x96xf32> to vector<8x32xf32>
    %414 = vector.extract_strided_slice %409 {offsets = [0, 64], sizes = [8, 32], strides = [1, 1]} : vector<8x96xf32> to vector<8x32xf32>
    %415 = arith.mulf %413, %366 : vector<8x32xf32>
    %416 = arith.mulf %412, %411 : vector<8x32xf32>
    %417 = arith.addf %415, %416 : vector<8x32xf32>
    %418 = math.tanh %417 : vector<8x32xf32>
    %419 = arith.mulf %414, %418 : vector<8x32xf32>
    %c7_i32_111 = arith.constant 7 : i32
    %c0_112 = arith.constant 0 : index
    %c0_113 = arith.constant 0 : index
    %c0_114 = arith.constant 0 : index
    %420 = vector.load %arg16[%c0_112, %c0_113, %c0_114] : memref<2x8x32xf32, #tpu.memory_space<vmem>>, vector<1x8x32xf32>
    %421 = vector.shape_cast %420 : vector<1x8x32xf32> to vector<8x32xf32>
    %422 = vector.shape_cast %393 : vector<8x32xf32> to vector<1x8x32xf32>
    tpu.vector_store %arg16[%c0_112, %c0_113, %c0_114], %422 {strides = array<i32>} : memref<2x8x32xf32, #tpu.memory_space<vmem>>, vector<1x8x32xf32>,
    %c1_115 = arith.constant 1 : index
    %c0_116 = arith.constant 0 : index
    %c0_117 = arith.constant 0 : index
    %423 = vector.load %arg16[%c1_115, %c0_116, %c0_117] : memref<2x8x32xf32, #tpu.memory_space<vmem>>, vector<1x8x32xf32>
    %424 = vector.shape_cast %423 : vector<1x8x32xf32> to vector<8x32xf32>
    %425 = vector.shape_cast %419 : vector<8x32xf32> to vector<1x8x32xf32>
    tpu.vector_store %arg16[%c1_115, %c0_116, %c0_117], %425 {strides = array<i32>} : memref<2x8x32xf32, #tpu.memory_space<vmem>>, vector<1x8x32xf32>,
    %c0_118 = arith.constant 0 : index
    %c0_119 = arith.constant 0 : index
    %c0_120 = arith.constant 0 : index
    %426 = vector.load %arg17[%c0_118, %c0_119, %c0_120] : memref<2x8x32xf32, #tpu.memory_space<vmem>>, vector<1x8x32xf32>
    %427 = vector.shape_cast %426 : vector<1x8x32xf32> to vector<8x32xf32>
    %428 = vector.shape_cast %391 : vector<8x32xf32> to vector<1x8x32xf32>
    tpu.vector_store %arg17[%c0_118, %c0_119, %c0_120], %428 {strides = array<i32>} : memref<2x8x32xf32, #tpu.memory_space<vmem>>, vector<1x8x32xf32>,
    %c1_121 = arith.constant 1 : index
    %c0_122 = arith.constant 0 : index
    %c0_123 = arith.constant 0 : index
    %429 = vector.load %arg17[%c1_121, %c0_122, %c0_123] : memref<2x8x32xf32, #tpu.memory_space<vmem>>, vector<1x8x32xf32>
    %430 = vector.shape_cast %429 : vector<1x8x32xf32> to vector<8x32xf32>
    %431 = vector.shape_cast %417 : vector<8x32xf32> to vector<1x8x32xf32>
    tpu.vector_store %arg17[%c1_121, %c0_122, %c0_123], %431 {strides = array<i32>} : memref<2x8x32xf32, #tpu.memory_space<vmem>>, vector<1x8x32xf32>,
    %c0_124 = arith.constant 0 : index
    %c0_125 = arith.constant 0 : index
    %432 = vector.load %arg18[%c0_124, %c0_125] : memref<8x32xf32, #tpu.memory_space<vmem>>, vector<8x32xf32>
    %433 = arith.truncf %393 : vector<8x32xf32> to vector<8x32xbf16>
    %c0_126 = arith.constant 0 : index
    %c0_127 = arith.constant 0 : index
    %434 = vector.load %arg10[%c0_126, %c0_127] : memref<32x128xbf16, #tpu.memory_space<vmem>>, vector<32x128xbf16>
    %cst_128 = arith.constant dense<0.000000e+00> : vector<8x128xf32>
    %435 = tpu.matmul %433, %434, %cst_128 {dimension_numbers = #tpu.dot_dimension_numbers<[1], [0], [0], [1], [0, 0, 1, 1], [], []>} : vector<8x32xbf16>, vector<32x128xbf16>, vector<8x128xf32> -> vector<8x128xf32>
    %436 = arith.truncf %432 : vector<8x32xf32> to vector<8x32xbf16>
    %c0_129 = arith.constant 0 : index
    %c0_130 = arith.constant 0 : index
    %437 = vector.load %arg11[%c0_129, %c0_130] : memref<32x128xbf16, #tpu.memory_space<vmem>>, vector<32x128xbf16>
    %cst_131 = arith.constant dense<0.000000e+00> : vector<8x128xf32>
    %438 = tpu.matmul %436, %437, %cst_131 {dimension_numbers = #tpu.dot_dimension_numbers<[1], [0], [0], [1], [0, 0, 1, 1], [], []>} : vector<8x32xbf16>, vector<32x128xbf16>, vector<8x128xf32> -> vector<8x128xf32>
    %439 = arith.addf %435, %438 : vector<8x128xf32>
    %c0_132 = arith.constant 0 : index
    %c0_133 = arith.constant 0 : index
    %440 = vector.load %arg12[%c0_132, %c0_133] : memref<1x128xf32, #tpu.memory_space<vmem>>, vector<1x128xf32>
    %441 = vector.broadcast %440 : vector<1x128xf32> to vector<8x128xf32>
    %442 = arith.addf %439, %441 : vector<8x128xf32>
    %cst_134 = arith.constant 0.000000e+00 : f32
    %443 = vector.broadcast %cst_134 : f32 to vector<8x128xf32>
    %444 = arith.maximumf %442, %443 : vector<8x128xf32>
    %445 = arith.truncf %444 : vector<8x128xf32> to vector<8x128xbf16>
    %c0_135 = arith.constant 0 : index
    %c0_136 = arith.constant 0 : index
    %446 = vector.load %arg13[%c0_135, %c0_136] : memref<128x1xbf16, #tpu.memory_space<vmem>>, vector<128x1xbf16>
    %cst_137 = arith.constant dense<0.000000e+00> : vector<8x1xf32>
    %447 = tpu.matmul %445, %446, %cst_137 {dimension_numbers = #tpu.dot_dimension_numbers<[1], [0], [0], [1], [0, 0, 1, 1], [], []>} : vector<8x128xbf16>, vector<128x1xbf16>, vector<8x1xf32> -> vector<8x1xf32>
    %c0_138 = arith.constant 0 : index
    %c0_139 = arith.constant 0 : index
    %448 = vector.load %arg14[%c0_138, %c0_139] : memref<1x1xf32, #tpu.memory_space<vmem>>, vector<1x1xf32>
    %449 = vector.broadcast %448 : vector<1x1xf32> to vector<8x1xf32>
    %450 = arith.addf %447, %449 : vector<8x1xf32>
    %451 = arith.negf %450 : vector<8x1xf32>
    %452 = math.exp %451 : vector<8x1xf32>
    %cst_140 = arith.constant 1.000000e+00 : f32
    %453 = vector.broadcast %cst_140 : f32 to vector<8x1xf32>
    %454 = arith.addf %453, %452 : vector<8x1xf32>
    %455 = arith.divf %453, %454 : vector<8x1xf32>
    %c0_141 = arith.constant 0 : index
    %c0_142 = arith.constant 0 : index
    %456 = vector.load %arg15[%c0_141, %c0_142] : memref<8x1xf32, #tpu.memory_space<vmem>>, vector<8x1xf32>
    tpu.vector_store %arg15[%c0_141, %c0_142], %455 {strides = array<i32>} : memref<8x1xf32, #tpu.memory_space<vmem>>, vector<8x1xf32>,
    return
  }
  func.func @transform_0(%arg0: i32) -> (i32, i32, i32) {
    %c0_i32 = arith.constant 0 : i32
    %c0_i32_0 = arith.constant 0 : i32
    %c0_i32_1 = arith.constant 0 : i32
    return %c0_i32, %arg0, %c0_i32_0 : i32, i32, i32
  }
  func.func @transform_1(%arg0: i32) -> (i32, i32, i32) {
    %c0_i32 = arith.constant 0 : i32
    %c0_i32_0 = arith.constant 0 : i32
    %c0_i32_1 = arith.constant 0 : i32
    return %c0_i32, %arg0, %c0_i32_0 : i32, i32, i32
  }
  func.func @transform_2(%arg0: i32) -> (i32, i32, i32) {
    %c0_i32 = arith.constant 0 : i32
    %c0_i32_0 = arith.constant 0 : i32
    %c0_i32_1 = arith.constant 0 : i32
    return %c0_i32, %arg0, %c0_i32_0 : i32, i32, i32
  }
  func.func @transform_3(%arg0: i32) -> (i32, i32) {
    %c0_i32 = arith.constant 0 : i32
    %c0_i32_0 = arith.constant 0 : i32
    %c0_i32_1 = arith.constant 0 : i32
    return %c0_i32, %c0_i32_0 : i32, i32
  }
  func.func @transform_4(%arg0: i32) -> (i32, i32) {
    %c0_i32 = arith.constant 0 : i32
    %c0_i32_0 = arith.constant 0 : i32
    %c0_i32_1 = arith.constant 0 : i32
    return %c0_i32, %c0_i32_0 : i32, i32
  }
  func.func @transform_5(%arg0: i32) -> (i32, i32) {
    %c0_i32 = arith.constant 0 : i32
    %c0_i32_0 = arith.constant 0 : i32
    %c0_i32_1 = arith.constant 0 : i32
    return %c0_i32, %c0_i32_0 : i32, i32
  }
  func.func @transform_6(%arg0: i32) -> (i32, i32) {
    %c0_i32 = arith.constant 0 : i32
    %c0_i32_0 = arith.constant 0 : i32
    %c0_i32_1 = arith.constant 0 : i32
    return %c0_i32, %c0_i32_0 : i32, i32
  }
  func.func @transform_7(%arg0: i32) -> (i32, i32) {
    %c0_i32 = arith.constant 0 : i32
    %c0_i32_0 = arith.constant 0 : i32
    %c0_i32_1 = arith.constant 0 : i32
    return %c0_i32, %c0_i32_0 : i32, i32
  }
  func.func @transform_8(%arg0: i32) -> (i32, i32) {
    %c0_i32 = arith.constant 0 : i32
    %c0_i32_0 = arith.constant 0 : i32
    %c0_i32_1 = arith.constant 0 : i32
    return %c0_i32, %c0_i32_0 : i32, i32
  }
  func.func @transform_9(%arg0: i32) -> (i32, i32) {
    %c0_i32 = arith.constant 0 : i32
    %c0_i32_0 = arith.constant 0 : i32
    %c0_i32_1 = arith.constant 0 : i32
    return %c0_i32, %c0_i32_0 : i32, i32
  }
  func.func @transform_10(%arg0: i32) -> (i32, i32) {
    %c0_i32 = arith.constant 0 : i32
    %c0_i32_0 = arith.constant 0 : i32
    %c0_i32_1 = arith.constant 0 : i32
    return %c0_i32, %c0_i32_0 : i32, i32
  }
  func.func @transform_11(%arg0: i32) -> (i32, i32) {
    %c0_i32 = arith.constant 0 : i32
    %c0_i32_0 = arith.constant 0 : i32
    %c0_i32_1 = arith.constant 0 : i32
    return %c0_i32, %c0_i32_0 : i32, i32
  }
  func.func @transform_12(%arg0: i32) -> (i32, i32) {
    %c0_i32 = arith.constant 0 : i32
    %c0_i32_0 = arith.constant 0 : i32
    %c0_i32_1 = arith.constant 0 : i32
    return %c0_i32, %c0_i32_0 : i32, i32
  }
  func.func @transform_13(%arg0: i32) -> (i32, i32) {
    %c0_i32 = arith.constant 0 : i32
    %c0_i32_0 = arith.constant 0 : i32
    %c0_i32_1 = arith.constant 0 : i32
    return %c0_i32, %c0_i32_0 : i32, i32
  }
  func.func @transform_14(%arg0: i32) -> (i32, i32) {
    %c0_i32 = arith.constant 0 : i32
    %c0_i32_0 = arith.constant 0 : i32
    return %arg0, %c0_i32 : i32, i32
  }
  func.func @transform_15(%arg0: i32) -> (i32, i32, i32) {
    %c0_i32 = arith.constant 0 : i32
    %c0_i32_0 = arith.constant 0 : i32
    %c0_i32_1 = arith.constant 0 : i32
    return %c0_i32, %arg0, %c0_i32_0 : i32, i32, i32
  }
  func.func @transform_16(%arg0: i32) -> (i32, i32, i32) {
    %c0_i32 = arith.constant 0 : i32
    %c0_i32_0 = arith.constant 0 : i32
    %c0_i32_1 = arith.constant 0 : i32
    return %c0_i32, %arg0, %c0_i32_0 : i32, i32, i32
  }
}

</mosaic_0001>

<llo_original>
// kernel: forward.1
$region0: #{forward.1}
  #allocation0 [shape = 'u32[]', space=smem, size = 0x4, offset = 0x4, fixed_abs, tag = 'smem constant byte address 0x4 - core index']
  #allocation1 [shape = 'u32[144,128]{1,0:T(1,128)}', space=vmem, size = 0x12000, scoped, tag = 'internal scratch']
  #allocation2 [shape = 'f32[8,32]{1,0:T(8,128)}', space=vmem, size = 0x1000, scoped, tag = 'scratch operand']
  #allocation3 [shape = 'f32[1,1]{1,0:T(1,128)S(1)}', space=vmem, size = 0x200, scoped, tag = 'scoped memory for forward.1']
  %s0 = inlined_call_operand.vmem [shape: bf16[8,8,32], index: 0, kind: input, shape index: {}]
  %s1 = inlined_call_operand.vmem [shape: f32[2,8,32], index: 1, kind: input, shape index: {}]
  %s2 = inlined_call_operand.vmem [shape: f32[2,8,32], index: 2, kind: input, shape index: {}]
  %s3 = inlined_call_operand.vmem [shape: bf16[32,128], index: 3, kind: input, shape index: {}]
  %s4 = inlined_call_operand.vmem [shape: bf16[32,128], index: 4, kind: input, shape index: {}]
  %s5 = inlined_call_operand.vmem [shape: bf16[32,128], index: 5, kind: input, shape index: {}]
  %s6 = inlined_call_operand.vmem [shape: bf16[32,128], index: 6, kind: input, shape index: {}]
  %s7 = inlined_call_operand.vmem [shape: f32[1,128], index: 7, kind: input, shape index: {}]
  %s8 = inlined_call_operand.vmem [shape: f32[1,128], index: 8, kind: input, shape index: {}]
  %s9 = inlined_call_operand.vmem [shape: bf16[32,128], index: 9, kind: input, shape index: {}]
  %s10 = inlined_call_operand.vmem [shape: bf16[32,128], index: 10, kind: input, shape index: {}]
  %s11 = inlined_call_operand.vmem [shape: f32[1,128], index: 11, kind: input, shape index: {}]
  %s12 = inlined_call_operand.vmem [shape: bf16[128,1], index: 12, kind: input, shape index: {}]
  %s13 = inlined_call_operand.<no memory space> [shape: f32[1,1], index: 13, kind: input, shape index: {}]
  %s14 = inlined_call_operand.vmem [shape: f32[8,1], index: 14, kind: output, shape index: {0}]
  %s15 = inlined_call_operand.vmem [shape: f32[2,8,32], index: 15, kind: output, shape index: {1}]
  %s16 = inlined_call_operand.vmem [shape: f32[2,8,32], index: 16, kind: output, shape index: {2}]
  %17 = xla_tuple %s14, %s15, %s16
  %s18 = sld [smem:[#allocation0]]
  $region82: #{forward.1} parent=0
    _
  %s20 = ssub.s32 1, %s18
  %s21 = scalar_select 0, %s20, %s18
  %v22 = vstv %s13
  %23 = vst [vmem:[#allocation3] sm:$0x1] %v22
  // Predicated region
  $region2: #{forward.1} parent=0 // pred_check
    _
  $region3: #{forward.1} parent=0 // pred_check_branch
    %25 = sbr.rel (0) target = $region5
  $region4: #{forward.1} parent=0 // pred_region
    _
  $region5: #{forward.1} parent=0 // pred_fallthru
    _
  // Predicated region
  $region6: #{forward.1} parent=0 // pred_check
    _
  $region7: #{forward.1} parent=0 // pred_check_branch
    %27 = sbr.rel (0) target = $region9
  $region8: #{forward.1} parent=0 // pred_region
    _
  $region9: #{forward.1} parent=0 // pred_fallthru
    _
  // Predicated region
  $region10: #{forward.1} parent=0 // pred_check
    _
  $region11: #{forward.1} parent=0 // pred_check_branch
    %29 = sbr.rel (0) target = $region13
  $region12: #{forward.1} parent=0 // pred_region
    _
  $region13: #{forward.1} parent=0 // pred_fallthru
    _
  // Predicated region
  $region14: #{forward.1} parent=0 // pred_check
    _
  $region15: #{forward.1} parent=0 // pred_check_branch
    %31 = sbr.rel (0) target = $region17
  $region16: #{forward.1} parent=0 // pred_region
    _
  $region17: #{forward.1} parent=0 // pred_fallthru
    _
  // Predicated region
  $region18: #{forward.1} parent=0 // pred_check
    _
  $region19: #{forward.1} parent=0 // pred_check_branch
    %33 = sbr.rel (0) target = $region21
  $region20: #{forward.1} parent=0 // pred_region
    _
  $region21: #{forward.1} parent=0 // pred_fallthru
    _
  // Predicated region
  $region22: #{forward.1} parent=0 // pred_check
    _
  $region23: #{forward.1} parent=0 // pred_check_branch
    %35 = sbr.rel (0) target = $region25
  $region24: #{forward.1} parent=0 // pred_region
    _
  $region25: #{forward.1} parent=0 // pred_fallthru
    _
  // Predicated region
  $region26: #{forward.1} parent=0 // pred_check
    _
  $region27: #{forward.1} parent=0 // pred_check_branch
    %37 = sbr.rel (0) target = $region29
  $region28: #{forward.1} parent=0 // pred_region
    _
  $region29: #{forward.1} parent=0 // pred_fallthru
    _
  // Predicated region
  $region30: #{forward.1} parent=0 // pred_check
    _
  $region31: #{forward.1} parent=0 // pred_check_branch
    %39 = sbr.rel (0) target = $region33
  $region32: #{forward.1} parent=0 // pred_region
    _
  $region33: #{forward.1} parent=0 // pred_fallthru
    _
  // Predicated region
  $region34: #{forward.1} parent=0 // pred_check
    _
  $region35: #{forward.1} parent=0 // pred_check_branch
    %41 = sbr.rel (0) target = $region37
  $region36: #{forward.1} parent=0 // pred_region
    _
  $region37: #{forward.1} parent=0 // pred_fallthru
    _
  // Predicated region
  $region38: #{forward.1} parent=0 // pred_check
    _
  $region39: #{forward.1} parent=0 // pred_check_branch
    %43 = sbr.rel (0) target = $region41
  $region40: #{forward.1} parent=0 // pred_region
    _
  $region41: #{forward.1} parent=0 // pred_fallthru
    _
  // Predicated region
  $region42: #{forward.1} parent=0 // pred_check
    _
  $region43: #{forward.1} parent=0 // pred_check_branch
    %45 = sbr.rel (0) target = $region45
  $region44: #{forward.1} parent=0 // pred_region
    _
  $region45: #{forward.1} parent=0 // pred_fallthru
    _
  // Predicated region
  $region46: #{forward.1} parent=0 // pred_check
    _
  $region47: #{forward.1} parent=0 // pred_check_branch
    %47 = sbr.rel (0) target = $region49
  $region48: #{forward.1} parent=0 // pred_region
    _
  $region49: #{forward.1} parent=0 // pred_fallthru
    _
  // Predicated region
  $region50: #{forward.1} parent=0 // pred_check
    _
  $region51: #{forward.1} parent=0 // pred_check_branch
    %49 = sbr.rel (0) target = $region53
  $region52: #{forward.1} parent=0 // pred_region
    _
  $region53: #{forward.1} parent=0 // pred_fallthru
    _
  // Predicated region
  $region54: #{forward.1} parent=0 // pred_check
    _
  $region55: #{forward.1} parent=0 // pred_check_branch
    %51 = sbr.rel (0) target = $region57
  $region56: #{forward.1} parent=0 // pred_region
    _
  $region57: #{forward.1} parent=0 // pred_fallthru
    _
  %v53 = vld [vmem:[%s3] sm:$0xf]
  %v54 = vld [vmem:[%s3 + $0x4] sm:$0xf]
  %v55 = vld [vmem:[%s3 + $0x8] sm:$0xf]
  %v56 = vld [vmem:[%s3 + $0xc] sm:$0xf]
  %v57 = vld [vmem:[%s4] sm:$0xf]
  %v58 = vld [vmem:[%s4 + $0x4] sm:$0xf]
  %v59 = vld [vmem:[%s4 + $0x8] sm:$0xf]
  %v60 = vld [vmem:[%s4 + $0xc] sm:$0xf]
  %v61 = vld [vmem:[%s5] sm:$0xf]
  %v62 = vld [vmem:[%s5 + $0x4] sm:$0xf]
  %v63 = vld [vmem:[%s5 + $0x8] sm:$0xf]
  %v64 = vld [vmem:[%s5 + $0xc] sm:$0xf]
  %v65 = vld [vmem:[%s6] sm:$0xf]
  %v66 = vld [vmem:[%s6 + $0x4] sm:$0xf]
  %v67 = vld [vmem:[%s6 + $0x8] sm:$0xf]
  %v68 = vld [vmem:[%s6 + $0xc] sm:$0xf]
  %v69 = vld [vmem:[%s7] sm:$0x1]
  %v70 = vld [vmem:[%s8] sm:$0x1]
  %v71 = vld [vmem:[%s0] sm:$0xf]
  %v72 = vld [vmem:[%s1] sm:$0xff]
  %v73 = vld [vmem:[%s2] sm:$0xff]
  %v74 = vpack.c.bf16 %v72, %v72
  %v79 = vunpack.c.l.b16 %v61
  %v80 = vunpack.c.l.b16 %v62
  %v81 = vunpack.c.l.b16 %v63
  %v82 = vunpack.c.l.b16 %v64
  %v83 = vpack.c.b16 %v80, %v79
  %v84 = vpack.c.b16 %v82, %v81
  %vm87 = vcmask 261120
  %v89 = vsel %vm87, %v74, 0
  %91 = vmatprep.subr.bf16.mxu0 0
  %92 = vmatpush1.bf16.msra.mxu0 0
  %93 = vmatprep.subr.bf16.mxu0 0
  %94 = vmatpush1.bf16.msra.mxu0 0
  %95 = vmatprep.subr.bf16.mxu0 0
  %96 = vmatpush1.bf16.msra.mxu0 0
  %97 = vmatprep.subr.bf16.mxu0 0
  %98 = vmatpush1.bf16.msra.mxu0 0
  %99 = vmatprep.subr.bf16.mxu0 0
  %100 = vmatpush1.bf16.msra.mxu0 0
  %101 = vmatprep.subr.bf16.mxu0 0
  %102 = vmatpush1.bf16.msra.mxu0 0
  %103 = vmatprep.subr.bf16.mxu0 0
  %104 = vmatpush1.bf16.msra.mxu0 %v84
  %105 = vmatprep.subr.bf16.mxu0 0
  %106 = vmatpush1.bf16.msra.mxu0 %v83
  %107 = vmatprep.subr.bf16.mxu0 0
  %108 = vmatpush2.bf16.msra.mxu0 0
  %109 = vmatprep.subr.bf16.mxu0 0
  %110 = vmatpush2.bf16.msra.mxu0 0
  %111 = vmatprep.subr.bf16.mxu0 0
  %112 = vmatpush2.bf16.msra.mxu0 0
  %113 = vmatprep.subr.bf16.mxu0 0
  %114 = vmatpush2.bf16.msra.mxu0 0
  %115 = vmatprep.subr.bf16.mxu0 0
  %116 = vmatpush2.bf16.msra.mxu0 0
  %117 = vmatprep.subr.bf16.mxu0 0
  %118 = vmatpush2.bf16.msra.mxu0 0
  %119 = vmatprep.subr.bf16.mxu0 0
  %120 = vmatpush2.bf16.msra.mxu0 0
  %121 = vmatprep.subr.bf16.mxu0 0
  %122 = vmatpush2.bf16.msra.mxu0 0
  %123 = vmatprep.mubr.bf16.mxu0 0
  %124 = vmatmul.mubr.bf16.gmra.mxu0 %v89
  %v125 = vpop.f32.mrf.mxu0
  %v126 = vadd.f32 0.0, %v125
  %v127 = vpop.f32.mrf.mxu0
  %v128 = vpop.f32.mrf.mxu0
  %v129 = vpop.f32.mrf.mxu0
  %130 = vdwg.mxu0
  %v135 = vunpack.c.l.b16 %v53
  %v136 = vunpack.c.l.b16 %v54
  %v137 = vunpack.c.l.b16 %v55
  %v138 = vunpack.c.l.b16 %v56
  %v139 = vpack.c.b16 %v136, %v135
  %v140 = vpack.c.b16 %v138, %v137
  %v144 = vsel %vm87, %v71, 0
  %146 = vmatprep.subr.bf16.mxu0 0
  %147 = vmatpush1.bf16.msra.mxu0 0
  %148 = vmatprep.subr.bf16.mxu0 0
  %149 = vmatpush1.bf16.msra.mxu0 0
  %150 = vmatprep.subr.bf16.mxu0 0
  %151 = vmatpush1.bf16.msra.mxu0 0
  %152 = vmatprep.subr.bf16.mxu0 0
  %153 = vmatpush1.bf16.msra.mxu0 0
  %154 = vmatprep.subr.bf16.mxu0 0
  %155 = vmatpush1.bf16.msra.mxu0 0
  %156 = vmatprep.subr.bf16.mxu0 0
  %157 = vmatpush1.bf16.msra.mxu0 0
  %158 = vmatprep.subr.bf16.mxu0 0
  %159 = vmatpush1.bf16.msra.mxu0 %v140
  %160 = vmatprep.subr.bf16.mxu0 0
  %161 = vmatpush1.bf16.msra.mxu0 %v139
  %162 = vmatprep.subr.bf16.mxu0 0
  %163 = vmatpush2.bf16.msra.mxu0 0
  %164 = vmatprep.subr.bf16.mxu0 0
  %165 = vmatpush2.bf16.msra.mxu0 0
  %166 = vmatprep.subr.bf16.mxu0 0
  %167 = vmatpush2.bf16.msra.mxu0 0
  %168 = vmatprep.subr.bf16.mxu0 0
  %169 = vmatpush2.bf16.msra.mxu0 0
  %170 = vmatprep.subr.bf16.mxu0 0
  %171 = vmatpush2.bf16.msra.mxu0 0
  %172 = vmatprep.subr.bf16.mxu0 0
  %173 = vmatpush2.bf16.msra.mxu0 0
  %174 = vmatprep.subr.bf16.mxu0 0
  %175 = vmatpush2.bf16.msra.mxu0 0
  %176 = vmatprep.subr.bf16.mxu0 0
  %177 = vmatpush2.bf16.msra.mxu0 0
  %178 = vmatprep.mubr.bf16.mxu0 0
  %179 = vmatmul.mubr.bf16.gmra.mxu0 %v144
  %v180 = vpop.f32.mrf.mxu0
  %v181 = vadd.f32 %v126, %v180
  %v182 = vpop.f32.mrf.mxu0
  %v183 = vpop.f32.mrf.mxu0
  %v184 = vpop.f32.mrf.mxu0
  %185 = vdwg.mxu0
  %v187 = vlaneseq
  %v188 = vshrl.u32 %v187, 7
  %v189 = vsub.s32 0, %v188
  %v190 = vrot.slane %v69, %v189
  %v192 = vadd.f32 %v181, %v190
  %v193 = vxor.u32 %v192, 2147483648
  %v194 = vmul.f32 %v193, 1.442695
  %v195 = vpow.pop %v194
  %v196 = vadd.f32 %v195, 1.0
  %v197 = vrcp.pop %v196
  %v198 = vmul.f32 1.0, %v197
  %v199 = vtanh.pop %v192
  %201 = vrot.lane.b32.xlu0 %v73, 32
  %v202 = vpop.permute.xlu0 %201
  %v204 = vmul.f32 %v198, %v202
  %206 = vrot.lane.b32.xlu0 %v199, 32
  %v207 = vpop.permute.xlu0 %206
  %v209 = vmul.f32 %v198, %v207
  %211 = vrot.lane.b32.xlu0 %v209, 32
  %v212 = vpop.permute.xlu0 %211
  %v214 = vadd.f32 %v204, %v212
  %v215 = vtanh.pop %v214
  %217 = vrot.lane.b32.xlu0 %v215, 32
  %v218 = vpop.permute.xlu0 %217
  %v220 = vmul.f32 %v198, %v218
  %s221 = scalar_lea.vmem %s0, 28
  %v222 = vld [vmem:[%s221] sm:$0xf]
  %s223 = scalar_lea.vmem %s1, 8
  %v224 = vld [vmem:[%s223] sm:$0xff]
  %s225 = scalar_lea.vmem %s2, 8
  %v226 = vld [vmem:[%s225] sm:$0xff]
  %v227 = vpack.c.bf16 %v224, %v224
  %v232 = vunpack.c.l.b16 %v65
  %v233 = vunpack.c.l.b16 %v66
  %v234 = vunpack.c.l.b16 %v67
  %v235 = vunpack.c.l.b16 %v68
  %v236 = vpack.c.b16 %v233, %v232
  %v237 = vpack.c.b16 %v235, %v234
  %v241 = vsel %vm87, %v227, 0
  %243 = vmatprep.subr.bf16.mxu0 0
  %244 = vmatpush1.bf16.msra.mxu0 0
  %245 = vmatprep.subr.bf16.mxu0 0
  %246 = vmatpush1.bf16.msra.mxu0 0
  %247 = vmatprep.subr.bf16.mxu0 0
  %248 = vmatpush1.bf16.msra.mxu0 0
  %249 = vmatprep.subr.bf16.mxu0 0
  %250 = vmatpush1.bf16.msra.mxu0 0
  %251 = vmatprep.subr.bf16.mxu0 0
  %252 = vmatpush1.bf16.msra.mxu0 0
  %253 = vmatprep.subr.bf16.mxu0 0
  %254 = vmatpush1.bf16.msra.mxu0 0
  %255 = vmatprep.subr.bf16.mxu0 0
  %256 = vmatpush1.bf16.msra.mxu0 %v237
  %257 = vmatprep.subr.bf16.mxu0 0
  %258 = vmatpush1.bf16.msra.mxu0 %v236
  %259 = vmatprep.subr.bf16.mxu0 0
  %260 = vmatpush2.bf16.msra.mxu0 0
  %261 = vmatprep.subr.bf16.mxu0 0
  %262 = vmatpush2.bf16.msra.mxu0 0
  %263 = vmatprep.subr.bf16.mxu0 0
  %264 = vmatpush2.bf16.msra.mxu0 0
  %265 = vmatprep.subr.bf16.mxu0 0
  %266 = vmatpush2.bf16.msra.mxu0 0
  %267 = vmatprep.subr.bf16.mxu0 0
  %268 = vmatpush2.bf16.msra.mxu0 0
  %269 = vmatprep.subr.bf16.mxu0 0
  %270 = vmatpush2.bf16.msra.mxu0 0
  %271 = vmatprep.subr.bf16.mxu0 0
  %272 = vmatpush2.bf16.msra.mxu0 0
  %273 = vmatprep.subr.bf16.mxu0 0
  %274 = vmatpush2.bf16.msra.mxu0 0
  %275 = vmatprep.mubr.bf16.mxu0 0
  %276 = vmatmul.mubr.bf16.gmra.mxu0 %v241
  %v277 = vpop.f32.mrf.mxu0
  %v278 = vadd.f32 0.0, %v277
  %v279 = vpop.f32.mrf.mxu0
  %v280 = vpop.f32.mrf.mxu0
  %v281 = vpop.f32.mrf.mxu0
  %282 = vdwg.mxu0
  %v287 = vunpack.c.l.b16 %v57
  %v288 = vunpack.c.l.b16 %v58
  %v289 = vunpack.c.l.b16 %v59
  %v290 = vunpack.c.l.b16 %v60
  %v291 = vpack.c.b16 %v288, %v287
  %v292 = vpack.c.b16 %v290, %v289
  %v296 = vsel %vm87, %v222, 0
  %298 = vmatprep.subr.bf16.mxu0 0
  %299 = vmatpush1.bf16.msra.mxu0 0
  %300 = vmatprep.subr.bf16.mxu0 0
  %301 = vmatpush1.bf16.msra.mxu0 0
  %302 = vmatprep.subr.bf16.mxu0 0
  %303 = vmatpush1.bf16.msra.mxu0 0
  %304 = vmatprep.subr.bf16.mxu0 0
  %305 = vmatpush1.bf16.msra.mxu0 0
  %306 = vmatprep.subr.bf16.mxu0 0
  %307 = vmatpush1.bf16.msra.mxu0 0
  %308 = vmatprep.subr.bf16.mxu0 0
  %309 = vmatpush1.bf16.msra.mxu0 0
  %310 = vmatprep.subr.bf16.mxu0 0
  %311 = vmatpush1.bf16.msra.mxu0 %v292
  %312 = vmatprep.subr.bf16.mxu0 0
  %313 = vmatpush1.bf16.msra.mxu0 %v291
  %314 = vmatprep.subr.bf16.mxu0 0
  %315 = vmatpush2.bf16.msra.mxu0 0
  %316 = vmatprep.subr.bf16.mxu0 0
  %317 = vmatpush2.bf16.msra.mxu0 0
  %318 = vmatprep.subr.bf16.mxu0 0
  %319 = vmatpush2.bf16.msra.mxu0 0
  %320 = vmatprep.subr.bf16.mxu0 0
  %321 = vmatpush2.bf16.msra.mxu0 0
  %322 = vmatprep.subr.bf16.mxu0 0
  %323 = vmatpush2.bf16.msra.mxu0 0
  %324 = vmatprep.subr.bf16.mxu0 0
  %325 = vmatpush2.bf16.msra.mxu0 0
  %326 = vmatprep.subr.bf16.mxu0 0
  %327 = vmatpush2.bf16.msra.mxu0 0
  %328 = vmatprep.subr.bf16.mxu0 0
  %329 = vmatpush2.bf16.msra.mxu0 0
  %330 = vmatprep.mubr.bf16.mxu0 0
  %331 = vmatmul.mubr.bf16.gmra.mxu0 %v296
  %v332 = vpop.f32.mrf.mxu0
  %v333 = vadd.f32 %v278, %v332
  %v334 = vpop.f32.mrf.mxu0
  %v335 = vpop.f32.mrf.mxu0
  %v336 = vpop.f32.mrf.mxu0
  %337 = vdwg.mxu0
  %v339 = vlaneseq
  %v340 = vshrl.u32 %v339, 7
  %v341 = vsub.s32 0, %v340
  %v342 = vrot.slane %v70, %v341
  %v344 = vadd.f32 %v333, %v342
  %v345 = vxor.u32 %v344, 2147483648
  %v346 = vmul.f32 %v345, 1.442695
  %v347 = vpow.pop %v346
  %v348 = vadd.f32 %v347, 1.0
  %v349 = vrcp.pop %v348
  %v350 = vmul.f32 1.0, %v349
  %v351 = vtanh.pop %v344
  %353 = vrot.lane.b32.xlu0 %v226, 32
  %v354 = vpop.permute.xlu0 %353
  %v356 = vmul.f32 %v350, %v354
  %358 = vrot.lane.b32.xlu0 %v351, 32
  %v359 = vpop.permute.xlu0 %358
  %v361 = vmul.f32 %v350, %v359
  %363 = vrot.lane.b32.xlu0 %v361, 32
  %v364 = vpop.permute.xlu0 %363
  %v366 = vadd.f32 %v356, %v364
  %v367 = vtanh.pop %v366
  %369 = vrot.lane.b32.xlu0 %v367, 32
  %v370 = vpop.permute.xlu0 %369
  %v372 = vmul.f32 %v350, %v370
  %374 = vrot.lane.b32.xlu0 %v372, 64
  %v375 = vpop.permute.xlu0 %374
  %377 = vst.msk [vmem:[#allocation2] sm:$0xff] %vm87, %v375
  %s378 = scalar_lea.vmem %s0, 4
  %v379 = vld [vmem:[%s378] sm:$0xf]
  %v380 = vpack.c.bf16 %v220, %v220
  %382 = vrot.lane.b32.xlu0 %v380, 64
  %v383 = vpop.permute.xlu0 %382
  %v385 = vsel %vm87, %v383, 0
  %387 = vmatprep.subr.bf16.mxu0 0
  %388 = vmatpush1.bf16.msra.mxu0 0
  %389 = vmatprep.subr.bf16.mxu0 0
  %390 = vmatpush1.bf16.msra.mxu0 0
  %391 = vmatprep.subr.bf16.mxu0 0
  %392 = vmatpush1.bf16.msra.mxu0 0
  %393 = vmatprep.subr.bf16.mxu0 0
  %394 = vmatpush1.bf16.msra.mxu0 0
  %395 = vmatprep.subr.bf16.mxu0 0
  %396 = vmatpush1.bf16.msra.mxu0 0
  %397 = vmatprep.subr.bf16.mxu0 0
  %398 = vmatpush1.bf16.msra.mxu0 0
  %399 = vmatprep.subr.bf16.mxu0 0
  %400 = vmatpush1.bf16.msra.mxu0 %v84
  %401 = vmatprep.subr.bf16.mxu0 0
  %402 = vmatpush1.bf16.msra.mxu0 %v83
  %403 = vmatprep.subr.bf16.mxu0 0
  %404 = vmatpush2.bf16.msra.mxu0 0
  %405 = vmatprep.subr.bf16.mxu0 0
  %406 = vmatpush2.bf16.msra.mxu0 0
  %407 = vmatprep.subr.bf16.mxu0 0
  %408 = vmatpush2.bf16.msra.mxu0 0
  %409 = vmatprep.subr.bf16.mxu0 0
  %410 = vmatpush2.bf16.msra.mxu0 0
  %411 = vmatprep.subr.bf16.mxu0 0
  %412 = vmatpush2.bf16.msra.mxu0 0
  %413 = vmatprep.subr.bf16.mxu0 0
  %414 = vmatpush2.bf16.msra.mxu0 0
  %415 = vmatprep.subr.bf16.mxu0 0
  %416 = vmatpush2.bf16.msra.mxu0 0
  %417 = vmatprep.subr.bf16.mxu0 0
  %418 = vmatpush2.bf16.msra.mxu0 0
  %419 = vmatprep.mubr.bf16.mxu0 0
  %420 = vmatmul.mubr.bf16.gmra.mxu0 %v385
  %v421 = vpop.f32.mrf.mxu0
  %v422 = vadd.f32 0.0, %v421
  %v423 = vpop.f32.mrf.mxu0
  %v424 = vpop.f32.mrf.mxu0
  %v425 = vpop.f32.mrf.mxu0
  %426 = vdwg.mxu0
  %v428 = vsel %vm87, %v379, 0
  %430 = vmatprep.subr.bf16.mxu0 0
  %431 = vmatpush1.bf16.msra.mxu0 0
  %432 = vmatprep.subr.bf16.mxu0 0
  %433 = vmatpush1.bf16.msra.mxu0 0
  %434 = vmatprep.subr.bf16.mxu0 0
  %435 = vmatpush1.bf16.msra.mxu0 0
  %436 = vmatprep.subr.bf16.mxu0 0
  %437 = vmatpush1.bf16.msra.mxu0 0
  %438 = vmatprep.subr.bf16.mxu0 0
  %439 = vmatpush1.bf16.msra.mxu0 0
  %440 = vmatprep.subr.bf16.mxu0 0
  %441 = vmatpush1.bf16.msra.mxu0 0
  %442 = vmatprep.subr.bf16.mxu0 0
  %443 = vmatpush1.bf16.msra.mxu0 %v140
  %444 = vmatprep.subr.bf16.mxu0 0
  %445 = vmatpush1.bf16.msra.mxu0 %v139
  %446 = vmatprep.subr.bf16.mxu0 0
  %447 = vmatpush2.bf16.msra.mxu0 0
  %448 = vmatprep.subr.bf16.mxu0 0
  %449 = vmatpush2.bf16.msra.mxu0 0
  %450 = vmatprep.subr.bf16.mxu0 0
  %451 = vmatpush2.bf16.msra.mxu0 0
  %452 = vmatprep.subr.bf16.mxu0 0
  %453 = vmatpush2.bf16.msra.mxu0 0
  %454 = vmatprep.subr.bf16.mxu0 0
  %455 = vmatpush2.bf16.msra.mxu0 0
  %456 = vmatprep.subr.bf16.mxu0 0
  %457 = vmatpush2.bf16.msra.mxu0 0
  %458 = vmatprep.subr.bf16.mxu0 0
  %459 = vmatpush2.bf16.msra.mxu0 0
  %460 = vmatprep.subr.bf16.mxu0 0
  %461 = vmatpush2.bf16.msra.mxu0 0
  %462 = vmatprep.mubr.bf16.mxu0 0
  %463 = vmatmul.mubr.bf16.gmra.mxu0 %v428
  %v464 = vpop.f32.mrf.mxu0
  %v465 = vadd.f32 %v422, %v464
  %v466 = vpop.f32.mrf.mxu0
  %v467 = vpop.f32.mrf.mxu0
  %v468 = vpop.f32.mrf.mxu0
  %469 = vdwg.mxu0
  %v470 = vadd.f32 %v465, %v190
  %v471 = vxor.u32 %v470, 2147483648
  %v472 = vmul.f32 %v471, 1.442695
  %v473 = vpow.pop %v472
  %v474 = vadd.f32 %v473, 1.0
  %v475 = vrcp.pop %v474
  %v476 = vmul.f32 1.0, %v475
  %v477 = vtanh.pop %v470
  %v478 = vmul.f32 %v476, %v214
  %480 = vrot.lane.b32.xlu0 %v477, 32
  %v481 = vpop.permute.xlu0 %480
  %v483 = vmul.f32 %v476, %v481
  %485 = vrot.lane.b32.xlu0 %v483, 32
  %v486 = vpop.permute.xlu0 %485
  %v488 = vadd.f32 %v478, %v486
  %v489 = vtanh.pop %v488
  %491 = vrot.lane.b32.xlu0 %v489, 32
  %v492 = vpop.permute.xlu0 %491
  %v494 = vmul.f32 %v476, %v492
  %s495 = scalar_lea.vmem %s0, 24
  %v496 = vld [vmem:[%s495] sm:$0xf]
  %v497 = vpack.c.bf16 %v372, %v372
  %499 = vrot.lane.b32.xlu0 %v497, 64
  %v500 = vpop.permute.xlu0 %499
  %v502 = vsel %vm87, %v500, 0
  %504 = vmatprep.subr.bf16.mxu0 0
  %505 = vmatpush1.bf16.msra.mxu0 0
  %506 = vmatprep.subr.bf16.mxu0 0
  %507 = vmatpush1.bf16.msra.mxu0 0
  %508 = vmatprep.subr.bf16.mxu0 0
  %509 = vmatpush1.bf16.msra.mxu0 0
  %510 = vmatprep.subr.bf16.mxu0 0
  %511 = vmatpush1.bf16.msra.mxu0 0
  %512 = vmatprep.subr.bf16.mxu0 0
  %513 = vmatpush1.bf16.msra.mxu0 0
  %514 = vmatprep.subr.bf16.mxu0 0
  %515 = vmatpush1.bf16.msra.mxu0 0
  %516 = vmatprep.subr.bf16.mxu0 0
  %517 = vmatpush1.bf16.msra.mxu0 %v237
  %518 = vmatprep.subr.bf16.mxu0 0
  %519 = vmatpush1.bf16.msra.mxu0 %v236
  %520 = vmatprep.subr.bf16.mxu0 0
  %521 = vmatpush2.bf16.msra.mxu0 0
  %522 = vmatprep.subr.bf16.mxu0 0
  %523 = vmatpush2.bf16.msra.mxu0 0
  %524 = vmatprep.subr.bf16.mxu0 0
  %525 = vmatpush2.bf16.msra.mxu0 0
  %526 = vmatprep.subr.bf16.mxu0 0
  %527 = vmatpush2.bf16.msra.mxu0 0
  %528 = vmatprep.subr.bf16.mxu0 0
  %529 = vmatpush2.bf16.msra.mxu0 0
  %530 = vmatprep.subr.bf16.mxu0 0
  %531 = vmatpush2.bf16.msra.mxu0 0
  %532 = vmatprep.subr.bf16.mxu0 0
  %533 = vmatpush2.bf16.msra.mxu0 0
  %534 = vmatprep.subr.bf16.mxu0 0
  %535 = vmatpush2.bf16.msra.mxu0 0
  %536 = vmatprep.mubr.bf16.mxu0 0
  %537 = vmatmul.mubr.bf16.gmra.mxu0 %v502
  %v538 = vpop.f32.mrf.mxu0
  %v539 = vadd.f32 0.0, %v538
  %v540 = vpop.f32.mrf.mxu0
  %v541 = vpop.f32.mrf.mxu0
  %v542 = vpop.f32.mrf.mxu0
  %543 = vdwg.mxu0
  %v545 = vsel %vm87, %v496, 0
  %547 = vmatprep.subr.bf16.mxu0 0
  %548 = vmatpush1.bf16.msra.mxu0 0
  %549 = vmatprep.subr.bf16.mxu0 0
  %550 = vmatpush1.bf16.msra.mxu0 0
  %551 = vmatprep.subr.bf16.mxu0 0
  %552 = vmatpush1.bf16.msra.mxu0 0
  %553 = vmatprep.subr.bf16.mxu0 0
  %554 = vmatpush1.bf16.msra.mxu0 0
  %555 = vmatprep.subr.bf16.mxu0 0
  %556 = vmatpush1.bf16.msra.mxu0 0
  %557 = vmatprep.subr.bf16.mxu0 0
  %558 = vmatpush1.bf16.msra.mxu0 0
  %559 = vmatprep.subr.bf16.mxu0 0
  %560 = vmatpush1.bf16.msra.mxu0 %v292
  %561 = vmatprep.subr.bf16.mxu0 0
  %562 = vmatpush1.bf16.msra.mxu0 %v291
  %563 = vmatprep.subr.bf16.mxu0 0
  %564 = vmatpush2.bf16.msra.mxu0 0
  %565 = vmatprep.subr.bf16.mxu0 0
  %566 = vmatpush2.bf16.msra.mxu0 0
  %567 = vmatprep.subr.bf16.mxu0 0
  %568 = vmatpush2.bf16.msra.mxu0 0
  %569 = vmatprep.subr.bf16.mxu0 0
  %570 = vmatpush2.bf16.msra.mxu0 0
  %571 = vmatprep.subr.bf16.mxu0 0
  %572 = vmatpush2.bf16.msra.mxu0 0
  %573 = vmatprep.subr.bf16.mxu0 0
  %574 = vmatpush2.bf16.msra.mxu0 0
  %575 = vmatprep.subr.bf16.mxu0 0
  %576 = vmatpush2.bf16.msra.mxu0 0
  %577 = vmatprep.subr.bf16.mxu0 0
  %578 = vmatpush2.bf16.msra.mxu0 0
  %579 = vmatprep.mubr.bf16.mxu0 0
  %580 = vmatmul.mubr.bf16.gmra.mxu0 %v545
  %v581 = vpop.f32.mrf.mxu0
  %v582 = vadd.f32 %v539, %v581
  %v583 = vpop.f32.mrf.mxu0
  %v584 = vpop.f32.mrf.mxu0
  %v585 = vpop.f32.mrf.mxu0
  %586 = vdwg.mxu0
  %v587 = vadd.f32 %v582, %v342
  %v588 = vxor.u32 %v587, 2147483648
  %v589 = vmul.f32 %v588, 1.442695
  %v590 = vpow.pop %v589
  %v591 = vadd.f32 %v590, 1.0
  %v592 = vrcp.pop %v591
  %v593 = vmul.f32 1.0, %v592
  %v594 = vtanh.pop %v587
  %v595 = vmul.f32 %v593, %v366
  %597 = vrot.lane.b32.xlu0 %v594, 32
  %v598 = vpop.permute.xlu0 %597
  %v600 = vmul.f32 %v593, %v598
  %602 = vrot.lane.b32.xlu0 %v600, 32
  %v603 = vpop.permute.xlu0 %602
  %v605 = vadd.f32 %v595, %v603
  %v606 = vtanh.pop %v605
  %608 = vrot.lane.b32.xlu0 %v606, 32
  %v609 = vpop.permute.xlu0 %608
  %v611 = vmul.f32 %v593, %v609
  %s612 = scalar_lea.vmem %s0, 8
  %v613 = vld [vmem:[%s612] sm:$0xf]
  %v614 = vpack.c.bf16 %v494, %v494
  %616 = vrot.lane.b32.xlu0 %v614, 64
  %v617 = vpop.permute.xlu0 %616
  %v619 = vsel %vm87, %v617, 0
  %621 = vmatprep.subr.bf16.mxu0 0
  %622 = vmatpush1.bf16.msra.mxu0 0
  %623 = vmatprep.subr.bf16.mxu0 0
  %624 = vmatpush1.bf16.msra.mxu0 0
  %625 = vmatprep.subr.bf16.mxu0 0
  %626 = vmatpush1.bf16.msra.mxu0 0
  %627 = vmatprep.subr.bf16.mxu0 0
  %628 = vmatpush1.bf16.msra.mxu0 0
  %629 = vmatprep.subr.bf16.mxu0 0
  %630 = vmatpush1.bf16.msra.mxu0 0
  %631 = vmatprep.subr.bf16.mxu0 0
  %632 = vmatpush1.bf16.msra.mxu0 0
  %633 = vmatprep.subr.bf16.mxu0 0
  %634 = vmatpush1.bf16.msra.mxu0 %v84
  %635 = vmatprep.subr.bf16.mxu0 0
  %636 = vmatpush1.bf16.msra.mxu0 %v83
  %637 = vmatprep.subr.bf16.mxu0 0
  %638 = vmatpush2.bf16.msra.mxu0 0
  %639 = vmatprep.subr.bf16.mxu0 0
  %640 = vmatpush2.bf16.msra.mxu0 0
  %641 = vmatprep.subr.bf16.mxu0 0
  %642 = vmatpush2.bf16.msra.mxu0 0
  %643 = vmatprep.subr.bf16.mxu0 0
  %644 = vmatpush2.bf16.msra.mxu0 0
  %645 = vmatprep.subr.bf16.mxu0 0
  %646 = vmatpush2.bf16.msra.mxu0 0
  %647 = vmatprep.subr.bf16.mxu0 0
  %648 = vmatpush2.bf16.msra.mxu0 0
  %649 = vmatprep.subr.bf16.mxu0 0
  %650 = vmatpush2.bf16.msra.mxu0 0
  %651 = vmatprep.subr.bf16.mxu0 0
  %652 = vmatpush2.bf16.msra.mxu0 0
  %653 = vmatprep.mubr.bf16.mxu0 0
  %654 = vmatmul.mubr.bf16.gmra.mxu0 %v619
  %v655 = vpop.f32.mrf.mxu0
  %v656 = vadd.f32 0.0, %v655
  %v657 = vpop.f32.mrf.mxu0
  %v658 = vpop.f32.mrf.mxu0
  %v659 = vpop.f32.mrf.mxu0
  %660 = vdwg.mxu0
  %v662 = vsel %vm87, %v613, 0
  %664 = vmatprep.subr.bf16.mxu0 0
  %665 = vmatpush1.bf16.msra.mxu0 0
  %666 = vmatprep.subr.bf16.mxu0 0
  %667 = vmatpush1.bf16.msra.mxu0 0
  %668 = vmatprep.subr.bf16.mxu0 0
  %669 = vmatpush1.bf16.msra.mxu0 0
  %670 = vmatprep.subr.bf16.mxu0 0
  %671 = vmatpush1.bf16.msra.mxu0 0
  %672 = vmatprep.subr.bf16.mxu0 0
  %673 = vmatpush1.bf16.msra.mxu0 0
  %674 = vmatprep.subr.bf16.mxu0 0
  %675 = vmatpush1.bf16.msra.mxu0 0
  %676 = vmatprep.subr.bf16.mxu0 0
  %677 = vmatpush1.bf16.msra.mxu0 %v140
  %678 = vmatprep.subr.bf16.mxu0 0
  %679 = vmatpush1.bf16.msra.mxu0 %v139
  %680 = vmatprep.subr.bf16.mxu0 0
  %681 = vmatpush2.bf16.msra.mxu0 0
  %682 = vmatprep.subr.bf16.mxu0 0
  %683 = vmatpush2.bf16.msra.mxu0 0
  %684 = vmatprep.subr.bf16.mxu0 0
  %685 = vmatpush2.bf16.msra.mxu0 0
  %686 = vmatprep.subr.bf16.mxu0 0
  %687 = vmatpush2.bf16.msra.mxu0 0
  %688 = vmatprep.subr.bf16.mxu0 0
  %689 = vmatpush2.bf16.msra.mxu0 0
  %690 = vmatprep.subr.bf16.mxu0 0
  %691 = vmatpush2.bf16.msra.mxu0 0
  %692 = vmatprep.subr.bf16.mxu0 0
  %693 = vmatpush2.bf16.msra.mxu0 0
  %694 = vmatprep.subr.bf16.mxu0 0
  %695 = vmatpush2.bf16.msra.mxu0 0
  %696 = vmatprep.mubr.bf16.mxu0 0
  %697 = vmatmul.mubr.bf16.gmra.mxu0 %v662
  %v698 = vpop.f32.mrf.mxu0
  %v699 = vadd.f32 %v656, %v698
  %v700 = vpop.f32.mrf.mxu0
  %v701 = vpop.f32.mrf.mxu0
  %v702 = vpop.f32.mrf.mxu0
  %703 = vdwg.mxu0
  %v704 = vadd.f32 %v699, %v190
  %v705 = vxor.u32 %v704, 2147483648
  %v706 = vmul.f32 %v705, 1.442695
  %v707 = vpow.pop %v706
  %v708 = vadd.f32 %v707, 1.0
  %v709 = vrcp.pop %v708
  %v710 = vmul.f32 1.0, %v709
  %v711 = vtanh.pop %v704
  %v712 = vmul.f32 %v710, %v488
  %714 = vrot.lane.b32.xlu0 %v711, 32
  %v715 = vpop.permute.xlu0 %714
  %v717 = vmul.f32 %v710, %v715
  %719 = vrot.lane.b32.xlu0 %v717, 32
  %v720 = vpop.permute.xlu0 %719
  %v722 = vadd.f32 %v712, %v720
  %v723 = vtanh.pop %v722
  %725 = vrot.lane.b32.xlu0 %v723, 32
  %v726 = vpop.permute.xlu0 %725
  %v728 = vmul.f32 %v710, %v726
  %s729 = scalar_lea.vmem %s0, 20
  %v730 = vld [vmem:[%s729] sm:$0xf]
  %v731 = vpack.c.bf16 %v611, %v611
  %733 = vrot.lane.b32.xlu0 %v731, 64
  %v734 = vpop.permute.xlu0 %733
  %v736 = vsel %vm87, %v734, 0
  %738 = vmatprep.subr.bf16.mxu0 0
  %739 = vmatpush1.bf16.msra.mxu0 0
  %740 = vmatprep.subr.bf16.mxu0 0
  %741 = vmatpush1.bf16.msra.mxu0 0
  %742 = vmatprep.subr.bf16.mxu0 0
  %743 = vmatpush1.bf16.msra.mxu0 0
  %744 = vmatprep.subr.bf16.mxu0 0
  %745 = vmatpush1.bf16.msra.mxu0 0
  %746 = vmatprep.subr.bf16.mxu0 0
  %747 = vmatpush1.bf16.msra.mxu0 0
  %748 = vmatprep.subr.bf16.mxu0 0
  %749 = vmatpush1.bf16.msra.mxu0 0
  %750 = vmatprep.subr.bf16.mxu0 0
  %751 = vmatpush1.bf16.msra.mxu0 %v237
  %752 = vmatprep.subr.bf16.mxu0 0
  %753 = vmatpush1.bf16.msra.mxu0 %v236
  %754 = vmatprep.subr.bf16.mxu0 0
  %755 = vmatpush2.bf16.msra.mxu0 0
  %756 = vmatprep.subr.bf16.mxu0 0
  %757 = vmatpush2.bf16.msra.mxu0 0
  %758 = vmatprep.subr.bf16.mxu0 0
  %759 = vmatpush2.bf16.msra.mxu0 0
  %760 = vmatprep.subr.bf16.mxu0 0
  %761 = vmatpush2.bf16.msra.mxu0 0
  %762 = vmatprep.subr.bf16.mxu0 0
  %763 = vmatpush2.bf16.msra.mxu0 0
  %764 = vmatprep.subr.bf16.mxu0 0
  %765 = vmatpush2.bf16.msra.mxu0 0
  %766 = vmatprep.subr.bf16.mxu0 0
  %767 = vmatpush2.bf16.msra.mxu0 0
  %768 = vmatprep.subr.bf16.mxu0 0
  %769 = vmatpush2.bf16.msra.mxu0 0
  %770 = vmatprep.mubr.bf16.mxu0 0
  %771 = vmatmul.mubr.bf16.gmra.mxu0 %v736
  %v772 = vpop.f32.mrf.mxu0
  %v773 = vadd.f32 0.0, %v772
  %v774 = vpop.f32.mrf.mxu0
  %v775 = vpop.f32.mrf.mxu0
  %v776 = vpop.f32.mrf.mxu0
  %777 = vdwg.mxu0
  %v779 = vsel %vm87, %v730, 0
  %781 = vmatprep.subr.bf16.mxu0 0
  %782 = vmatpush1.bf16.msra.mxu0 0
  %783 = vmatprep.subr.bf16.mxu0 0
  %784 = vmatpush1.bf16.msra.mxu0 0
  %785 = vmatprep.subr.bf16.mxu0 0
  %786 = vmatpush1.bf16.msra.mxu0 0
  %787 = vmatprep.subr.bf16.mxu0 0
  %788 = vmatpush1.bf16.msra.mxu0 0
  %789 = vmatprep.subr.bf16.mxu0 0
  %790 = vmatpush1.bf16.msra.mxu0 0
  %791 = vmatprep.subr.bf16.mxu0 0
  %792 = vmatpush1.bf16.msra.mxu0 0
  %793 = vmatprep.subr.bf16.mxu0 0
  %794 = vmatpush1.bf16.msra.mxu0 %v292
  %795 = vmatprep.subr.bf16.mxu0 0
  %796 = vmatpush1.bf16.msra.mxu0 %v291
  %797 = vmatprep.subr.bf16.mxu0 0
  %798 = vmatpush2.bf16.msra.mxu0 0
  %799 = vmatprep.subr.bf16.mxu0 0
  %800 = vmatpush2.bf16.msra.mxu0 0
  %801 = vmatprep.subr.bf16.mxu0 0
  %802 = vmatpush2.bf16.msra.mxu0 0
  %803 = vmatprep.subr.bf16.mxu0 0
  %804 = vmatpush2.bf16.msra.mxu0 0
  %805 = vmatprep.subr.bf16.mxu0 0
  %806 = vmatpush2.bf16.msra.mxu0 0
  %807 = vmatprep.subr.bf16.mxu0 0
  %808 = vmatpush2.bf16.msra.mxu0 0
  %809 = vmatprep.subr.bf16.mxu0 0
  %810 = vmatpush2.bf16.msra.mxu0 0
  %811 = vmatprep.subr.bf16.mxu0 0
  %812 = vmatpush2.bf16.msra.mxu0 0
  %813 = vmatprep.mubr.bf16.mxu0 0
  %814 = vmatmul.mubr.bf16.gmra.mxu0 %v779
  %v815 = vpop.f32.mrf.mxu0
  %v816 = vadd.f32 %v773, %v815
  %v817 = vpop.f32.mrf.mxu0
  %v818 = vpop.f32.mrf.mxu0
  %v819 = vpop.f32.mrf.mxu0
  %820 = vdwg.mxu0
  %v821 = vadd.f32 %v816, %v342
  %v822 = vxor.u32 %v821, 2147483648
  %v823 = vmul.f32 %v822, 1.442695
  %v824 = vpow.pop %v823
  %v825 = vadd.f32 %v824, 1.0
  %v826 = vrcp.pop %v825
  %v827 = vmul.f32 1.0, %v826
  %v828 = vtanh.pop %v821
  %v829 = vmul.f32 %v827, %v605
  %831 = vrot.lane.b32.xlu0 %v828, 32
  %v832 = vpop.permute.xlu0 %831
  %v834 = vmul.f32 %v827, %v832
  %836 = vrot.lane.b32.xlu0 %v834, 32
  %v837 = vpop.permute.xlu0 %836
  %v839 = vadd.f32 %v829, %v837
  %v840 = vtanh.pop %v839
  %842 = vrot.lane.b32.xlu0 %v840, 32
  %v843 = vpop.permute.xlu0 %842
  %v845 = vmul.f32 %v827, %v843
  %s846 = scalar_lea.vmem %s0, 12
  %v847 = vld [vmem:[%s846] sm:$0xf]
  %v848 = vpack.c.bf16 %v728, %v728
  %850 = vrot.lane.b32.xlu0 %v848, 64
  %v851 = vpop.permute.xlu0 %850
  %v853 = vsel %vm87, %v851, 0
  %855 = vmatprep.subr.bf16.mxu0 0
  %856 = vmatpush1.bf16.msra.mxu0 0
  %857 = vmatprep.subr.bf16.mxu0 0
  %858 = vmatpush1.bf16.msra.mxu0 0
  %859 = vmatprep.subr.bf16.mxu0 0
  %860 = vmatpush1.bf16.msra.mxu0 0
  %861 = vmatprep.subr.bf16.mxu0 0
  %862 = vmatpush1.bf16.msra.mxu0 0
  %863 = vmatprep.subr.bf16.mxu0 0
  %864 = vmatpush1.bf16.msra.mxu0 0
  %865 = vmatprep.subr.bf16.mxu0 0
  %866 = vmatpush1.bf16.msra.mxu0 0
  %867 = vmatprep.subr.bf16.mxu0 0
  %868 = vmatpush1.bf16.msra.mxu0 %v84
  %869 = vmatprep.subr.bf16.mxu0 0
  %870 = vmatpush1.bf16.msra.mxu0 %v83
  %871 = vmatprep.subr.bf16.mxu0 0
  %872 = vmatpush2.bf16.msra.mxu0 0
  %873 = vmatprep.subr.bf16.mxu0 0
  %874 = vmatpush2.bf16.msra.mxu0 0
  %875 = vmatprep.subr.bf16.mxu0 0
  %876 = vmatpush2.bf16.msra.mxu0 0
  %877 = vmatprep.subr.bf16.mxu0 0
  %878 = vmatpush2.bf16.msra.mxu0 0
  %879 = vmatprep.subr.bf16.mxu0 0
  %880 = vmatpush2.bf16.msra.mxu0 0
  %881 = vmatprep.subr.bf16.mxu0 0
  %882 = vmatpush2.bf16.msra.mxu0 0
  %883 = vmatprep.subr.bf16.mxu0 0
  %884 = vmatpush2.bf16.msra.mxu0 0
  %885 = vmatprep.subr.bf16.mxu0 0
  %886 = vmatpush2.bf16.msra.mxu0 0
  %887 = vmatprep.mubr.bf16.mxu0 0
  %888 = vmatmul.mubr.bf16.gmra.mxu0 %v853
  %v889 = vpop.f32.mrf.mxu0
  %v890 = vadd.f32 0.0, %v889
  %v891 = vpop.f32.mrf.mxu0
  %v892 = vpop.f32.mrf.mxu0
  %v893 = vpop.f32.mrf.mxu0
  %894 = vdwg.mxu0
  %v896 = vsel %vm87, %v847, 0
  %898 = vmatprep.subr.bf16.mxu0 0
  %899 = vmatpush1.bf16.msra.mxu0 0
  %900 = vmatprep.subr.bf16.mxu0 0
  %901 = vmatpush1.bf16.msra.mxu0 0
  %902 = vmatprep.subr.bf16.mxu0 0
  %903 = vmatpush1.bf16.msra.mxu0 0
  %904 = vmatprep.subr.bf16.mxu0 0
  %905 = vmatpush1.bf16.msra.mxu0 0
  %906 = vmatprep.subr.bf16.mxu0 0
  %907 = vmatpush1.bf16.msra.mxu0 0
  %908 = vmatprep.subr.bf16.mxu0 0
  %909 = vmatpush1.bf16.msra.mxu0 0
  %910 = vmatprep.subr.bf16.mxu0 0
  %911 = vmatpush1.bf16.msra.mxu0 %v140
  %912 = vmatprep.subr.bf16.mxu0 0
  %913 = vmatpush1.bf16.msra.mxu0 %v139
  %914 = vmatprep.subr.bf16.mxu0 0
  %915 = vmatpush2.bf16.msra.mxu0 0
  %916 = vmatprep.subr.bf16.mxu0 0
  %917 = vmatpush2.bf16.msra.mxu0 0
  %918 = vmatprep.subr.bf16.mxu0 0
  %919 = vmatpush2.bf16.msra.mxu0 0
  %920 = vmatprep.subr.bf16.mxu0 0
  %921 = vmatpush2.bf16.msra.mxu0 0
  %922 = vmatprep.subr.bf16.mxu0 0
  %923 = vmatpush2.bf16.msra.mxu0 0
  %924 = vmatprep.subr.bf16.mxu0 0
  %925 = vmatpush2.bf16.msra.mxu0 0
  %926 = vmatprep.subr.bf16.mxu0 0
  %927 = vmatpush2.bf16.msra.mxu0 0
  %928 = vmatprep.subr.bf16.mxu0 0
  %929 = vmatpush2.bf16.msra.mxu0 0
  %930 = vmatprep.mubr.bf16.mxu0 0
  %931 = vmatmul.mubr.bf16.gmra.mxu0 %v896
  %v932 = vpop.f32.mrf.mxu0
  %v933 = vadd.f32 %v890, %v932
  %v934 = vpop.f32.mrf.mxu0
  %v935 = vpop.f32.mrf.mxu0
  %v936 = vpop.f32.mrf.mxu0
  %937 = vdwg.mxu0
  %v938 = vadd.f32 %v933, %v190
  %v939 = vxor.u32 %v938, 2147483648
  %v940 = vmul.f32 %v939, 1.442695
  %v941 = vpow.pop %v940
  %v942 = vadd.f32 %v941, 1.0
  %v943 = vrcp.pop %v942
  %v944 = vmul.f32 1.0, %v943
  %v945 = vtanh.pop %v938
  %v946 = vmul.f32 %v944, %v722
  %948 = vrot.lane.b32.xlu0 %v945, 32
  %v949 = vpop.permute.xlu0 %948
  %v951 = vmul.f32 %v944, %v949
  %953 = vrot.lane.b32.xlu0 %v951, 32
  %v954 = vpop.permute.xlu0 %953
  %v956 = vadd.f32 %v946, %v954
  %v957 = vtanh.pop %v956
  %959 = vrot.lane.b32.xlu0 %v957, 32
  %v960 = vpop.permute.xlu0 %959
  %v962 = vmul.f32 %v944, %v960
  %s963 = scalar_lea.vmem %s0, 16
  %v964 = vld [vmem:[%s963] sm:$0xf]
  %v965 = vpack.c.bf16 %v845, %v845
  %967 = vrot.lane.b32.xlu0 %v965, 64
  %v968 = vpop.permute.xlu0 %967
  %v970 = vsel %vm87, %v968, 0
  %972 = vmatprep.subr.bf16.mxu0 0
  %973 = vmatpush1.bf16.msra.mxu0 0
  %974 = vmatprep.subr.bf16.mxu0 0
  %975 = vmatpush1.bf16.msra.mxu0 0
  %976 = vmatprep.subr.bf16.mxu0 0
  %977 = vmatpush1.bf16.msra.mxu0 0
  %978 = vmatprep.subr.bf16.mxu0 0
  %979 = vmatpush1.bf16.msra.mxu0 0
  %980 = vmatprep.subr.bf16.mxu0 0
  %981 = vmatpush1.bf16.msra.mxu0 0
  %982 = vmatprep.subr.bf16.mxu0 0
  %983 = vmatpush1.bf16.msra.mxu0 0
  %984 = vmatprep.subr.bf16.mxu0 0
  %985 = vmatpush1.bf16.msra.mxu0 %v237
  %986 = vmatprep.subr.bf16.mxu0 0
  %987 = vmatpush1.bf16.msra.mxu0 %v236
  %988 = vmatprep.subr.bf16.mxu0 0
  %989 = vmatpush2.bf16.msra.mxu0 0
  %990 = vmatprep.subr.bf16.mxu0 0
  %991 = vmatpush2.bf16.msra.mxu0 0
  %992 = vmatprep.subr.bf16.mxu0 0
  %993 = vmatpush2.bf16.msra.mxu0 0
  %994 = vmatprep.subr.bf16.mxu0 0
  %995 = vmatpush2.bf16.msra.mxu0 0
  %996 = vmatprep.subr.bf16.mxu0 0
  %997 = vmatpush2.bf16.msra.mxu0 0
  %998 = vmatprep.subr.bf16.mxu0 0
  %999 = vmatpush2.bf16.msra.mxu0 0
  %1000 = vmatprep.subr.bf16.mxu0 0
  %1001 = vmatpush2.bf16.msra.mxu0 0
  %1002 = vmatprep.subr.bf16.mxu0 0
  %1003 = vmatpush2.bf16.msra.mxu0 0
  %1004 = vmatprep.mubr.bf16.mxu0 0
  %1005 = vmatmul.mubr.bf16.gmra.mxu0 %v970
  %v1006 = vpop.f32.mrf.mxu0
  %v1007 = vadd.f32 0.0, %v1006
  %v1008 = vpop.f32.mrf.mxu0
  %v1009 = vpop.f32.mrf.mxu0
  %v1010 = vpop.f32.mrf.mxu0
  %1011 = vdwg.mxu0
  %v1013 = vsel %vm87, %v964, 0
  %1015 = vmatprep.subr.bf16.mxu0 0
  %1016 = vmatpush1.bf16.msra.mxu0 0
  %1017 = vmatprep.subr.bf16.mxu0 0
  %1018 = vmatpush1.bf16.msra.mxu0 0
  %1019 = vmatprep.subr.bf16.mxu0 0
  %1020 = vmatpush1.bf16.msra.mxu0 0
  %1021 = vmatprep.subr.bf16.mxu0 0
  %1022 = vmatpush1.bf16.msra.mxu0 0
  %1023 = vmatprep.subr.bf16.mxu0 0
  %1024 = vmatpush1.bf16.msra.mxu0 0
  %1025 = vmatprep.subr.bf16.mxu0 0
  %1026 = vmatpush1.bf16.msra.mxu0 0
  %1027 = vmatprep.subr.bf16.mxu0 0
  %1028 = vmatpush1.bf16.msra.mxu0 %v292
  %1029 = vmatprep.subr.bf16.mxu0 0
  %1030 = vmatpush1.bf16.msra.mxu0 %v291
  %1031 = vmatprep.subr.bf16.mxu0 0
  %1032 = vmatpush2.bf16.msra.mxu0 0
  %1033 = vmatprep.subr.bf16.mxu0 0
  %1034 = vmatpush2.bf16.msra.mxu0 0
  %1035 = vmatprep.subr.bf16.mxu0 0
  %1036 = vmatpush2.bf16.msra.mxu0 0
  %1037 = vmatprep.subr.bf16.mxu0 0
  %1038 = vmatpush2.bf16.msra.mxu0 0
  %1039 = vmatprep.subr.bf16.mxu0 0
  %1040 = vmatpush2.bf16.msra.mxu0 0
  %1041 = vmatprep.subr.bf16.mxu0 0
  %1042 = vmatpush2.bf16.msra.mxu0 0
  %1043 = vmatprep.subr.bf16.mxu0 0
  %1044 = vmatpush2.bf16.msra.mxu0 0
  %1045 = vmatprep.subr.bf16.mxu0 0
  %1046 = vmatpush2.bf16.msra.mxu0 0
  %1047 = vmatprep.mubr.bf16.mxu0 0
  %1048 = vmatmul.mubr.bf16.gmra.mxu0 %v1013
  %v1049 = vpop.f32.mrf.mxu0
  %v1050 = vadd.f32 %v1007, %v1049
  %v1051 = vpop.f32.mrf.mxu0
  %v1052 = vpop.f32.mrf.mxu0
  %v1053 = vpop.f32.mrf.mxu0
  %1054 = vdwg.mxu0
  %v1055 = vadd.f32 %v1050, %v342
  %v1056 = vxor.u32 %v1055, 2147483648
  %v1057 = vmul.f32 %v1056, 1.442695
  %v1058 = vpow.pop %v1057
  %v1059 = vadd.f32 %v1058, 1.0
  %v1060 = vrcp.pop %v1059
  %v1061 = vmul.f32 1.0, %v1060
  %v1062 = vtanh.pop %v1055
  %v1063 = vmul.f32 %v1061, %v839
  %1065 = vrot.lane.b32.xlu0 %v1062, 32
  %v1066 = vpop.permute.xlu0 %1065
  %v1068 = vmul.f32 %v1061, %v1066
  %1070 = vrot.lane.b32.xlu0 %v1068, 32
  %v1071 = vpop.permute.xlu0 %1070
  %v1073 = vadd.f32 %v1063, %v1071
  %v1074 = vtanh.pop %v1073
  %1076 = vrot.lane.b32.xlu0 %v1074, 32
  %v1077 = vpop.permute.xlu0 %1076
  %v1079 = vmul.f32 %v1061, %v1077
  %v1080 = vpack.c.bf16 %v962, %v962
  %1082 = vrot.lane.b32.xlu0 %v1080, 64
  %v1083 = vpop.permute.xlu0 %1082
  %v1085 = vsel %vm87, %v1083, 0
  %1087 = vmatprep.subr.bf16.mxu0 0
  %1088 = vmatpush1.bf16.msra.mxu0 0
  %1089 = vmatprep.subr.bf16.mxu0 0
  %1090 = vmatpush1.bf16.msra.mxu0 0
  %1091 = vmatprep.subr.bf16.mxu0 0
  %1092 = vmatpush1.bf16.msra.mxu0 0
  %1093 = vmatprep.subr.bf16.mxu0 0
  %1094 = vmatpush1.bf16.msra.mxu0 0
  %1095 = vmatprep.subr.bf16.mxu0 0
  %1096 = vmatpush1.bf16.msra.mxu0 0
  %1097 = vmatprep.subr.bf16.mxu0 0
  %1098 = vmatpush1.bf16.msra.mxu0 0
  %1099 = vmatprep.subr.bf16.mxu0 0
  %1100 = vmatpush1.bf16.msra.mxu0 %v84
  %1101 = vmatprep.subr.bf16.mxu0 0
  %1102 = vmatpush1.bf16.msra.mxu0 %v83
  %1103 = vmatprep.subr.bf16.mxu0 0
  %1104 = vmatpush2.bf16.msra.mxu0 0
  %1105 = vmatprep.subr.bf16.mxu0 0
  %1106 = vmatpush2.bf16.msra.mxu0 0
  %1107 = vmatprep.subr.bf16.mxu0 0
  %1108 = vmatpush2.bf16.msra.mxu0 0
  %1109 = vmatprep.subr.bf16.mxu0 0
  %1110 = vmatpush2.bf16.msra.mxu0 0
  %1111 = vmatprep.subr.bf16.mxu0 0
  %1112 = vmatpush2.bf16.msra.mxu0 0
  %1113 = vmatprep.subr.bf16.mxu0 0
  %1114 = vmatpush2.bf16.msra.mxu0 0
  %1115 = vmatprep.subr.bf16.mxu0 0
  %1116 = vmatpush2.bf16.msra.mxu0 0
  %1117 = vmatprep.subr.bf16.mxu0 0
  %1118 = vmatpush2.bf16.msra.mxu0 0
  %1119 = vmatprep.mubr.bf16.mxu0 0
  %1120 = vmatmul.mubr.bf16.gmra.mxu0 %v1085
  %v1121 = vpop.f32.mrf.mxu0
  %v1122 = vadd.f32 0.0, %v1121
  %v1123 = vpop.f32.mrf.mxu0
  %v1124 = vpop.f32.mrf.mxu0
  %v1125 = vpop.f32.mrf.mxu0
  %1126 = vdwg.mxu0
  %1127 = vmatprep.subr.bf16.mxu0 0
  %1128 = vmatpush1.bf16.msra.mxu0 0
  %1129 = vmatprep.subr.bf16.mxu0 0
  %1130 = vmatpush1.bf16.msra.mxu0 0
  %1131 = vmatprep.subr.bf16.mxu0 0
  %1132 = vmatpush1.bf16.msra.mxu0 0
  %1133 = vmatprep.subr.bf16.mxu0 0
  %1134 = vmatpush1.bf16.msra.mxu0 0
  %1135 = vmatprep.subr.bf16.mxu0 0
  %1136 = vmatpush1.bf16.msra.mxu0 0
  %1137 = vmatprep.subr.bf16.mxu0 0
  %1138 = vmatpush1.bf16.msra.mxu0 0
  %1139 = vmatprep.subr.bf16.mxu0 0
  %1140 = vmatpush1.bf16.msra.mxu0 %v140
  %1141 = vmatprep.subr.bf16.mxu0 0
  %1142 = vmatpush1.bf16.msra.mxu0 %v139
  %1143 = vmatprep.subr.bf16.mxu0 0
  %1144 = vmatpush2.bf16.msra.mxu0 0
  %1145 = vmatprep.subr.bf16.mxu0 0
  %1146 = vmatpush2.bf16.msra.mxu0 0
  %1147 = vmatprep.subr.bf16.mxu0 0
  %1148 = vmatpush2.bf16.msra.mxu0 0
  %1149 = vmatprep.subr.bf16.mxu0 0
  %1150 = vmatpush2.bf16.msra.mxu0 0
  %1151 = vmatprep.subr.bf16.mxu0 0
  %1152 = vmatpush2.bf16.msra.mxu0 0
  %1153 = vmatprep.subr.bf16.mxu0 0
  %1154 = vmatpush2.bf16.msra.mxu0 0
  %1155 = vmatprep.subr.bf16.mxu0 0
  %1156 = vmatpush2.bf16.msra.mxu0 0
  %1157 = vmatprep.subr.bf16.mxu0 0
  %1158 = vmatpush2.bf16.msra.mxu0 0
  %1159 = vmatprep.mubr.bf16.mxu0 0
  %1160 = vmatmul.mubr.bf16.gmra.mxu0 %v1013
  %v1161 = vpop.f32.mrf.mxu0
  %v1162 = vadd.f32 %v1122, %v1161
  %v1163 = vpop.f32.mrf.mxu0
  %v1164 = vpop.f32.mrf.mxu0
  %v1165 = vpop.f32.mrf.mxu0
  %1166 = vdwg.mxu0
  %v1167 = vadd.f32 %v1162, %v190
  %v1168 = vxor.u32 %v1167, 2147483648
  %v1169 = vmul.f32 %v1168, 1.442695
  %v1170 = vpow.pop %v1169
  %v1171 = vadd.f32 %v1170, 1.0
  %v1172 = vrcp.pop %v1171
  %v1173 = vmul.f32 1.0, %v1172
  %v1174 = vtanh.pop %v1167
  %v1175 = vmul.f32 %v1173, %v956
  %1177 = vrot.lane.b32.xlu0 %v1174, 32
  %v1178 = vpop.permute.xlu0 %1177
  %v1180 = vmul.f32 %v1173, %v1178
  %1182 = vrot.lane.b32.xlu0 %v1180, 32
  %v1183 = vpop.permute.xlu0 %1182
  %v1185 = vadd.f32 %v1175, %v1183
  %v1186 = vtanh.pop %v1185
  %1188 = vrot.lane.b32.xlu0 %v1186, 32
  %v1189 = vpop.permute.xlu0 %1188
  %v1191 = vmul.f32 %v1173, %v1189
  %v1192 = vpack.c.bf16 %v1079, %v1079
  %1194 = vrot.lane.b32.xlu0 %v1192, 64
  %v1195 = vpop.permute.xlu0 %1194
  %v1197 = vsel %vm87, %v1195, 0
  %1199 = vmatprep.subr.bf16.mxu0 0
  %1200 = vmatpush1.bf16.msra.mxu0 0
  %1201 = vmatprep.subr.bf16.mxu0 0
  %1202 = vmatpush1.bf16.msra.mxu0 0
  %1203 = vmatprep.subr.bf16.mxu0 0
  %1204 = vmatpush1.bf16.msra.mxu0 0
  %1205 = vmatprep.subr.bf16.mxu0 0
  %1206 = vmatpush1.bf16.msra.mxu0 0
  %1207 = vmatprep.subr.bf16.mxu0 0
  %1208 = vmatpush1.bf16.msra.mxu0 0
  %1209 = vmatprep.subr.bf16.mxu0 0
  %1210 = vmatpush1.bf16.msra.mxu0 0
  %1211 = vmatprep.subr.bf16.mxu0 0
  %1212 = vmatpush1.bf16.msra.mxu0 %v237
  %1213 = vmatprep.subr.bf16.mxu0 0
  %1214 = vmatpush1.bf16.msra.mxu0 %v236
  %1215 = vmatprep.subr.bf16.mxu0 0
  %1216 = vmatpush2.bf16.msra.mxu0 0
  %1217 = vmatprep.subr.bf16.mxu0 0
  %1218 = vmatpush2.bf16.msra.mxu0 0
  %1219 = vmatprep.subr.bf16.mxu0 0
  %1220 = vmatpush2.bf16.msra.mxu0 0
  %1221 = vmatprep.subr.bf16.mxu0 0
  %1222 = vmatpush2.bf16.msra.mxu0 0
  %1223 = vmatprep.subr.bf16.mxu0 0
  %1224 = vmatpush2.bf16.msra.mxu0 0
  %1225 = vmatprep.subr.bf16.mxu0 0
  %1226 = vmatpush2.bf16.msra.mxu0 0
  %1227 = vmatprep.subr.bf16.mxu0 0
  %1228 = vmatpush2.bf16.msra.mxu0 0
  %1229 = vmatprep.subr.bf16.mxu0 0
  %1230 = vmatpush2.bf16.msra.mxu0 0
  %1231 = vmatprep.mubr.bf16.mxu0 0
  %1232 = vmatmul.mubr.bf16.gmra.mxu0 %v1197
  %v1233 = vpop.f32.mrf.mxu0
  %v1234 = vadd.f32 0.0, %v1233
  %v1235 = vpop.f32.mrf.mxu0
  %v1236 = vpop.f32.mrf.mxu0
  %v1237 = vpop.f32.mrf.mxu0
  %1238 = vdwg.mxu0
  %1239 = vmatprep.subr.bf16.mxu0 0
  %1240 = vmatpush1.bf16.msra.mxu0 0
  %1241 = vmatprep.subr.bf16.mxu0 0
  %1242 = vmatpush1.bf16.msra.mxu0 0
  %1243 = vmatprep.subr.bf16.mxu0 0
  %1244 = vmatpush1.bf16.msra.mxu0 0
  %1245 = vmatprep.subr.bf16.mxu0 0
  %1246 = vmatpush1.bf16.msra.mxu0 0
  %1247 = vmatprep.subr.bf16.mxu0 0
  %1248 = vmatpush1.bf16.msra.mxu0 0
  %1249 = vmatprep.subr.bf16.mxu0 0
  %1250 = vmatpush1.bf16.msra.mxu0 0
  %1251 = vmatprep.subr.bf16.mxu0 0
  %1252 = vmatpush1.bf16.msra.mxu0 %v292
  %1253 = vmatprep.subr.bf16.mxu0 0
  %1254 = vmatpush1.bf16.msra.mxu0 %v291
  %1255 = vmatprep.subr.bf16.mxu0 0
  %1256 = vmatpush2.bf16.msra.mxu0 0
  %1257 = vmatprep.subr.bf16.mxu0 0
  %1258 = vmatpush2.bf16.msra.mxu0 0
  %1259 = vmatprep.subr.bf16.mxu0 0
  %1260 = vmatpush2.bf16.msra.mxu0 0
  %1261 = vmatprep.subr.bf16.mxu0 0
  %1262 = vmatpush2.bf16.msra.mxu0 0
  %1263 = vmatprep.subr.bf16.mxu0 0
  %1264 = vmatpush2.bf16.msra.mxu0 0
  %1265 = vmatprep.subr.bf16.mxu0 0
  %1266 = vmatpush2.bf16.msra.mxu0 0
  %1267 = vmatprep.subr.bf16.mxu0 0
  %1268 = vmatpush2.bf16.msra.mxu0 0
  %1269 = vmatprep.subr.bf16.mxu0 0
  %1270 = vmatpush2.bf16.msra.mxu0 0
  %1271 = vmatprep.mubr.bf16.mxu0 0
  %1272 = vmatmul.mubr.bf16.gmra.mxu0 %v896
  %v1273 = vpop.f32.mrf.mxu0
  %v1274 = vadd.f32 %v1234, %v1273
  %v1275 = vpop.f32.mrf.mxu0
  %v1276 = vpop.f32.mrf.mxu0
  %v1277 = vpop.f32.mrf.mxu0
  %1278 = vdwg.mxu0
  %v1279 = vadd.f32 %v1274, %v342
  %v1280 = vxor.u32 %v1279, 2147483648
  %v1281 = vmul.f32 %v1280, 1.442695
  %v1282 = vpow.pop %v1281
  %v1283 = vadd.f32 %v1282, 1.0
  %v1284 = vrcp.pop %v1283
  %v1285 = vmul.f32 1.0, %v1284
  %v1286 = vtanh.pop %v1279
  %v1287 = vmul.f32 %v1285, %v1073
  %1289 = vrot.lane.b32.xlu0 %v1286, 32
  %v1290 = vpop.permute.xlu0 %1289
  %v1292 = vmul.f32 %v1285, %v1290
  %1294 = vrot.lane.b32.xlu0 %v1292, 32
  %v1295 = vpop.permute.xlu0 %1294
  %v1297 = vadd.f32 %v1287, %v1295
  %v1298 = vtanh.pop %v1297
  %1300 = vrot.lane.b32.xlu0 %v1298, 32
  %v1301 = vpop.permute.xlu0 %1300
  %v1303 = vmul.f32 %v1285, %v1301
  %v1304 = vpack.c.bf16 %v1191, %v1191
  %1306 = vrot.lane.b32.xlu0 %v1304, 64
  %v1307 = vpop.permute.xlu0 %1306
  %v1309 = vsel %vm87, %v1307, 0
  %1311 = vmatprep.subr.bf16.mxu0 0
  %1312 = vmatpush1.bf16.msra.mxu0 0
  %1313 = vmatprep.subr.bf16.mxu0 0
  %1314 = vmatpush1.bf16.msra.mxu0 0
  %1315 = vmatprep.subr.bf16.mxu0 0
  %1316 = vmatpush1.bf16.msra.mxu0 0
  %1317 = vmatprep.subr.bf16.mxu0 0
  %1318 = vmatpush1.bf16.msra.mxu0 0
  %1319 = vmatprep.subr.bf16.mxu0 0
  %1320 = vmatpush1.bf16.msra.mxu0 0
  %1321 = vmatprep.subr.bf16.mxu0 0
  %1322 = vmatpush1.bf16.msra.mxu0 0
  %1323 = vmatprep.subr.bf16.mxu0 0
  %1324 = vmatpush1.bf16.msra.mxu0 %v84
  %1325 = vmatprep.subr.bf16.mxu0 0
  %1326 = vmatpush1.bf16.msra.mxu0 %v83
  %1327 = vmatprep.subr.bf16.mxu0 0
  %1328 = vmatpush2.bf16.msra.mxu0 0
  %1329 = vmatprep.subr.bf16.mxu0 0
  %1330 = vmatpush2.bf16.msra.mxu0 0
  %1331 = vmatprep.subr.bf16.mxu0 0
  %1332 = vmatpush2.bf16.msra.mxu0 0
  %1333 = vmatprep.subr.bf16.mxu0 0
  %1334 = vmatpush2.bf16.msra.mxu0 0
  %1335 = vmatprep.subr.bf16.mxu0 0
  %1336 = vmatpush2.bf16.msra.mxu0 0
  %1337 = vmatprep.subr.bf16.mxu0 0
  %1338 = vmatpush2.bf16.msra.mxu0 0
  %1339 = vmatprep.subr.bf16.mxu0 0
  %1340 = vmatpush2.bf16.msra.mxu0 0
  %1341 = vmatprep.subr.bf16.mxu0 0
  %1342 = vmatpush2.bf16.msra.mxu0 0
  %1343 = vmatprep.mubr.bf16.mxu0 0
  %1344 = vmatmul.mubr.bf16.gmra.mxu0 %v1309
  %v1345 = vpop.f32.mrf.mxu0
  %v1346 = vadd.f32 0.0, %v1345
  %v1347 = vpop.f32.mrf.mxu0
  %v1348 = vpop.f32.mrf.mxu0
  %v1349 = vpop.f32.mrf.mxu0
  %1350 = vdwg.mxu0
  %1351 = vmatprep.subr.bf16.mxu0 0
  %1352 = vmatpush1.bf16.msra.mxu0 0
  %1353 = vmatprep.subr.bf16.mxu0 0
  %1354 = vmatpush1.bf16.msra.mxu0 0
  %1355 = vmatprep.subr.bf16.mxu0 0
  %1356 = vmatpush1.bf16.msra.mxu0 0
  %1357 = vmatprep.subr.bf16.mxu0 0
  %1358 = vmatpush1.bf16.msra.mxu0 0
  %1359 = vmatprep.subr.bf16.mxu0 0
  %1360 = vmatpush1.bf16.msra.mxu0 0
  %1361 = vmatprep.subr.bf16.mxu0 0
  %1362 = vmatpush1.bf16.msra.mxu0 0
  %1363 = vmatprep.subr.bf16.mxu0 0
  %1364 = vmatpush1.bf16.msra.mxu0 %v140
  %1365 = vmatprep.subr.bf16.mxu0 0
  %1366 = vmatpush1.bf16.msra.mxu0 %v139
  %1367 = vmatprep.subr.bf16.mxu0 0
  %1368 = vmatpush2.bf16.msra.mxu0 0
  %1369 = vmatprep.subr.bf16.mxu0 0
  %1370 = vmatpush2.bf16.msra.mxu0 0
  %1371 = vmatprep.subr.bf16.mxu0 0
  %1372 = vmatpush2.bf16.msra.mxu0 0
  %1373 = vmatprep.subr.bf16.mxu0 0
  %1374 = vmatpush2.bf16.msra.mxu0 0
  %1375 = vmatprep.subr.bf16.mxu0 0
  %1376 = vmatpush2.bf16.msra.mxu0 0
  %1377 = vmatprep.subr.bf16.mxu0 0
  %1378 = vmatpush2.bf16.msra.mxu0 0
  %1379 = vmatprep.subr.bf16.mxu0 0
  %1380 = vmatpush2.bf16.msra.mxu0 0
  %1381 = vmatprep.subr.bf16.mxu0 0
  %1382 = vmatpush2.bf16.msra.mxu0 0
  %1383 = vmatprep.mubr.bf16.mxu0 0
  %1384 = vmatmul.mubr.bf16.gmra.mxu0 %v779
  %v1385 = vpop.f32.mrf.mxu0
  %v1386 = vadd.f32 %v1346, %v1385
  %v1387 = vpop.f32.mrf.mxu0
  %v1388 = vpop.f32.mrf.mxu0
  %v1389 = vpop.f32.mrf.mxu0
  %1390 = vdwg.mxu0
  %v1391 = vadd.f32 %v1386, %v190
  %v1392 = vxor.u32 %v1391, 2147483648
  %v1393 = vmul.f32 %v1392, 1.442695
  %v1394 = vpow.pop %v1393
  %v1395 = vadd.f32 %v1394, 1.0
  %v1396 = vrcp.pop %v1395
  %v1397 = vmul.f32 1.0, %v1396
  %v1398 = vtanh.pop %v1391
  %v1399 = vmul.f32 %v1397, %v1185
  %1401 = vrot.lane.b32.xlu0 %v1398, 32
  %v1402 = vpop.permute.xlu0 %1401
  %v1404 = vmul.f32 %v1397, %v1402
  %1406 = vrot.lane.b32.xlu0 %v1404, 32
  %v1407 = vpop.permute.xlu0 %1406
  %v1409 = vadd.f32 %v1399, %v1407
  %v1410 = vtanh.pop %v1409
  %1412 = vrot.lane.b32.xlu0 %v1410, 32
  %v1413 = vpop.permute.xlu0 %1412
  %v1415 = vmul.f32 %v1397, %v1413
  %v1416 = vpack.c.bf16 %v1303, %v1303
  %1418 = vrot.lane.b32.xlu0 %v1416, 64
  %v1419 = vpop.permute.xlu0 %1418
  %v1421 = vsel %vm87, %v1419, 0
  %1423 = vmatprep.subr.bf16.mxu0 0
  %1424 = vmatpush1.bf16.msra.mxu0 0
  %1425 = vmatprep.subr.bf16.mxu0 0
  %1426 = vmatpush1.bf16.msra.mxu0 0
  %1427 = vmatprep.subr.bf16.mxu0 0
  %1428 = vmatpush1.bf16.msra.mxu0 0
  %1429 = vmatprep.subr.bf16.mxu0 0
  %1430 = vmatpush1.bf16.msra.mxu0 0
  %1431 = vmatprep.subr.bf16.mxu0 0
  %1432 = vmatpush1.bf16.msra.mxu0 0
  %1433 = vmatprep.subr.bf16.mxu0 0
  %1434 = vmatpush1.bf16.msra.mxu0 0
  %1435 = vmatprep.subr.bf16.mxu0 0
  %1436 = vmatpush1.bf16.msra.mxu0 %v237
  %1437 = vmatprep.subr.bf16.mxu0 0
  %1438 = vmatpush1.bf16.msra.mxu0 %v236
  %1439 = vmatprep.subr.bf16.mxu0 0
  %1440 = vmatpush2.bf16.msra.mxu0 0
  %1441 = vmatprep.subr.bf16.mxu0 0
  %1442 = vmatpush2.bf16.msra.mxu0 0
  %1443 = vmatprep.subr.bf16.mxu0 0
  %1444 = vmatpush2.bf16.msra.mxu0 0
  %1445 = vmatprep.subr.bf16.mxu0 0
  %1446 = vmatpush2.bf16.msra.mxu0 0
  %1447 = vmatprep.subr.bf16.mxu0 0
  %1448 = vmatpush2.bf16.msra.mxu0 0
  %1449 = vmatprep.subr.bf16.mxu0 0
  %1450 = vmatpush2.bf16.msra.mxu0 0
  %1451 = vmatprep.subr.bf16.mxu0 0
  %1452 = vmatpush2.bf16.msra.mxu0 0
  %1453 = vmatprep.subr.bf16.mxu0 0
  %1454 = vmatpush2.bf16.msra.mxu0 0
  %1455 = vmatprep.mubr.bf16.mxu0 0
  %1456 = vmatmul.mubr.bf16.gmra.mxu0 %v1421
  %v1457 = vpop.f32.mrf.mxu0
  %v1458 = vadd.f32 0.0, %v1457
  %v1459 = vpop.f32.mrf.mxu0
  %v1460 = vpop.f32.mrf.mxu0
  %v1461 = vpop.f32.mrf.mxu0
  %1462 = vdwg.mxu0
  %1463 = vmatprep.subr.bf16.mxu0 0
  %1464 = vmatpush1.bf16.msra.mxu0 0
  %1465 = vmatprep.subr.bf16.mxu0 0
  %1466 = vmatpush1.bf16.msra.mxu0 0
  %1467 = vmatprep.subr.bf16.mxu0 0
  %1468 = vmatpush1.bf16.msra.mxu0 0
  %1469 = vmatprep.subr.bf16.mxu0 0
  %1470 = vmatpush1.bf16.msra.mxu0 0
  %1471 = vmatprep.subr.bf16.mxu0 0
  %1472 = vmatpush1.bf16.msra.mxu0 0
  %1473 = vmatprep.subr.bf16.mxu0 0
  %1474 = vmatpush1.bf16.msra.mxu0 0
  %1475 = vmatprep.subr.bf16.mxu0 0
  %1476 = vmatpush1.bf16.msra.mxu0 %v292
  %1477 = vmatprep.subr.bf16.mxu0 0
  %1478 = vmatpush1.bf16.msra.mxu0 %v291
  %1479 = vmatprep.subr.bf16.mxu0 0
  %1480 = vmatpush2.bf16.msra.mxu0 0
  %1481 = vmatprep.subr.bf16.mxu0 0
  %1482 = vmatpush2.bf16.msra.mxu0 0
  %1483 = vmatprep.subr.bf16.mxu0 0
  %1484 = vmatpush2.bf16.msra.mxu0 0
  %1485 = vmatprep.subr.bf16.mxu0 0
  %1486 = vmatpush2.bf16.msra.mxu0 0
  %1487 = vmatprep.subr.bf16.mxu0 0
  %1488 = vmatpush2.bf16.msra.mxu0 0
  %1489 = vmatprep.subr.bf16.mxu0 0
  %1490 = vmatpush2.bf16.msra.mxu0 0
  %1491 = vmatprep.subr.bf16.mxu0 0
  %1492 = vmatpush2.bf16.msra.mxu0 0
  %1493 = vmatprep.subr.bf16.mxu0 0
  %1494 = vmatpush2.bf16.msra.mxu0 0
  %1495 = vmatprep.mubr.bf16.mxu0 0
  %1496 = vmatmul.mubr.bf16.gmra.mxu0 %v662
  %v1497 = vpop.f32.mrf.mxu0
  %v1498 = vadd.f32 %v1458, %v1497
  %v1499 = vpop.f32.mrf.mxu0
  %v1500 = vpop.f32.mrf.mxu0
  %v1501 = vpop.f32.mrf.mxu0
  %1502 = vdwg.mxu0
  %v1503 = vadd.f32 %v1498, %v342
  %v1504 = vxor.u32 %v1503, 2147483648
  %v1505 = vmul.f32 %v1504, 1.442695
  %v1506 = vpow.pop %v1505
  %v1507 = vadd.f32 %v1506, 1.0
  %v1508 = vrcp.pop %v1507
  %v1509 = vmul.f32 1.0, %v1508
  %v1510 = vtanh.pop %v1503
  %v1511 = vmul.f32 %v1509, %v1297
  %1513 = vrot.lane.b32.xlu0 %v1510, 32
  %v1514 = vpop.permute.xlu0 %1513
  %v1516 = vmul.f32 %v1509, %v1514
  %1518 = vrot.lane.b32.xlu0 %v1516, 32
  %v1519 = vpop.permute.xlu0 %1518
  %v1521 = vadd.f32 %v1511, %v1519
  %v1522 = vtanh.pop %v1521
  %1524 = vrot.lane.b32.xlu0 %v1522, 32
  %v1525 = vpop.permute.xlu0 %1524
  %v1527 = vmul.f32 %v1509, %v1525
  %v1528 = vpack.c.bf16 %v1415, %v1415
  %1530 = vrot.lane.b32.xlu0 %v1528, 64
  %v1531 = vpop.permute.xlu0 %1530
  %v1533 = vsel %vm87, %v1531, 0
  %1535 = vmatprep.subr.bf16.mxu0 0
  %1536 = vmatpush1.bf16.msra.mxu0 0
  %1537 = vmatprep.subr.bf16.mxu0 0
  %1538 = vmatpush1.bf16.msra.mxu0 0
  %1539 = vmatprep.subr.bf16.mxu0 0
  %1540 = vmatpush1.bf16.msra.mxu0 0
  %1541 = vmatprep.subr.bf16.mxu0 0
  %1542 = vmatpush1.bf16.msra.mxu0 0
  %1543 = vmatprep.subr.bf16.mxu0 0
  %1544 = vmatpush1.bf16.msra.mxu0 0
  %1545 = vmatprep.subr.bf16.mxu0 0
  %1546 = vmatpush1.bf16.msra.mxu0 0
  %1547 = vmatprep.subr.bf16.mxu0 0
  %1548 = vmatpush1.bf16.msra.mxu0 %v84
  %1549 = vmatprep.subr.bf16.mxu0 0
  %1550 = vmatpush1.bf16.msra.mxu0 %v83
  %1551 = vmatprep.subr.bf16.mxu0 0
  %1552 = vmatpush2.bf16.msra.mxu0 0
  %1553 = vmatprep.subr.bf16.mxu0 0
  %1554 = vmatpush2.bf16.msra.mxu0 0
  %1555 = vmatprep.subr.bf16.mxu0 0
  %1556 = vmatpush2.bf16.msra.mxu0 0
  %1557 = vmatprep.subr.bf16.mxu0 0
  %1558 = vmatpush2.bf16.msra.mxu0 0
  %1559 = vmatprep.subr.bf16.mxu0 0
  %1560 = vmatpush2.bf16.msra.mxu0 0
  %1561 = vmatprep.subr.bf16.mxu0 0
  %1562 = vmatpush2.bf16.msra.mxu0 0
  %1563 = vmatprep.subr.bf16.mxu0 0
  %1564 = vmatpush2.bf16.msra.mxu0 0
  %1565 = vmatprep.subr.bf16.mxu0 0
  %1566 = vmatpush2.bf16.msra.mxu0 0
  %1567 = vmatprep.mubr.bf16.mxu0 0
  %1568 = vmatmul.mubr.bf16.gmra.mxu0 %v1533
  %v1569 = vpop.f32.mrf.mxu0
  %v1570 = vadd.f32 0.0, %v1569
  %v1571 = vpop.f32.mrf.mxu0
  %v1572 = vpop.f32.mrf.mxu0
  %v1573 = vpop.f32.mrf.mxu0
  %1574 = vdwg.mxu0
  %1575 = vmatprep.subr.bf16.mxu0 0
  %1576 = vmatpush1.bf16.msra.mxu0 0
  %1577 = vmatprep.subr.bf16.mxu0 0
  %1578 = vmatpush1.bf16.msra.mxu0 0
  %1579 = vmatprep.subr.bf16.mxu0 0
  %1580 = vmatpush1.bf16.msra.mxu0 0
  %1581 = vmatprep.subr.bf16.mxu0 0
  %1582 = vmatpush1.bf16.msra.mxu0 0
  %1583 = vmatprep.subr.bf16.mxu0 0
  %1584 = vmatpush1.bf16.msra.mxu0 0
  %1585 = vmatprep.subr.bf16.mxu0 0
  %1586 = vmatpush1.bf16.msra.mxu0 0
  %1587 = vmatprep.subr.bf16.mxu0 0
  %1588 = vmatpush1.bf16.msra.mxu0 %v140
  %1589 = vmatprep.subr.bf16.mxu0 0
  %1590 = vmatpush1.bf16.msra.mxu0 %v139
  %1591 = vmatprep.subr.bf16.mxu0 0
  %1592 = vmatpush2.bf16.msra.mxu0 0
  %1593 = vmatprep.subr.bf16.mxu0 0
  %1594 = vmatpush2.bf16.msra.mxu0 0
  %1595 = vmatprep.subr.bf16.mxu0 0
  %1596 = vmatpush2.bf16.msra.mxu0 0
  %1597 = vmatprep.subr.bf16.mxu0 0
  %1598 = vmatpush2.bf16.msra.mxu0 0
  %1599 = vmatprep.subr.bf16.mxu0 0
  %1600 = vmatpush2.bf16.msra.mxu0 0
  %1601 = vmatprep.subr.bf16.mxu0 0
  %1602 = vmatpush2.bf16.msra.mxu0 0
  %1603 = vmatprep.subr.bf16.mxu0 0
  %1604 = vmatpush2.bf16.msra.mxu0 0
  %1605 = vmatprep.subr.bf16.mxu0 0
  %1606 = vmatpush2.bf16.msra.mxu0 0
  %1607 = vmatprep.mubr.bf16.mxu0 0
  %1608 = vmatmul.mubr.bf16.gmra.mxu0 %v545
  %v1609 = vpop.f32.mrf.mxu0
  %v1610 = vadd.f32 %v1570, %v1609
  %v1611 = vpop.f32.mrf.mxu0
  %v1612 = vpop.f32.mrf.mxu0
  %v1613 = vpop.f32.mrf.mxu0
  %1614 = vdwg.mxu0
  %v1615 = vadd.f32 %v1610, %v190
  %v1616 = vxor.u32 %v1615, 2147483648
  %v1617 = vmul.f32 %v1616, 1.442695
  %v1618 = vpow.pop %v1617
  %v1619 = vadd.f32 %v1618, 1.0
  %v1620 = vrcp.pop %v1619
  %v1621 = vmul.f32 1.0, %v1620
  %v1622 = vtanh.pop %v1615
  %v1623 = vmul.f32 %v1621, %v1409
  %1625 = vrot.lane.b32.xlu0 %v1622, 32
  %v1626 = vpop.permute.xlu0 %1625
  %v1628 = vmul.f32 %v1621, %v1626
  %1630 = vrot.lane.b32.xlu0 %v1628, 32
  %v1631 = vpop.permute.xlu0 %1630
  %v1633 = vadd.f32 %v1623, %v1631
  %v1634 = vtanh.pop %v1633
  %1636 = vrot.lane.b32.xlu0 %v1634, 32
  %v1637 = vpop.permute.xlu0 %1636
  %v1639 = vmul.f32 %v1621, %v1637
  %v1640 = vpack.c.bf16 %v1527, %v1527
  %1642 = vrot.lane.b32.xlu0 %v1640, 64
  %v1643 = vpop.permute.xlu0 %1642
  %v1645 = vsel %vm87, %v1643, 0
  %1647 = vmatprep.subr.bf16.mxu0 0
  %1648 = vmatpush1.bf16.msra.mxu0 0
  %1649 = vmatprep.subr.bf16.mxu0 0
  %1650 = vmatpush1.bf16.msra.mxu0 0
  %1651 = vmatprep.subr.bf16.mxu0 0
  %1652 = vmatpush1.bf16.msra.mxu0 0
  %1653 = vmatprep.subr.bf16.mxu0 0
  %1654 = vmatpush1.bf16.msra.mxu0 0
  %1655 = vmatprep.subr.bf16.mxu0 0
  %1656 = vmatpush1.bf16.msra.mxu0 0
  %1657 = vmatprep.subr.bf16.mxu0 0
  %1658 = vmatpush1.bf16.msra.mxu0 0
  %1659 = vmatprep.subr.bf16.mxu0 0
  %1660 = vmatpush1.bf16.msra.mxu0 %v237
  %1661 = vmatprep.subr.bf16.mxu0 0
  %1662 = vmatpush1.bf16.msra.mxu0 %v236
  %1663 = vmatprep.subr.bf16.mxu0 0
  %1664 = vmatpush2.bf16.msra.mxu0 0
  %1665 = vmatprep.subr.bf16.mxu0 0
  %1666 = vmatpush2.bf16.msra.mxu0 0
  %1667 = vmatprep.subr.bf16.mxu0 0
  %1668 = vmatpush2.bf16.msra.mxu0 0
  %1669 = vmatprep.subr.bf16.mxu0 0
  %1670 = vmatpush2.bf16.msra.mxu0 0
  %1671 = vmatprep.subr.bf16.mxu0 0
  %1672 = vmatpush2.bf16.msra.mxu0 0
  %1673 = vmatprep.subr.bf16.mxu0 0
  %1674 = vmatpush2.bf16.msra.mxu0 0
  %1675 = vmatprep.subr.bf16.mxu0 0
  %1676 = vmatpush2.bf16.msra.mxu0 0
  %1677 = vmatprep.subr.bf16.mxu0 0
  %1678 = vmatpush2.bf16.msra.mxu0 0
  %1679 = vmatprep.mubr.bf16.mxu0 0
  %1680 = vmatmul.mubr.bf16.gmra.mxu0 %v1645
  %v1681 = vpop.f32.mrf.mxu0
  %v1682 = vadd.f32 0.0, %v1681
  %v1683 = vpop.f32.mrf.mxu0
  %v1684 = vpop.f32.mrf.mxu0
  %v1685 = vpop.f32.mrf.mxu0
  %1686 = vdwg.mxu0
  %1687 = vmatprep.subr.bf16.mxu0 0
  %1688 = vmatpush1.bf16.msra.mxu0 0
  %1689 = vmatprep.subr.bf16.mxu0 0
  %1690 = vmatpush1.bf16.msra.mxu0 0
  %1691 = vmatprep.subr.bf16.mxu0 0
  %1692 = vmatpush1.bf16.msra.mxu0 0
  %1693 = vmatprep.subr.bf16.mxu0 0
  %1694 = vmatpush1.bf16.msra.mxu0 0
  %1695 = vmatprep.subr.bf16.mxu0 0
  %1696 = vmatpush1.bf16.msra.mxu0 0
  %1697 = vmatprep.subr.bf16.mxu0 0
  %1698 = vmatpush1.bf16.msra.mxu0 0
  %1699 = vmatprep.subr.bf16.mxu0 0
  %1700 = vmatpush1.bf16.msra.mxu0 %v292
  %1701 = vmatprep.subr.bf16.mxu0 0
  %1702 = vmatpush1.bf16.msra.mxu0 %v291
  %1703 = vmatprep.subr.bf16.mxu0 0
  %1704 = vmatpush2.bf16.msra.mxu0 0
  %1705 = vmatprep.subr.bf16.mxu0 0
  %1706 = vmatpush2.bf16.msra.mxu0 0
  %1707 = vmatprep.subr.bf16.mxu0 0
  %1708 = vmatpush2.bf16.msra.mxu0 0
  %1709 = vmatprep.subr.bf16.mxu0 0
  %1710 = vmatpush2.bf16.msra.mxu0 0
  %1711 = vmatprep.subr.bf16.mxu0 0
  %1712 = vmatpush2.bf16.msra.mxu0 0
  %1713 = vmatprep.subr.bf16.mxu0 0
  %1714 = vmatpush2.bf16.msra.mxu0 0
  %1715 = vmatprep.subr.bf16.mxu0 0
  %1716 = vmatpush2.bf16.msra.mxu0 0
  %1717 = vmatprep.subr.bf16.mxu0 0
  %1718 = vmatpush2.bf16.msra.mxu0 0
  %1719 = vmatprep.mubr.bf16.mxu0 0
  %1720 = vmatmul.mubr.bf16.gmra.mxu0 %v428
  %v1721 = vpop.f32.mrf.mxu0
  %v1722 = vadd.f32 %v1682, %v1721
  %v1723 = vpop.f32.mrf.mxu0
  %v1724 = vpop.f32.mrf.mxu0
  %v1725 = vpop.f32.mrf.mxu0
  %1726 = vdwg.mxu0
  %v1727 = vadd.f32 %v1722, %v342
  %v1728 = vxor.u32 %v1727, 2147483648
  %v1729 = vmul.f32 %v1728, 1.442695
  %v1730 = vpow.pop %v1729
  %v1731 = vadd.f32 %v1730, 1.0
  %v1732 = vrcp.pop %v1731
  %v1733 = vmul.f32 1.0, %v1732
  %v1734 = vtanh.pop %v1727
  %v1735 = vmul.f32 %v1733, %v1521
  %1737 = vrot.lane.b32.xlu0 %v1734, 32
  %v1738 = vpop.permute.xlu0 %1737
  %v1740 = vmul.f32 %v1733, %v1738
  %1742 = vrot.lane.b32.xlu0 %v1740, 32
  %v1743 = vpop.permute.xlu0 %1742
  %v1745 = vadd.f32 %v1735, %v1743
  %v1746 = vtanh.pop %v1745
  %1748 = vrot.lane.b32.xlu0 %v1746, 32
  %v1749 = vpop.permute.xlu0 %1748
  %v1751 = vmul.f32 %v1733, %v1749
  %v1752 = vld [vmem:[%s221] sm:$0xf]
  %v1753 = vpack.c.bf16 %v1639, %v1639
  %1755 = vrot.lane.b32.xlu0 %v1753, 64
  %v1756 = vpop.permute.xlu0 %1755
  %v1758 = vsel %vm87, %v1756, 0
  %1760 = vmatprep.subr.bf16.mxu0 0
  %1761 = vmatpush1.bf16.msra.mxu0 0
  %1762 = vmatprep.subr.bf16.mxu0 0
  %1763 = vmatpush1.bf16.msra.mxu0 0
  %1764 = vmatprep.subr.bf16.mxu0 0
  %1765 = vmatpush1.bf16.msra.mxu0 0
  %1766 = vmatprep.subr.bf16.mxu0 0
  %1767 = vmatpush1.bf16.msra.mxu0 0
  %1768 = vmatprep.subr.bf16.mxu0 0
  %1769 = vmatpush1.bf16.msra.mxu0 0
  %1770 = vmatprep.subr.bf16.mxu0 0
  %1771 = vmatpush1.bf16.msra.mxu0 0
  %1772 = vmatprep.subr.bf16.mxu0 0
  %1773 = vmatpush1.bf16.msra.mxu0 %v84
  %1774 = vmatprep.subr.bf16.mxu0 0
  %1775 = vmatpush1.bf16.msra.mxu0 %v83
  %1776 = vmatprep.subr.bf16.mxu0 0
  %1777 = vmatpush2.bf16.msra.mxu0 0
  %1778 = vmatprep.subr.bf16.mxu0 0
  %1779 = vmatpush2.bf16.msra.mxu0 0
  %1780 = vmatprep.subr.bf16.mxu0 0
  %1781 = vmatpush2.bf16.msra.mxu0 0
  %1782 = vmatprep.subr.bf16.mxu0 0
  %1783 = vmatpush2.bf16.msra.mxu0 0
  %1784 = vmatprep.subr.bf16.mxu0 0
  %1785 = vmatpush2.bf16.msra.mxu0 0
  %1786 = vmatprep.subr.bf16.mxu0 0
  %1787 = vmatpush2.bf16.msra.mxu0 0
  %1788 = vmatprep.subr.bf16.mxu0 0
  %1789 = vmatpush2.bf16.msra.mxu0 0
  %1790 = vmatprep.subr.bf16.mxu0 0
  %1791 = vmatpush2.bf16.msra.mxu0 0
  %1792 = vmatprep.mubr.bf16.mxu0 0
  %1793 = vmatmul.mubr.bf16.gmra.mxu0 %v1758
  %v1794 = vpop.f32.mrf.mxu0
  %v1795 = vadd.f32 0.0, %v1794
  %v1796 = vpop.f32.mrf.mxu0
  %v1797 = vpop.f32.mrf.mxu0
  %v1798 = vpop.f32.mrf.mxu0
  %1799 = vdwg.mxu0
  %v1801 = vsel %vm87, %v1752, 0
  %1803 = vmatprep.subr.bf16.mxu0 0
  %1804 = vmatpush1.bf16.msra.mxu0 0
  %1805 = vmatprep.subr.bf16.mxu0 0
  %1806 = vmatpush1.bf16.msra.mxu0 0
  %1807 = vmatprep.subr.bf16.mxu0 0
  %1808 = vmatpush1.bf16.msra.mxu0 0
  %1809 = vmatprep.subr.bf16.mxu0 0
  %1810 = vmatpush1.bf16.msra.mxu0 0
  %1811 = vmatprep.subr.bf16.mxu0 0
  %1812 = vmatpush1.bf16.msra.mxu0 0
  %1813 = vmatprep.subr.bf16.mxu0 0
  %1814 = vmatpush1.bf16.msra.mxu0 0
  %1815 = vmatprep.subr.bf16.mxu0 0
  %1816 = vmatpush1.bf16.msra.mxu0 %v140
  %1817 = vmatprep.subr.bf16.mxu0 0
  %1818 = vmatpush1.bf16.msra.mxu0 %v139
  %1819 = vmatprep.subr.bf16.mxu0 0
  %1820 = vmatpush2.bf16.msra.mxu0 0
  %1821 = vmatprep.subr.bf16.mxu0 0
  %1822 = vmatpush2.bf16.msra.mxu0 0
  %1823 = vmatprep.subr.bf16.mxu0 0
  %1824 = vmatpush2.bf16.msra.mxu0 0
  %1825 = vmatprep.subr.bf16.mxu0 0
  %1826 = vmatpush2.bf16.msra.mxu0 0
  %1827 = vmatprep.subr.bf16.mxu0 0
  %1828 = vmatpush2.bf16.msra.mxu0 0
  %1829 = vmatprep.subr.bf16.mxu0 0
  %1830 = vmatpush2.bf16.msra.mxu0 0
  %1831 = vmatprep.subr.bf16.mxu0 0
  %1832 = vmatpush2.bf16.msra.mxu0 0
  %1833 = vmatprep.subr.bf16.mxu0 0
  %1834 = vmatpush2.bf16.msra.mxu0 0
  %1835 = vmatprep.mubr.bf16.mxu0 0
  %1836 = vmatmul.mubr.bf16.gmra.mxu0 %v1801
  %v1837 = vpop.f32.mrf.mxu0
  %v1838 = vadd.f32 %v1795, %v1837
  %v1839 = vpop.f32.mrf.mxu0
  %v1840 = vpop.f32.mrf.mxu0
  %v1841 = vpop.f32.mrf.mxu0
  %1842 = vdwg.mxu0
  %v1843 = vadd.f32 %v1838, %v190
  %v1844 = vxor.u32 %v1843, 2147483648
  %v1845 = vmul.f32 %v1844, 1.442695
  %v1846 = vpow.pop %v1845
  %v1847 = vadd.f32 %v1846, 1.0
  %v1848 = vrcp.pop %v1847
  %v1849 = vmul.f32 1.0, %v1848
  %v1850 = vtanh.pop %v1843
  %v1851 = vmul.f32 %v1849, %v1633
  %1853 = vrot.lane.b32.xlu0 %v1850, 32
  %v1854 = vpop.permute.xlu0 %1853
  %v1856 = vmul.f32 %v1849, %v1854
  %1858 = vrot.lane.b32.xlu0 %v1856, 32
  %v1859 = vpop.permute.xlu0 %1858
  %v1861 = vadd.f32 %v1851, %v1859
  %v1862 = vtanh.pop %v1861
  %1864 = vrot.lane.b32.xlu0 %v1862, 32
  %v1865 = vpop.permute.xlu0 %1864
  %v1867 = vmul.f32 %v1849, %v1865
  %v1868 = vld [vmem:[%s0] sm:$0xf]
  %v1869 = vpack.c.bf16 %v1751, %v1751
  %1871 = vrot.lane.b32.xlu0 %v1869, 64
  %v1872 = vpop.permute.xlu0 %1871
  %v1874 = vsel %vm87, %v1872, 0
  %1876 = vmatprep.subr.bf16.mxu0 0
  %1877 = vmatpush1.bf16.msra.mxu0 0
  %1878 = vmatprep.subr.bf16.mxu0 0
  %1879 = vmatpush1.bf16.msra.mxu0 0
  %1880 = vmatprep.subr.bf16.mxu0 0
  %1881 = vmatpush1.bf16.msra.mxu0 0
  %1882 = vmatprep.subr.bf16.mxu0 0
  %1883 = vmatpush1.bf16.msra.mxu0 0
  %1884 = vmatprep.subr.bf16.mxu0 0
  %1885 = vmatpush1.bf16.msra.mxu0 0
  %1886 = vmatprep.subr.bf16.mxu0 0
  %1887 = vmatpush1.bf16.msra.mxu0 0
  %1888 = vmatprep.subr.bf16.mxu0 0
  %1889 = vmatpush1.bf16.msra.mxu0 %v237
  %1890 = vmatprep.subr.bf16.mxu0 0
  %1891 = vmatpush1.bf16.msra.mxu0 %v236
  %1892 = vmatprep.subr.bf16.mxu0 0
  %1893 = vmatpush2.bf16.msra.mxu0 0
  %1894 = vmatprep.subr.bf16.mxu0 0
  %1895 = vmatpush2.bf16.msra.mxu0 0
  %1896 = vmatprep.subr.bf16.mxu0 0
  %1897 = vmatpush2.bf16.msra.mxu0 0
  %1898 = vmatprep.subr.bf16.mxu0 0
  %1899 = vmatpush2.bf16.msra.mxu0 0
  %1900 = vmatprep.subr.bf16.mxu0 0
  %1901 = vmatpush2.bf16.msra.mxu0 0
  %1902 = vmatprep.subr.bf16.mxu0 0
  %1903 = vmatpush2.bf16.msra.mxu0 0
  %1904 = vmatprep.subr.bf16.mxu0 0
  %1905 = vmatpush2.bf16.msra.mxu0 0
  %1906 = vmatprep.subr.bf16.mxu0 0
  %1907 = vmatpush2.bf16.msra.mxu0 0
  %1908 = vmatprep.mubr.bf16.mxu0 0
  %1909 = vmatmul.mubr.bf16.gmra.mxu0 %v1874
  %v1910 = vpop.f32.mrf.mxu0
  %v1911 = vadd.f32 0.0, %v1910
  %v1912 = vpop.f32.mrf.mxu0
  %v1913 = vpop.f32.mrf.mxu0
  %v1914 = vpop.f32.mrf.mxu0
  %1915 = vdwg.mxu0
  %v1917 = vsel %vm87, %v1868, 0
  %1919 = vmatprep.subr.bf16.mxu0 0
  %1920 = vmatpush1.bf16.msra.mxu0 0
  %1921 = vmatprep.subr.bf16.mxu0 0
  %1922 = vmatpush1.bf16.msra.mxu0 0
  %1923 = vmatprep.subr.bf16.mxu0 0
  %1924 = vmatpush1.bf16.msra.mxu0 0
  %1925 = vmatprep.subr.bf16.mxu0 0
  %1926 = vmatpush1.bf16.msra.mxu0 0
  %1927 = vmatprep.subr.bf16.mxu0 0
  %1928 = vmatpush1.bf16.msra.mxu0 0
  %1929 = vmatprep.subr.bf16.mxu0 0
  %1930 = vmatpush1.bf16.msra.mxu0 0
  %1931 = vmatprep.subr.bf16.mxu0 0
  %1932 = vmatpush1.bf16.msra.mxu0 %v292
  %1933 = vmatprep.subr.bf16.mxu0 0
  %1934 = vmatpush1.bf16.msra.mxu0 %v291
  %1935 = vmatprep.subr.bf16.mxu0 0
  %1936 = vmatpush2.bf16.msra.mxu0 0
  %1937 = vmatprep.subr.bf16.mxu0 0
  %1938 = vmatpush2.bf16.msra.mxu0 0
  %1939 = vmatprep.subr.bf16.mxu0 0
  %1940 = vmatpush2.bf16.msra.mxu0 0
  %1941 = vmatprep.subr.bf16.mxu0 0
  %1942 = vmatpush2.bf16.msra.mxu0 0
  %1943 = vmatprep.subr.bf16.mxu0 0
  %1944 = vmatpush2.bf16.msra.mxu0 0
  %1945 = vmatprep.subr.bf16.mxu0 0
  %1946 = vmatpush2.bf16.msra.mxu0 0
  %1947 = vmatprep.subr.bf16.mxu0 0
  %1948 = vmatpush2.bf16.msra.mxu0 0
  %1949 = vmatprep.subr.bf16.mxu0 0
  %1950 = vmatpush2.bf16.msra.mxu0 0
  %1951 = vmatprep.mubr.bf16.mxu0 0
  %1952 = vmatmul.mubr.bf16.gmra.mxu0 %v1917
  %v1953 = vpop.f32.mrf.mxu0
  %v1954 = vadd.f32 %v1911, %v1953
  %v1955 = vpop.f32.mrf.mxu0
  %v1956 = vpop.f32.mrf.mxu0
  %v1957 = vpop.f32.mrf.mxu0
  %1958 = vdwg.mxu0
  %v1959 = vadd.f32 %v1954, %v342
  %v1960 = vxor.u32 %v1959, 2147483648
  %v1961 = vmul.f32 %v1960, 1.442695
  %v1962 = vpow.pop %v1961
  %v1963 = vadd.f32 %v1962, 1.0
  %v1964 = vrcp.pop %v1963
  %v1965 = vmul.f32 1.0, %v1964
  %v1966 = vtanh.pop %v1959
  %v1967 = vmul.f32 %v1965, %v1745
  %1969 = vrot.lane.b32.xlu0 %v1966, 32
  %v1970 = vpop.permute.xlu0 %1969
  %v1972 = vmul.f32 %v1965, %v1970
  %1974 = vrot.lane.b32.xlu0 %v1972, 32
  %v1975 = vpop.permute.xlu0 %1974
  %v1977 = vadd.f32 %v1967, %v1975
  %v1978 = vtanh.pop %v1977
  %1980 = vrot.lane.b32.xlu0 %v1978, 32
  %v1981 = vpop.permute.xlu0 %1980
  %v1983 = vmul.f32 %v1965, %v1981
  %1985 = vrot.lane.b32.xlu0 %v1867, 64
  %v1986 = vpop.permute.xlu0 %1985
  %1988 = vst.msk [vmem:[%s15] sm:$0xff] %vm87, %v1986
  %1990 = vrot.lane.b32.xlu0 %v1983, 64
  %v1991 = vpop.permute.xlu0 %1990
  %s1993 = scalar_lea.vmem %s15, 8
  %1994 = vst.msk [vmem:[%s1993] sm:$0xff] %vm87, %v1991
  %1996 = vrot.lane.b32.xlu0 %v1861, 96
  %v1997 = vpop.permute.xlu0 %1996
  %1999 = vst.msk [vmem:[%s16] sm:$0xff] %vm87, %v1997
  %2001 = vrot.lane.b32.xlu0 %v1977, 96
  %v2002 = vpop.permute.xlu0 %2001
  %s2004 = scalar_lea.vmem %s16, 8
  %2005 = vst.msk [vmem:[%s2004] sm:$0xff] %vm87, %v2002
  %v2006 = vld [vmem:[#allocation2] sm:$0xff]
  %v2007 = vpack.c.bf16 %v1867, %v1867
  %v2008 = vld [vmem:[%s9] sm:$0xf]
  %v2009 = vld [vmem:[%s9 + $0x4] sm:$0xf]
  %v2010 = vld [vmem:[%s9 + $0x8] sm:$0xf]
  %v2011 = vld [vmem:[%s9 + $0xc] sm:$0xf]
  %v2012 = vpack.c.bf16 %v2006, %v2006
  %v2013 = vld [vmem:[%s10] sm:$0xf]
  %v2014 = vld [vmem:[%s10 + $0x4] sm:$0xf]
  %v2015 = vld [vmem:[%s10 + $0x8] sm:$0xf]
  %v2016 = vld [vmem:[%s10 + $0xc] sm:$0xf]
  %v2021 = vunpack.c.l.b16 %v2013
  %v2022 = vunpack.c.l.b16 %v2014
  %v2023 = vunpack.c.l.b16 %v2015
  %v2024 = vunpack.c.l.b16 %v2016
  %v2025 = vpack.c.b16 %v2022, %v2021
  %v2026 = vpack.c.b16 %v2024, %v2023
  %v2030 = vsel %vm87, %v2012, 0
  %2032 = vmatprep.subr.bf16.mxu0 0
  %2033 = vmatpush1.bf16.msra.mxu0 0
  %2034 = vmatprep.subr.bf16.mxu0 0
  %2035 = vmatpush1.bf16.msra.mxu0 0
  %2036 = vmatprep.subr.bf16.mxu0 0
  %2037 = vmatpush1.bf16.msra.mxu0 0
  %2038 = vmatprep.subr.bf16.mxu0 0
  %2039 = vmatpush1.bf16.msra.mxu0 0
  %2040 = vmatprep.subr.bf16.mxu0 0
  %2041 = vmatpush1.bf16.msra.mxu0 0
  %2042 = vmatprep.subr.bf16.mxu0 0
  %2043 = vmatpush1.bf16.msra.mxu0 0
  %2044 = vmatprep.subr.bf16.mxu0 0
  %2045 = vmatpush1.bf16.msra.mxu0 %v2026
  %2046 = vmatprep.subr.bf16.mxu0 0
  %2047 = vmatpush1.bf16.msra.mxu0 %v2025
  %2048 = vmatprep.subr.bf16.mxu0 0
  %2049 = vmatpush2.bf16.msra.mxu0 0
  %2050 = vmatprep.subr.bf16.mxu0 0
  %2051 = vmatpush2.bf16.msra.mxu0 0
  %2052 = vmatprep.subr.bf16.mxu0 0
  %2053 = vmatpush2.bf16.msra.mxu0 0
  %2054 = vmatprep.subr.bf16.mxu0 0
  %2055 = vmatpush2.bf16.msra.mxu0 0
  %2056 = vmatprep.subr.bf16.mxu0 0
  %2057 = vmatpush2.bf16.msra.mxu0 0
  %2058 = vmatprep.subr.bf16.mxu0 0
  %2059 = vmatpush2.bf16.msra.mxu0 0
  %2060 = vmatprep.subr.bf16.mxu0 0
  %2061 = vmatpush2.bf16.msra.mxu0 0
  %2062 = vmatprep.subr.bf16.mxu0 0
  %2063 = vmatpush2.bf16.msra.mxu0 0
  %2064 = vmatprep.mubr.bf16.mxu0 0
  %2065 = vmatmul.mubr.bf16.gmra.mxu0 %v2030
  %v2066 = vpop.f32.mrf.mxu0
  %v2067 = vadd.f32 0.0, %v2066
  %v2068 = vpop.f32.mrf.mxu0
  %v2069 = vpop.f32.mrf.mxu0
  %v2070 = vpop.f32.mrf.mxu0
  %2071 = vdwg.mxu0
  %2073 = vrot.lane.b32.xlu0 %v2007, 64
  %v2074 = vpop.permute.xlu0 %2073
  %v2079 = vunpack.c.l.b16 %v2008
  %v2080 = vunpack.c.l.b16 %v2009
  %v2081 = vunpack.c.l.b16 %v2010
  %v2082 = vunpack.c.l.b16 %v2011
  %v2083 = vpack.c.b16 %v2080, %v2079
  %v2084 = vpack.c.b16 %v2082, %v2081
  %v2088 = vsel %vm87, %v2074, 0
  %2090 = vmatprep.subr.bf16.mxu0 0
  %2091 = vmatpush1.bf16.msra.mxu0 0
  %2092 = vmatprep.subr.bf16.mxu0 0
  %2093 = vmatpush1.bf16.msra.mxu0 0
  %2094 = vmatprep.subr.bf16.mxu0 0
  %2095 = vmatpush1.bf16.msra.mxu0 0
  %2096 = vmatprep.subr.bf16.mxu0 0
  %2097 = vmatpush1.bf16.msra.mxu0 0
  %2098 = vmatprep.subr.bf16.mxu0 0
  %2099 = vmatpush1.bf16.msra.mxu0 0
  %2100 = vmatprep.subr.bf16.mxu0 0
  %2101 = vmatpush1.bf16.msra.mxu0 0
  %2102 = vmatprep.subr.bf16.mxu0 0
  %2103 = vmatpush1.bf16.msra.mxu0 %v2084
  %2104 = vmatprep.subr.bf16.mxu0 0
  %2105 = vmatpush1.bf16.msra.mxu0 %v2083
  %2106 = vmatprep.subr.bf16.mxu0 0
  %2107 = vmatpush2.bf16.msra.mxu0 0
  %2108 = vmatprep.subr.bf16.mxu0 0
  %2109 = vmatpush2.bf16.msra.mxu0 0
  %2110 = vmatprep.subr.bf16.mxu0 0
  %2111 = vmatpush2.bf16.msra.mxu0 0
  %2112 = vmatprep.subr.bf16.mxu0 0
  %2113 = vmatpush2.bf16.msra.mxu0 0
  %2114 = vmatprep.subr.bf16.mxu0 0
  %2115 = vmatpush2.bf16.msra.mxu0 0
  %2116 = vmatprep.subr.bf16.mxu0 0
  %2117 = vmatpush2.bf16.msra.mxu0 0
  %2118 = vmatprep.subr.bf16.mxu0 0
  %2119 = vmatpush2.bf16.msra.mxu0 0
  %2120 = vmatprep.subr.bf16.mxu0 0
  %2121 = vmatpush2.bf16.msra.mxu0 0
  %2122 = vmatprep.mubr.bf16.mxu0 0
  %2123 = vmatmul.mubr.bf16.gmra.mxu0 %v2088
  %v2124 = vpop.f32.mrf.mxu0
  %v2125 = vadd.f32 %v2067, %v2124
  %v2126 = vpop.f32.mrf.mxu0
  %v2127 = vpop.f32.mrf.mxu0
  %v2128 = vpop.f32.mrf.mxu0
  %2129 = vdwg.mxu0
  %v2130 = vld [vmem:[%s11] sm:$0x1]
  %v2132 = vlaneseq
  %v2133 = vshrl.u32 %v2132, 7
  %v2134 = vsub.s32 0, %v2133
  %v2135 = vrot.slane %v2130, %v2134
  %v2137 = vadd.f32 %v2125, %v2135
  %v2138 = vmax.f32 %v2137, 0.0
  %v2139 = vpack.c.bf16 %v2138, %v2138
  %v2140 = vld [vmem:[%s12] sm:$0xf]
  %v2141 = vld [vmem:[%s12 + $0x4] sm:$0xf]
  %v2142 = vld [vmem:[%s12 + $0x8] sm:$0xf]
  %v2143 = vld [vmem:[%s12 + $0xc] sm:$0xf]
  %v2144 = vld [vmem:[%s12 + $0x10] sm:$0xf]
  %v2145 = vld [vmem:[%s12 + $0x14] sm:$0xf]
  %v2146 = vld [vmem:[%s12 + $0x18] sm:$0xf]
  %v2147 = vld [vmem:[%s12 + $0x1c] sm:$0xf]
  %v2148 = vld [vmem:[%s12 + $0x20] sm:$0xf]
  %v2149 = vld [vmem:[%s12 + $0x24] sm:$0xf]
  %v2150 = vld [vmem:[%s12 + $0x28] sm:$0xf]
  %v2151 = vld [vmem:[%s12 + $0x2c] sm:$0xf]
  %v2152 = vld [vmem:[%s12 + $0x30] sm:$0xf]
  %v2153 = vld [vmem:[%s12 + $0x34] sm:$0xf]
  %v2154 = vld [vmem:[%s12 + $0x38] sm:$0xf]
  %v2155 = vld [vmem:[%s12 + $0x3c] sm:$0xf]
  %v2156 = vld [vmem:[#allocation3] sm:$0x1]
  %v2158 = vlaneseq
  %v2159 = vshrl.u32 %v2158, 7
  %v2160 = vsub.s32 0, %v2159
  %v2161 = vrot.slane %v2156, %v2160
  %v2179 = vunpack.c.l.b16 %v2140
  %v2180 = vunpack.c.l.b16 %v2141
  %v2181 = vunpack.c.l.b16 %v2142
  %v2182 = vunpack.c.l.b16 %v2143
  %v2183 = vunpack.c.l.b16 %v2144
  %v2184 = vunpack.c.l.b16 %v2145
  %v2185 = vunpack.c.l.b16 %v2146
  %v2186 = vunpack.c.l.b16 %v2147
  %v2187 = vunpack.c.l.b16 %v2148
  %v2188 = vunpack.c.l.b16 %v2149
  %v2189 = vunpack.c.l.b16 %v2150
  %v2190 = vunpack.c.l.b16 %v2151
  %v2191 = vunpack.c.l.b16 %v2152
  %v2192 = vunpack.c.l.b16 %v2153
  %v2193 = vunpack.c.l.b16 %v2154
  %v2194 = vunpack.c.l.b16 %v2155
  %v2195 = vpack.c.b16 %v2180, %v2179
  %v2196 = vpack.c.b16 %v2182, %v2181
  %v2197 = vpack.c.b16 %v2184, %v2183
  %v2198 = vpack.c.b16 %v2186, %v2185
  %v2199 = vpack.c.b16 %v2188, %v2187
  %v2200 = vpack.c.b16 %v2190, %v2189
  %v2201 = vpack.c.b16 %v2192, %v2191
  %v2202 = vpack.c.b16 %v2194, %v2193
  %2211 = vmatprep.subr.bf16.mxu0 0
  %2212 = vmatpush1.bf16.msra.mxu0 %v2202
  %2213 = vmatprep.subr.bf16.mxu0 0
  %2214 = vmatpush1.bf16.msra.mxu0 %v2201
  %2215 = vmatprep.subr.bf16.mxu0 0
  %2216 = vmatpush1.bf16.msra.mxu0 %v2200
  %2217 = vmatprep.subr.bf16.mxu0 0
  %2218 = vmatpush1.bf16.msra.mxu0 %v2199
  %2219 = vmatprep.subr.bf16.mxu0 0
  %2220 = vmatpush1.bf16.msra.mxu0 %v2198
  %2221 = vmatprep.subr.bf16.mxu0 0
  %2222 = vmatpush1.bf16.msra.mxu0 %v2197
  %2223 = vmatprep.subr.bf16.mxu0 0
  %2224 = vmatpush1.bf16.msra.mxu0 %v2196
  %2225 = vmatprep.subr.bf16.mxu0 0
  %2226 = vmatpush1.bf16.msra.mxu0 %v2195
  %2227 = vmatprep.subr.bf16.mxu0 0
  %2228 = vmatpush2.bf16.msra.mxu0 0
  %2229 = vmatprep.subr.bf16.mxu0 0
  %2230 = vmatpush2.bf16.msra.mxu0 0
  %2231 = vmatprep.subr.bf16.mxu0 0
  %2232 = vmatpush2.bf16.msra.mxu0 0
  %2233 = vmatprep.subr.bf16.mxu0 0
  %2234 = vmatpush2.bf16.msra.mxu0 0
  %2235 = vmatprep.subr.bf16.mxu0 0
  %2236 = vmatpush2.bf16.msra.mxu0 0
  %2237 = vmatprep.subr.bf16.mxu0 0
  %2238 = vmatpush2.bf16.msra.mxu0 0
  %2239 = vmatprep.subr.bf16.mxu0 0
  %2240 = vmatpush2.bf16.msra.mxu0 0
  %2241 = vmatprep.subr.bf16.mxu0 0
  %2242 = vmatpush2.bf16.msra.mxu0 0
  %2243 = vmatprep.mubr.bf16.mxu0 0
  %2244 = vmatmul.mubr.bf16.gmra.mxu0 %v2139
  %v2245 = vpop.f32.mrf.mxu0
  %v2246 = vadd.f32 %v2161, %v2245
  %v2247 = vpop.f32.mrf.mxu0
  %v2248 = vpop.f32.mrf.mxu0
  %v2249 = vpop.f32.mrf.mxu0
  %2250 = vdwg.mxu0
  %v2251 = vxor.u32 %v2246, 2147483648
  %v2252 = vmul.f32 %v2251, 1.442695
  %v2253 = vpow.pop %v2252
  %v2254 = vadd.f32 %v2253, 1.0
  %v2255 = vrcp.pop %v2254
  %v2256 = vmul.f32 1.0, %v2255
  %vm2257 = vcmask 7168
  %2258 = vst.msk [vmem:[%s14] sm:$0xff] %vm2257, %v2256
  // Predicated region
  $region58: #{forward.1} parent=0 // pred_check
    _
  $region59: #{forward.1} parent=0 // pred_check_branch
    %2260 = sbr.rel (0) target = $region61
  $region60: #{forward.1} parent=0 // pred_region
    _
  $region61: #{forward.1} parent=0 // pred_fallthru
    _
  // Predicated region
  $region62: #{forward.1} parent=0 // pred_check
    _
  $region63: #{forward.1} parent=0 // pred_check_branch
    %2262 = sbr.rel (0) target = $region65
  $region64: #{forward.1} parent=0 // pred_region
    _
  $region65: #{forward.1} parent=0 // pred_fallthru
    _
  // Predicated region
  $region66: #{forward.1} parent=0 // pred_check
    _
  $region67: #{forward.1} parent=0 // pred_check_branch
    %2264 = sbr.rel (0) target = $region69
  $region68: #{forward.1} parent=0 // pred_region
    _
  $region69: #{forward.1} parent=0 // pred_fallthru
    _
  // Predicated region
  $region70: #{forward.1} parent=0 // pred_check
    _
  $region71: #{forward.1} parent=0 // pred_check_branch
    %2266 = sbr.rel (0) target = $region73
  $region72: #{forward.1} parent=0 // pred_region
    _
  $region73: #{forward.1} parent=0 // pred_fallthru
    _
  // Predicated region
  $region74: #{forward.1} parent=0 // pred_check
    _
  $region75: #{forward.1} parent=0 // pred_check_branch
    %2268 = sbr.rel (0) target = $region77
  $region76: #{forward.1} parent=0 // pred_region
    _
  $region77: #{forward.1} parent=0 // pred_fallthru
    _
  // Predicated region
  $region78: #{forward.1} parent=0 // pred_check
    _
  $region79: #{forward.1} parent=0 // pred_check_branch
    %2270 = sbr.rel (0) target = $region81
  $region80: #{forward.1} parent=0 // pred_region
    _
  $region81: #{forward.1} parent=0 // pred_fallthru
    _

</llo_original>
